<compile_context>
chip_gen: v6e
topology: v6e:2x2x1
jax: 0.10.0
libtpu: 0.0.40
codegen_flags: <defaults>
</compile_context>

<pallas_src>
import functools

import jax
import jax.numpy as jnp
from jax.experimental import pallas as pl
from jax.experimental.pallas import tpu as pltpu


def _ds(start, size, stride):
    # Unit stride -> plain dynamic slice (cheapest path); otherwise strided window.
    if stride == 1:
        return pl.ds(start, size)
    return pl.ds(start, size, stride)


def _fused_base_conv_kernel(x_ref, w_ref, gamma_ref, beta_ref, out_ref,
                            sum_ref, sumsq_ref, *,
                            k, conv_stride, dilation, pool_k, pool_s,
                            tb, c_in, c_out, h_out, w_out, h_p, w_p, m_total, eps):
    """Grid = (pass, batch_tile).  pass 0: global BN stats; pass 1: normalize+pool."""
    p = pl.program_id(0)          # 0 = statistics pass, 1 = output pass
    t = pl.program_id(1)          # batch tile index (tb batch elements per tile)
    m_tile = tb * h_out * w_out

    # ---- Conv2d (bias=False): all k*k taps folded into ONE MXU contraction ----------
    # K = k*k*c_in instead of k*k matmuls with K=c_in (fewer MXU issues, deeper K).
    taps = []
    for kh in range(k):
        for kw in range(k):
            xs = x_ref[:, _ds(kh * dilation, h_out, conv_stride),
                       _ds(kw * dilation, w_out, conv_stride), :]     # (tb,h_out,w_out,c_in)
            taps.append(xs.reshape(m_tile, c_in))
    cols = taps[0] if len(taps) == 1 else jnp.concatenate(taps, axis=-1)  # (m, k*k*c_in)
    acc = jnp.dot(cols, w_ref[...], preferred_element_type=jnp.float32)   # (m, c_out) f32

    # ---- ReLU (f32 epilogue regardless of MXU dtype) -----------------------------------
    y = jnp.maximum(acc, 0.0)

    # ---- Pass 0: accumulate global per-channel sum / sum-of-squares on the MXU --------
    @pl.when(jnp.logical_and(p == 0, t == 0))
    def _init_stats():
        sum_ref[...] = jnp.zeros_like(sum_ref)
        sumsq_ref[...] = jnp.zeros_like(sumsq_ref)

    @pl.when(p == 0)
    def _accumulate_stats():
        ones_row = jnp.ones((1, m_tile), jnp.float32)
        sum_ref[...] += jnp.dot(ones_row, y, preferred_element_type=jnp.float32)
        sumsq_ref[...] += jnp.dot(ones_row, y * y, preferred_element_type=jnp.float32)

    # ---- Pass 1: BN folded to scale/shift, MaxPool, lane-dense store -------------------
    @pl.when(p == 1)
    def _finalize():
        inv_m = 1.0 / float(m_total)
        mean = sum_ref[...] * inv_m                         # (1, c_out)
        var = sumsq_ref[...] * inv_m - mean * mean          # biased variance (single pass)
        scale = gamma_ref[...] * jax.lax.rsqrt(var + eps)   # (1, c_out) row math only
        shift = beta_ref[...] - mean * scale
        y_bn = y * scale + shift                            # 2 full-tile VPU ops

        y4 = y_bn.reshape(tb, h_out, w_out, c_out)
        if pool_s == pool_k:
            # Common case: pool window == stride -> reshape + unrolled max, no scratch.
            yc = y4[:, :h_p * pool_k, :w_p * pool_k, :]
            y6 = yc.reshape(tb, h_p, pool_k, w_p, pool_k, c_out)
            pooled = y6[:, :, 0, :, 0, :]
            for ph in range(pool_k):
                for pw in range(pool_k):
                    if ph == 0 and pw == 0:
                        continue
                    pooled = jnp.maximum(pooled, y6[:, :, ph, :, pw, :])
        else:
            # General strides: strided slices of the live value (still no VMEM scratch).
            pooled = None
            for ph in range(pool_k):
                for pw in range(pool_k):
                    win = y4[:, ph:ph + (h_p - 1) * pool_s + 1:pool_s,
                             pw:pw + (w_p - 1) * pool_s + 1:pool_s, :]
                    pooled = win if pooled is None else jnp.maximum(pooled, win)

        # Lane-dense store: last dim w_p*c_out instead of c_out.
        out_ref[...] = pooled.reshape(tb, h_p, w_p * c_out).astype(out_ref.dtype)


def pack_params(w, gamma, beta):
    """Pre-pack parameters once, outside the jitted forward.

    Conv weight (C_out, C_in, k, k) -> stacked-tap matmul layout (k*k*C_in, C_out)
    matching the in-kernel tap concatenation order (kh, kw, c_in);
    BN affine params -> (1, C_out) rows for lane broadcasting.
    """
    c_out, c_in, kh, kw = w.shape
    assert kh == kw, "square conv kernels only"
    w_mat = jnp.transpose(w, (2, 3, 1, 0)).reshape(kh * kw * c_in, c_out).astype(jnp.float32)
    return (w_mat,
            gamma.reshape(1, c_out).astype(jnp.float32),
            beta.reshape(1, c_out).astype(jnp.float32))


def base_conv_forward(x, w_mat, gamma, beta, *, kernel_size, conv_stride, conv_padding,
                      conv_dilation, pool_kernel_size, pool_stride, eps=1e-5,
                      mxu_dtype=jnp.float32):
    """Forward pass of BaseConv (NCHW in, NCHW out), fused into a single Pallas kernel."""
    n, c_in, h, w = x.shape
    kkc, c_out = w_mat.shape
    assert kkc == kernel_size * kernel_size * c_in

    h_out = (h + 2 * conv_padding - conv_dilation * (kernel_size - 1) - 1) // conv_stride + 1
    w_out = (w + 2 * conv_padding - conv_dilation * (kernel_size - 1) - 1) // conv_stride + 1
    h_p = (h_out - pool_kernel_size) // pool_stride + 1
    w_p = (w_out - pool_kernel_size) // pool_stride + 1
    assert h_out > 0 and w_out > 0 and h_p > 0 and w_p > 0
    h_pad, w_pad = h + 2 * conv_padding, w + 2 * conv_padding

    # NCHW only at the public boundary; padded NHWC inside (rows = N*H*W, lanes = C).
    # MXU operands optionally bf16 (halves activation HBM/VMEM traffic).
    x_nhwc = jnp.transpose(x, (0, 2, 3, 1)).astype(mxu_dtype)
    xp = jnp.pad(x_nhwc, ((0, 0), (conv_padding, conv_padding),
                          (conv_padding, conv_padding), (0, 0)))
    wm = w_mat.astype(mxu_dtype)

    tb = 1                                   # batch elements per tile (pipelined over N)
    m_total = n * h_out * w_out
    kernel = functools.partial(
        _fused_base_conv_kernel,
        k=kernel_size, conv_stride=conv_stride, dilation=conv_dilation,
        pool_k=pool_kernel_size, pool_s=pool_stride,
        tb=tb, c_in=c_in, c_out=c_out, h_out=h_out, w_out=w_out,
        h_p=h_p, w_p=w_p, m_total=m_total, eps=eps)

    out_flat = pl.pallas_call(
        kernel,
        out_shape=jax.ShapeDtypeStruct((n, h_p, w_p * c_out), jnp.float32),
        grid=(2, n // tb),                   # (pass, batch tile)
        in_specs=[
            pl.BlockSpec((tb, h_pad, w_pad, c_in), lambda p, t: (t, 0, 0, 0)),
            pl.BlockSpec((kkc, c_out), lambda p, t: (0, 0)),
            pl.BlockSpec((1, c_out), lambda p, t: (0, 0)),
            pl.BlockSpec((1, c_out), lambda p, t: (0, 0)),
        ],
        out_specs=pl.BlockSpec((tb, h_p, w_p * c_out), lambda p, t: (t, 0, 0)),
        scratch_shapes=[pltpu.VMEM((1, c_out), jnp.float32),   # per-channel sum
                        pltpu.VMEM((1, c_out), jnp.float32)],  # per-channel sum of squares
        compiler_params=pltpu.CompilerParams(
            dimension_semantics=("arbitrary", "arbitrary")),
    )(xp, wm, gamma, beta)

    return jnp.transpose(out_flat.reshape(n, h_p, w_p, c_out), (0, 3, 1, 2))


def _reference(x, w, gamma, beta, *, conv_stride, conv_padding, conv_dilation,
               pool_kernel_size, pool_stride, eps=1e-5):
    """Pure-JAX reference matching the PyTorch module semantics (training mode)."""
    y = jax.lax.conv_general_dilated(
        x, w, window_strides=(conv_stride, conv_stride),
        padding=((conv_padding, conv_padding), (conv_padding, conv_padding)),
        rhs_dilation=(conv_dilation, conv_dilation),
        dimension_numbers=("NCHW", "OIHW", "NCHW"),
        precision=jax.lax.Precision.HIGHEST)
    y = jnp.maximum(y, 0.0)
    mean = jnp.mean(y, axis=(0, 2, 3), keepdims=True)
    var = jnp.mean((y - mean) ** 2, axis=(0, 2, 3), keepdims=True)
    y = (y - mean) * jax.lax.rsqrt(var + eps) * gamma.reshape(1, -1, 1, 1) \
        + beta.reshape(1, -1, 1, 1)
    return jax.lax.reduce_window(
        y, -jnp.inf, jax.lax.max,
        window_dimensions=(1, 1, pool_kernel_size, pool_kernel_size),
        window_strides=(1, 1, pool_stride, pool_stride),
        padding="VALID")


if __name__ == "__main__":
    N, C_IN, H, W = 2, 4, 16, 16
    C_OUT = 8
    K, STRIDE, PAD, DIL = 3, 1, 1, 1
    POOL_K, POOL_S = 2, 2

    key = jax.random.PRNGKey(0)
    k_x, k_w, k_g, k_b = jax.random.split(key, 4)
    x = jax.random.normal(k_x, (N, C_IN, H, W), jnp.float32)
    # Conv2d weight: kaiming_normal_(a=0, mode='fan_in'), bias=False.
    fan_in = C_IN * K * K
    w = jax.random.normal(k_w, (C_OUT, C_IN, K, K), jnp.float32) * (2.0 / fan_in) ** 0.5
    # BN affine params (perturbed from the 1/0 defaults so the affine path is exercised).
    gamma = 1.0 + 0.1 * jax.random.normal(k_g, (C_OUT,), jnp.float32)
    beta = 0.1 * jax.random.normal(k_b, (C_OUT,), jnp.float32)

    w_mat, gamma2, beta2 = pack_params(w, gamma, beta)
    ref = _reference(x, w, gamma, beta, conv_stride=STRIDE, conv_padding=PAD,
                     conv_dilation=DIL, pool_kernel_size=POOL_K, pool_stride=POOL_S)

    common = dict(kernel_size=K, conv_stride=STRIDE, conv_padding=PAD, conv_dilation=DIL,
                  pool_kernel_size=POOL_K, pool_stride=POOL_S)

    # f32 MXU operands: tight tolerance (catches layout / accumulation bugs).
    fwd_f32 = jax.jit(functools.partial(base_conv_forward, mxu_dtype=jnp.float32, **common))
    out_f32 = jax.block_until_ready(fwd_f32(x, w_mat, gamma2, beta2))
    assert out_f32.shape == ref.shape == (N, C_OUT, H // POOL_S, W // POOL_S), out_f32.shape
    err_f32 = float(jnp.max(jnp.abs(out_f32 - ref)))
    assert err_f32 < 1e-3, err_f32

    # bf16 MXU operands (the perf config for v5e/v6e/v7x): tolerance reflects bf16
    # operand rounding only; ReLU/BN/pool epilogue stays f32.
    fwd_bf16 = jax.jit(functools.partial(base_conv_forward, mxu_dtype=jnp.bfloat16, **common))
    out_bf16 = jax.block_until_ready(fwd_bf16(x, w_mat, gamma2, beta2))
    err_bf16 = float(jnp.max(jnp.abs(out_bf16 - ref)))
    assert err_bf16 < 5e-2, err_bf16

    print("KERNEL_OK")
</pallas_src>

<mosaic_0001>
module attributes {stable_mosaic.version = 11 : i64} {
  func.func @_fused_base_conv_kernel(%arg0: i32, %arg1: i32, %arg2: memref<1x18x18x4xf32, #tpu.memory_space<vmem>>, %arg3: memref<36x8xf32, #tpu.memory_space<vmem>>, %arg4: memref<1x8xf32, #tpu.memory_space<vmem>>, %arg5: memref<1x8xf32, #tpu.memory_space<vmem>>, %arg6: memref<1x8x64xf32, #tpu.memory_space<vmem>>, %arg7: memref<1x8xf32, #tpu.memory_space<vmem>>, %arg8: memref<1x8xf32, #tpu.memory_space<vmem>>) attributes {dimension_semantics = [#tpu.dimension_semantics<arbitrary>, #tpu.dimension_semantics<arbitrary>], iteration_bounds = array<i64: 2, 2>, scalar_prefetch = 0 : i64, scratch_operands = 2 : i64, tpu.core_type = #tpu.core_type<tc>, window_params = [{transform_indices = @transform_0, window_bounds = array<i64: 1, 18, 18, 4>}, {pipeline_mode = #tpu.pipeline_mode<synchronous>, transform_indices = @transform_1, window_bounds = array<i64: 36, 8>}, {pipeline_mode = #tpu.pipeline_mode<synchronous>, transform_indices = @transform_2, window_bounds = array<i64: 1, 8>}, {pipeline_mode = #tpu.pipeline_mode<synchronous>, transform_indices = @transform_3, window_bounds = array<i64: 1, 8>}, {transform_indices = @transform_4, window_bounds = array<i64: 1, 8, 64>}]} {
    %c0 = arith.constant 0 : index
    %c0_0 = arith.constant 0 : index
    %c0_1 = arith.constant 0 : index
    %c0_2 = arith.constant 0 : index
    %0 = vector.load %arg2[%c0, %c0_0, %c0_1, %c0_2] : memref<1x18x18x4xf32, #tpu.memory_space<vmem>>, vector<1x16x16x4xf32>
    %1 = vector.shape_cast %0 : vector<1x16x16x4xf32> to vector<256x4xf32>
    %c0_3 = arith.constant 0 : index
    %c0_4 = arith.constant 0 : index
    %c1 = arith.constant 1 : index
    %c0_5 = arith.constant 0 : index
    %2 = vector.load %arg2[%c0_3, %c0_4, %c1, %c0_5] : memref<1x18x18x4xf32, #tpu.memory_space<vmem>>, vector<1x16x16x4xf32>
    %3 = vector.shape_cast %2 : vector<1x16x16x4xf32> to vector<256x4xf32>
    %c0_6 = arith.constant 0 : index
    %c0_7 = arith.constant 0 : index
    %c2 = arith.constant 2 : index
    %c0_8 = arith.constant 0 : index
    %4 = vector.load %arg2[%c0_6, %c0_7, %c2, %c0_8] : memref<1x18x18x4xf32, #tpu.memory_space<vmem>>, vector<1x16x16x4xf32>
    %5 = vector.shape_cast %4 : vector<1x16x16x4xf32> to vector<256x4xf32>
    %c0_9 = arith.constant 0 : index
    %c1_10 = arith.constant 1 : index
    %c0_11 = arith.constant 0 : index
    %c0_12 = arith.constant 0 : index
    %6 = vector.load %arg2[%c0_9, %c1_10, %c0_11, %c0_12] : memref<1x18x18x4xf32, #tpu.memory_space<vmem>>, vector<1x16x16x4xf32>
    %7 = vector.shape_cast %6 : vector<1x16x16x4xf32> to vector<256x4xf32>
    %c0_13 = arith.constant 0 : index
    %c1_14 = arith.constant 1 : index
    %c1_15 = arith.constant 1 : index
    %c0_16 = arith.constant 0 : index
    %8 = vector.load %arg2[%c0_13, %c1_14, %c1_15, %c0_16] : memref<1x18x18x4xf32, #tpu.memory_space<vmem>>, vector<1x16x16x4xf32>
    %9 = vector.shape_cast %8 : vector<1x16x16x4xf32> to vector<256x4xf32>
    %c0_17 = arith.constant 0 : index
    %c1_18 = arith.constant 1 : index
    %c2_19 = arith.constant 2 : index
    %c0_20 = arith.constant 0 : index
    %10 = vector.load %arg2[%c0_17, %c1_18, %c2_19, %c0_20] : memref<1x18x18x4xf32, #tpu.memory_space<vmem>>, vector<1x16x16x4xf32>
    %11 = vector.shape_cast %10 : vector<1x16x16x4xf32> to vector<256x4xf32>
    %c0_21 = arith.constant 0 : index
    %c2_22 = arith.constant 2 : index
    %c0_23 = arith.constant 0 : index
    %c0_24 = arith.constant 0 : index
    %12 = vector.load %arg2[%c0_21, %c2_22, %c0_23, %c0_24] : memref<1x18x18x4xf32, #tpu.memory_space<vmem>>, vector<1x16x16x4xf32>
    %13 = vector.shape_cast %12 : vector<1x16x16x4xf32> to vector<256x4xf32>
    %c0_25 = arith.constant 0 : index
    %c2_26 = arith.constant 2 : index
    %c1_27 = arith.constant 1 : index
    %c0_28 = arith.constant 0 : index
    %14 = vector.load %arg2[%c0_25, %c2_26, %c1_27, %c0_28] : memref<1x18x18x4xf32, #tpu.memory_space<vmem>>, vector<1x16x16x4xf32>
    %15 = vector.shape_cast %14 : vector<1x16x16x4xf32> to vector<256x4xf32>
    %c0_29 = arith.constant 0 : index
    %c2_30 = arith.constant 2 : index
    %c2_31 = arith.constant 2 : index
    %c0_32 = arith.constant 0 : index
    %16 = vector.load %arg2[%c0_29, %c2_30, %c2_31, %c0_32] : memref<1x18x18x4xf32, #tpu.memory_space<vmem>>, vector<1x16x16x4xf32>
    %17 = vector.shape_cast %16 : vector<1x16x16x4xf32> to vector<256x4xf32>
    %18 = tpu.concatenate %1, %3, %5, %7, %9, %11, %13, %15, %17 in 1 : vector<256x4xf32>, vector<256x4xf32>, vector<256x4xf32>, vector<256x4xf32>, vector<256x4xf32>, vector<256x4xf32>, vector<256x4xf32>, vector<256x4xf32>, vector<256x4xf32> -> vector<256x36xf32>
    %c0_33 = arith.constant 0 : index
    %c0_34 = arith.constant 0 : index
    %19 = vector.load %arg3[%c0_33, %c0_34] : memref<36x8xf32, #tpu.memory_space<vmem>>, vector<36x8xf32>
    %cst = arith.constant dense<0.000000e+00> : vector<256x8xf32>
    %20 = tpu.matmul %18, %19, %cst {dimension_numbers = #tpu.dot_dimension_numbers<[1], [0], [0], [1], [0, 0, 1, 1], [], []>} : vector<256x36xf32>, vector<36x8xf32>, vector<256x8xf32> -> vector<256x8xf32>
    %cst_35 = arith.constant 0.000000e+00 : f32
    %21 = vector.broadcast %cst_35 : f32 to vector<256x8xf32>
    %22 = arith.maximumf %20, %21 : vector<256x8xf32>
    %c0_i32 = arith.constant 0 : i32
    %23 = arith.cmpi eq, %arg0, %c0_i32 : i32
    %c0_i32_36 = arith.constant 0 : i32
    %24 = arith.cmpi eq, %arg1, %c0_i32_36 : i32
    %25 = arith.andi %23, %24 : i1
    %26 = arith.extui %25 : i1 to i32
    %c0_i32_37 = arith.constant 0 : i32
    %27 = arith.cmpi ne, %26, %c0_i32_37 : i32
    scf.if %27 {
      %cst_41 = arith.constant 0.000000e+00 : f32
      %34 = vector.broadcast %cst_41 : f32 to vector<1x8xf32>
      %c0_42 = arith.constant 0 : index
      %c0_43 = arith.constant 0 : index
      %35 = vector.load %arg7[%c0_42, %c0_43] : memref<1x8xf32, #tpu.memory_space<vmem>>, vector<1x8xf32>
      tpu.vector_store %arg7[%c0_42, %c0_43], %34 {strides = array<i32>} : memref<1x8xf32, #tpu.memory_space<vmem>>, vector<1x8xf32>,
      %cst_44 = arith.constant 0.000000e+00 : f32
      %36 = vector.broadcast %cst_44 : f32 to vector<1x8xf32>
      %c0_45 = arith.constant 0 : index
      %c0_46 = arith.constant 0 : index
      %37 = vector.load %arg8[%c0_45, %c0_46] : memref<1x8xf32, #tpu.memory_space<vmem>>, vector<1x8xf32>
      tpu.vector_store %arg8[%c0_45, %c0_46], %36 {strides = array<i32>} : memref<1x8xf32, #tpu.memory_space<vmem>>, vector<1x8xf32>,
    } else {
    }
    %c0_i32_38 = arith.constant 0 : i32
    %28 = arith.cmpi eq, %arg0, %c0_i32_38 : i32
    %29 = arith.extui %28 : i1 to i32
    %c0_i32_39 = arith.constant 0 : i32
    %30 = arith.cmpi ne, %29, %c0_i32_39 : i32
    scf.if %30 {
      %cst_41 = arith.constant 1.000000e+00 : f32
      %34 = vector.broadcast %cst_41 : f32 to vector<1x256xf32>
      %c0_42 = arith.constant 0 : index
      %c0_43 = arith.constant 0 : index
      %35 = vector.load %arg7[%c0_42, %c0_43] : memref<1x8xf32, #tpu.memory_space<vmem>>, vector<1x8xf32>
      %cst_44 = arith.constant dense<0.000000e+00> : vector<1x8xf32>
      %36 = tpu.matmul %34, %22, %cst_44 {dimension_numbers = #tpu.dot_dimension_numbers<[1], [0], [0], [1], [0, 0, 1, 1], [], []>} : vector<1x256xf32>, vector<256x8xf32>, vector<1x8xf32> -> vector<1x8xf32>
      %37 = arith.addf %35, %36 : vector<1x8xf32>
      %c0_45 = arith.constant 0 : index
      %c0_46 = arith.constant 0 : index
      %38 = vector.load %arg7[%c0_45, %c0_46] : memref<1x8xf32, #tpu.memory_space<vmem>>, vector<1x8xf32>
      tpu.vector_store %arg7[%c0_45, %c0_46], %37 {strides = array<i32>} : memref<1x8xf32, #tpu.memory_space<vmem>>, vector<1x8xf32>,
      %c0_47 = arith.constant 0 : index
      %c0_48 = arith.constant 0 : index
      %39 = vector.load %arg8[%c0_47, %c0_48] : memref<1x8xf32, #tpu.memory_space<vmem>>, vector<1x8xf32>
      %40 = arith.mulf %22, %22 : vector<256x8xf32>
      %cst_49 = arith.constant dense<0.000000e+00> : vector<1x8xf32>
      %41 = tpu.matmul %34, %40, %cst_49 {dimension_numbers = #tpu.dot_dimension_numbers<[1], [0], [0], [1], [0, 0, 1, 1], [], []>} : vector<1x256xf32>, vector<256x8xf32>, vector<1x8xf32> -> vector<1x8xf32>
      %42 = arith.addf %39, %41 : vector<1x8xf32>
      %c0_50 = arith.constant 0 : index
      %c0_51 = arith.constant 0 : index
      %43 = vector.load %arg8[%c0_50, %c0_51] : memref<1x8xf32, #tpu.memory_space<vmem>>, vector<1x8xf32>
      tpu.vector_store %arg8[%c0_50, %c0_51], %42 {strides = array<i32>} : memref<1x8xf32, #tpu.memory_space<vmem>>, vector<1x8xf32>,
    } else {
    }
    %c1_i32 = arith.constant 1 : i32
    %31 = arith.cmpi eq, %arg0, %c1_i32 : i32
    %32 = arith.extui %31 : i1 to i32
    %c0_i32_40 = arith.constant 0 : i32
    %33 = arith.cmpi ne, %32, %c0_i32_40 : i32
    scf.if %33 {
      %c0_41 = arith.constant 0 : index
      %c0_42 = arith.constant 0 : index
      %34 = vector.load %arg7[%c0_41, %c0_42] : memref<1x8xf32, #tpu.memory_space<vmem>>, vector<1x8xf32>
      %cst_43 = arith.constant 0.001953125 : f32
      %35 = vector.broadcast %cst_43 : f32 to vector<1x8xf32>
      %36 = arith.mulf %34, %35 : vector<1x8xf32>
      %c0_44 = arith.constant 0 : index
      %c0_45 = arith.constant 0 : index
      %37 = vector.load %arg8[%c0_44, %c0_45] : memref<1x8xf32, #tpu.memory_space<vmem>>, vector<1x8xf32>
      %cst_46 = arith.constant 0.001953125 : f32
      %38 = vector.broadcast %cst_46 : f32 to vector<1x8xf32>
      %39 = arith.mulf %37, %38 : vector<1x8xf32>
      %40 = arith.mulf %36, %36 : vector<1x8xf32>
      %41 = arith.subf %39, %40 : vector<1x8xf32>
      %c0_47 = arith.constant 0 : index
      %c0_48 = arith.constant 0 : index
      %42 = vector.load %arg4[%c0_47, %c0_48] : memref<1x8xf32, #tpu.memory_space<vmem>>, vector<1x8xf32>
      %cst_49 = arith.constant 9.99999974E-6 : f32
      %43 = vector.broadcast %cst_49 : f32 to vector<1x8xf32>
      %44 = arith.addf %41, %43 : vector<1x8xf32>
      %45 = math.rsqrt %44 : vector<1x8xf32>
      %46 = arith.mulf %42, %45 : vector<1x8xf32>
      %c0_50 = arith.constant 0 : index
      %c0_51 = arith.constant 0 : index
      %47 = vector.load %arg5[%c0_50, %c0_51] : memref<1x8xf32, #tpu.memory_space<vmem>>, vector<1x8xf32>
      %48 = arith.mulf %36, %46 : vector<1x8xf32>
      %49 = arith.subf %47, %48 : vector<1x8xf32>
      %50 = vector.broadcast %46 : vector<1x8xf32> to vector<256x8xf32>
      %51 = arith.mulf %22, %50 : vector<256x8xf32>
      %52 = vector.broadcast %49 : vector<1x8xf32> to vector<256x8xf32>
      %53 = arith.addf %51, %52 : vector<256x8xf32>
      %54 = vector.shape_cast %53 : vector<256x8xf32> to vector<1x16x16x8xf32>
      %55 = vector.shape_cast %54 : vector<1x16x16x8xf32> to vector<1x8x2x8x2x8xf32>
      %56 = vector.extract_strided_slice %55 {offsets = [0, 0, 0, 0, 0, 0], sizes = [1, 8, 1, 8, 1, 8], strides = [1, 1, 1, 1, 1, 1]} : vector<1x8x2x8x2x8xf32> to vector<1x8x1x8x1x8xf32>
      %57 = vector.shape_cast %56 : vector<1x8x1x8x1x8xf32> to vector<1x8x8x8xf32>
      %58 = vector.extract_strided_slice %55 {offsets = [0, 0, 0, 0, 1, 0], sizes = [1, 8, 1, 8, 1, 8], strides = [1, 1, 1, 1, 1, 1]} : vector<1x8x2x8x2x8xf32> to vector<1x8x1x8x1x8xf32>
      %59 = vector.shape_cast %58 : vector<1x8x1x8x1x8xf32> to vector<1x8x8x8xf32>
      %60 = arith.maximumf %57, %59 : vector<1x8x8x8xf32>
      %61 = vector.extract_strided_slice %55 {offsets = [0, 0, 1, 0, 0, 0], sizes = [1, 8, 1, 8, 1, 8], strides = [1, 1, 1, 1, 1, 1]} : vector<1x8x2x8x2x8xf32> to vector<1x8x1x8x1x8xf32>
      %62 = vector.shape_cast %61 : vector<1x8x1x8x1x8xf32> to vector<1x8x8x8xf32>
      %63 = arith.maximumf %60, %62 : vector<1x8x8x8xf32>
      %64 = vector.extract_strided_slice %55 {offsets = [0, 0, 1, 0, 1, 0], sizes = [1, 8, 1, 8, 1, 8], strides = [1, 1, 1, 1, 1, 1]} : vector<1x8x2x8x2x8xf32> to vector<1x8x1x8x1x8xf32>
      %65 = vector.shape_cast %64 : vector<1x8x1x8x1x8xf32> to vector<1x8x8x8xf32>
      %66 = arith.maximumf %63, %65 : vector<1x8x8x8xf32>
      %67 = vector.shape_cast %66 : vector<1x8x8x8xf32> to vector<1x8x64xf32>
      %c0_52 = arith.constant 0 : index
      %c0_53 = arith.constant 0 : index
      %c0_54 = arith.constant 0 : index
      %68 = vector.load %arg6[%c0_52, %c0_53, %c0_54] : memref<1x8x64xf32, #tpu.memory_space<vmem>>, vector<1x8x64xf32>
      tpu.vector_store %arg6[%c0_52, %c0_53, %c0_54], %67 {strides = array<i32>} : memref<1x8x64xf32, #tpu.memory_space<vmem>>, vector<1x8x64xf32>,
    } else {
    }
    return
  }
  func.func @transform_0(%arg0: i32, %arg1: i32) -> (i32, i32, i32, i32) {
    %c0_i32 = arith.constant 0 : i32
    %c0_i32_0 = arith.constant 0 : i32
    %c0_i32_1 = arith.constant 0 : i32
    %c0_i32_2 = arith.constant 0 : i32
    return %arg1, %c0_i32, %c0_i32_0, %c0_i32_1 : i32, i32, i32, i32
  }
  func.func @transform_1(%arg0: i32, %arg1: i32) -> (i32, i32) {
    %c0_i32 = arith.constant 0 : i32
    %c0_i32_0 = arith.constant 0 : i32
    %c0_i32_1 = arith.constant 0 : i32
    return %c0_i32, %c0_i32_0 : i32, i32
  }
  func.func @transform_2(%arg0: i32, %arg1: i32) -> (i32, i32) {
    %c0_i32 = arith.constant 0 : i32
    %c0_i32_0 = arith.constant 0 : i32
    %c0_i32_1 = arith.constant 0 : i32
    return %c0_i32, %c0_i32_0 : i32, i32
  }
  func.func @transform_3(%arg0: i32, %arg1: i32) -> (i32, i32) {
    %c0_i32 = arith.constant 0 : i32
    %c0_i32_0 = arith.constant 0 : i32
    %c0_i32_1 = arith.constant 0 : i32
    return %c0_i32, %c0_i32_0 : i32, i32
  }
  func.func @transform_4(%arg0: i32, %arg1: i32) -> (i32, i32, i32) {
    %c0_i32 = arith.constant 0 : i32
    %c0_i32_0 = arith.constant 0 : i32
    %c0_i32_1 = arith.constant 0 : i32
    return %arg1, %c0_i32, %c0_i32_0 : i32, i32, i32
  }
}

</mosaic_0001>

<llo_original>
// kernel: base_conv_forward.1
$region0: #{base_conv_forward.1}
  #allocation0 [shape = 'u32[]', space=smem, size = 0x4, offset = 0x4, fixed_abs, tag = 'smem constant byte address 0x4 - core index']
  #allocation1 [shape = 'u32[144,128]{1,0:T(1,128)}', space=vmem, size = 0x12000, scoped, tag = 'internal scratch']
  #allocation2 [shape = 'f32[1,8]{1,0:T(1,128)}', space=vmem, size = 0x200, scoped, tag = 'scratch operand']
  #allocation3 [shape = 'f32[1,8]{1,0:T(1,128)}', space=vmem, size = 0x200, scoped, tag = 'scratch operand']
  %s0 = inlined_call_operand.vmem [shape: f32[2,18,18,4], index: 0, kind: input, shape index: {}]
  %s1 = inlined_call_operand.vmem [shape: f32[36,8], index: 1, kind: input, shape index: {}]
  %s2 = inlined_call_operand.vmem [shape: f32[1,8], index: 2, kind: input, shape index: {}]
  %s3 = inlined_call_operand.vmem [shape: f32[1,8], index: 3, kind: input, shape index: {}]
  %s4 = inlined_call_operand.vmem [shape: f32[2,8,64], index: 4, kind: output, shape index: {}]
  %s5 = sld [smem:[#allocation0]]
  $region61: #{base_conv_forward.1} parent=0
    _
  %s7 = ssub.s32 1, %s5
  %s8 = scalar_select 0, %s7, %s5
  loop: start=0, step=1, limit=6
  $region2: #{base_conv_forward.1} parent=0 // loop_pre_header
    _
  $region3: #{base_conv_forward.1} parent=0 // loop_header
    %s10 = sphi 0, %s14
    %p11 = scmp.ge.s32.totalorder %s10, 6
    %s17 = sphi 0, %s29
    %s18 = sphi 0, %s25
    %s19 = sphi 0, %s17
    %s20 = sphi 0, %s18
    %s21 = sphi 0, %s19
    %s22 = sphi 0, %s20
    %s32 = sphi 0, %s34
    %s35 = sphi 0, %s32
    %s36 = sphi 0, %s35
    %s52 = sphi 0, %s36
    %s56 = sphi 0, %s56
    %s58 = sphi 0, %s56
    %s59 = sphi 0, %s58
    %s73 = sphi 0, %s59
    %s77 = sphi 0, %s77
    %s79 = sphi 0, %s77
    %s80 = sphi 0, %s79
    %s94 = sphi 0, %s80
    %s98 = sphi 0, %s98
    %s100 = sphi 0, %s98
    %s101 = sphi 0, %s100
    %s115 = sphi 0, %s101
    %s121 = sphi 0, %s123
    %s124 = sphi 0, %s121
    %s125 = sphi 0, %s124
    %s141 = sphi 0, %s125
  $region4: #{base_conv_forward.1} parent=0 // loop_header_branch
    %13 = sbr.rel (%p11) target = $region8
  $region5: #{base_conv_forward.1} parent=0 // loop_body
    %s15 = ssub.s32 %s10, 1
    %s16 = ssub.s32 %s10, 2
    %s23 = sadd.s32 1, %s18
    %p24 = scmp.ge.s32.totalorder %s23, 2
    %s25 = scalar_select %p24, 0, %s23
    %s26 = sadd.s32 1, %s17
    %s27 = scalar_select %p24, %s26, %s17
    %p28 = scmp.ge.s32.totalorder %s27, 2
    %s29 = scalar_select %p28, 0, %s27
    %s30 = ssub.s32 %s18, %s25
    %p31 = scmp.eq.s32.totalorder %s30, 0
    %s33 = sadd.s32 %s32, 1
    %s34 = scalar_select %p31, %s32, %s33
    %p37 = pneg %p31
    %p38 = scmp.eq.s32.totalorder %s10, 3
    %p39 = por %p37, %p38
    %p40 = scmp.ne.s32.totalorder %s32, %s35
    %p41 = scmp.eq.s32.totalorder %s10, 0
    %p42 = por %p40, %p41
    %p43 = scmp.ne.s32.totalorder %s32, %s35
    %p44 = scmp.eq.s32.totalorder %s15, 3
    %p45 = por %p43, %p44
    %p46 = scmp.ne.s32.totalorder %s35, %s36
    %p47 = scmp.eq.s32.totalorder %s15, 0
    %p48 = por %p46, %p47
    %p49 = scmp.ne.s32.totalorder %s35, %s36
    %p50 = scmp.eq.s32.totalorder %s16, 3
    %p51 = por %p49, %p50
    %p53 = scmp.ne.s32.totalorder %s36, %s52
    %p54 = scmp.eq.s32.totalorder %s16, 0
    %p55 = por %p53, %p54
    %s57 = sadd.s32 %s56, 1
    %p60 = scmp.eq.s32.totalorder %s10, 3
    %p61 = scmp.ne.s32.totalorder %s56, %s58
    %p62 = scmp.eq.s32.totalorder %s10, 0
    %p63 = por %p61, %p62
    %p64 = scmp.ne.s32.totalorder %s56, %s58
    %p65 = scmp.eq.s32.totalorder %s15, 3
    %p66 = por %p64, %p65
    %p67 = scmp.ne.s32.totalorder %s58, %s59
    %p68 = scmp.eq.s32.totalorder %s15, 0
    %p69 = por %p67, %p68
    %p70 = scmp.ne.s32.totalorder %s58, %s59
    %p71 = scmp.eq.s32.totalorder %s16, 3
    %p72 = por %p70, %p71
    %p74 = scmp.ne.s32.totalorder %s59, %s73
    %p75 = scmp.eq.s32.totalorder %s16, 0
    %p76 = por %p74, %p75
    %s78 = sadd.s32 %s77, 1
    %p81 = scmp.eq.s32.totalorder %s10, 3
    %p82 = scmp.ne.s32.totalorder %s77, %s79
    %p83 = scmp.eq.s32.totalorder %s10, 0
    %p84 = por %p82, %p83
    %p85 = scmp.ne.s32.totalorder %s77, %s79
    %p86 = scmp.eq.s32.totalorder %s15, 3
    %p87 = por %p85, %p86
    %p88 = scmp.ne.s32.totalorder %s79, %s80
    %p89 = scmp.eq.s32.totalorder %s15, 0
    %p90 = por %p88, %p89
    %p91 = scmp.ne.s32.totalorder %s79, %s80
    %p92 = scmp.eq.s32.totalorder %s16, 3
    %p93 = por %p91, %p92
    %p95 = scmp.ne.s32.totalorder %s80, %s94
    %p96 = scmp.eq.s32.totalorder %s16, 0
    %p97 = por %p95, %p96
    %s99 = sadd.s32 %s98, 1
    %p102 = scmp.eq.s32.totalorder %s10, 3
    %p103 = scmp.ne.s32.totalorder %s98, %s100
    %p104 = scmp.eq.s32.totalorder %s10, 0
    %p105 = por %p103, %p104
    %p106 = scmp.ne.s32.totalorder %s98, %s100
    %p107 = scmp.eq.s32.totalorder %s15, 3
    %p108 = por %p106, %p107
    %p109 = scmp.ne.s32.totalorder %s100, %s101
    %p110 = scmp.eq.s32.totalorder %s15, 0
    %p111 = por %p109, %p110
    %p112 = scmp.ne.s32.totalorder %s100, %s101
    %p113 = scmp.eq.s32.totalorder %s16, 3
    %p114 = por %p112, %p113
    %p116 = scmp.ne.s32.totalorder %s101, %s115
    %p117 = scmp.eq.s32.totalorder %s16, 0
    %p118 = por %p116, %p117
    %s119 = ssub.s32 %s18, %s25
    %p120 = scmp.eq.s32.totalorder %s119, 0
    %s122 = sadd.s32 %s121, 1
    %s123 = scalar_select %p120, %s121, %s122
    %p126 = pneg %p120
    %p127 = scmp.eq.s32.totalorder %s10, 3
    %p128 = por %p126, %p127
    %p129 = scmp.ne.s32.totalorder %s121, %s124
    %p130 = scmp.eq.s32.totalorder %s10, 0
    %p131 = por %p129, %p130
    %p132 = scmp.ne.s32.totalorder %s121, %s124
    %p133 = scmp.eq.s32.totalorder %s15, 3
    %p134 = por %p132, %p133
    %p135 = scmp.ne.s32.totalorder %s124, %s125
    %p136 = scmp.eq.s32.totalorder %s15, 0
    %p137 = por %p135, %p136
    %p138 = scmp.ne.s32.totalorder %s124, %s125
    %p139 = scmp.eq.s32.totalorder %s16, 3
    %p140 = por %p138, %p139
    %p142 = scmp.ne.s32.totalorder %s125, %s141
    %p143 = scmp.eq.s32.totalorder %s16, 0
    %p144 = por %p142, %p143
    %p145 = scmp.le.s32.totalorder 1, %s10
    %p146 = scmp.lt.s32.totalorder %s10, 5
    %p147 = pnand %p145, %p146
    %p148 = pneg %p147
    // Predicated region
    $region9: #{base_conv_forward.1} parent=5 // pred_check
      _
    $region10: #{base_conv_forward.1} parent=5 // pred_check_branch
      %150 = sbr.rel (%p147) target = $region12
    $region11: #{base_conv_forward.1} parent=5 // pred_region
      %s151 = ssub.s32 %s10, 1
      // Predicated region
      $region13: #{base_conv_forward.1} parent=11 // pred_check
        %p152 = pneg %p69
      $region14: #{base_conv_forward.1} parent=11 // pred_check_branch
        %154 = sbr.rel (%p152) target = $region16
      $region15: #{base_conv_forward.1} parent=11 // pred_region
        _
      $region16: #{base_conv_forward.1} parent=11 // pred_fallthru
        _
      // Predicated region
      $region17: #{base_conv_forward.1} parent=11 // pred_check
        %p155 = pneg %p90
      $region18: #{base_conv_forward.1} parent=11 // pred_check_branch
        %157 = sbr.rel (%p155) target = $region20
      $region19: #{base_conv_forward.1} parent=11 // pred_region
        _
      $region20: #{base_conv_forward.1} parent=11 // pred_fallthru
        _
      // Predicated region
      $region21: #{base_conv_forward.1} parent=11 // pred_check
        %p158 = pneg %p111
      $region22: #{base_conv_forward.1} parent=11 // pred_check_branch
        %160 = sbr.rel (%p158) target = $region24
      $region23: #{base_conv_forward.1} parent=11 // pred_region
        _
      $region24: #{base_conv_forward.1} parent=11 // pred_fallthru
        _
    $region12: #{base_conv_forward.1} parent=5 // pred_fallthru
      _
    %p161 = scmp.lt.s32.totalorder %s10, 4
    // Predicated region
    $region25: #{base_conv_forward.1} parent=5 // pred_check
      %p162 = pneg %p161
    $region26: #{base_conv_forward.1} parent=5 // pred_check_branch
      %164 = sbr.rel (%p162) target = $region28
    $region27: #{base_conv_forward.1} parent=5 // pred_region
      // Predicated region
      $region29: #{base_conv_forward.1} parent=27 // pred_check
        %p165 = pneg %p42
      $region30: #{base_conv_forward.1} parent=27 // pred_check_branch
        %167 = sbr.rel (%p165) target = $region32
      $region31: #{base_conv_forward.1} parent=27 // pred_region
        %p168 = scmp.lt.s32.totalorder %s18, 1
        %s169 = scalar_select %p168, %s18, 1
        %s170 = smul.addr %s169, 54
        %s171 = smul.addr %s170, 8
        %s172 = scalar_lea.vmem %s0, %s171
      $region32: #{base_conv_forward.1} parent=27 // pred_fallthru
        _
    $region28: #{base_conv_forward.1} parent=5 // pred_fallthru
      _
    %p173 = scmp.le.s32.totalorder 1, %s10
    %p174 = scmp.lt.s32.totalorder %s10, 5
    %p175 = pnand %p173, %p174
    %p176 = pneg %p175
    // Predicated region
    $region33: #{base_conv_forward.1} parent=5 // pred_check
      _
    $region34: #{base_conv_forward.1} parent=5 // pred_check_branch
      %178 = sbr.rel (%p175) target = $region36
    $region35: #{base_conv_forward.1} parent=5 // pred_region
      %s179 = ssub.s32 %s10, 1
      %p180 = scmp.lt.s32.totalorder %s20, 1
      %s181 = scalar_select %p180, %s20, 1
      %s182 = smul.addr %s181, 54
      %s183 = smul.addr %s182, 8
      %s184 = scalar_lea.vmem %s0, %s183
      %p185 = pneg %p48
      %p186 = pneg %p45
      %p187 = pneg %p69
      %p188 = pneg %p66
      %p189 = pneg %p90
      %p190 = pneg %p87
      %p191 = pneg %p111
      %p192 = pneg %p108
      %p193 = pneg %p137
      %p194 = pneg %p134
      %p195 = scmp.lt.s32.totalorder %s20, 1
      %s196 = scalar_select %p195, %s20, 1
      %s197 = smul.addr %s196, 8
      %s198 = scalar_lea.vmem %s4, %s197
      %p199 = scmp.lt.s32.totalorder %s20, 1
      %s200 = scalar_select %p199, %s20, 1
      %s201 = smul.addr %s200, 54
      %s202 = smul.addr %s201, 8
      %s203 = scalar_lea.vmem %s0, %s202
      %p204 = scmp.lt.s32.totalorder %s20, 1
      %s205 = scalar_select %p204, %s20, 1
      %s206 = smul.addr %s205, 8
      %s207 = scalar_lea.vmem %s4, %s206
      %v208 = vld [vmem:[%s203] sm:$0xff]
      %v209 = vld [vmem:[%s203 + $0x8] sm:$0xff]
      %v210 = vld [vmem:[%s203 + $0x18] sm:$0xff]
      %v211 = vld [vmem:[%s203 + $0x20] sm:$0xff]
      %v212 = vld [vmem:[%s203 + $0x30] sm:$0xff]
      %v213 = vld [vmem:[%s203 + $0x38] sm:$0xff]
      %v214 = vld [vmem:[%s203 + $0x48] sm:$0xff]
      %v215 = vld [vmem:[%s203 + $0x50] sm:$0xff]
      %v216 = vld [vmem:[%s203 + $0x60] sm:$0xff]
      %v217 = vld [vmem:[%s203 + $0x68] sm:$0xff]
      %v218 = vld [vmem:[%s203 + $0x78] sm:$0xff]
      %v219 = vld [vmem:[%s203 + $0x80] sm:$0xff]
      %v220 = vld [vmem:[%s203 + $0x90] sm:$0xff]
      %v221 = vld [vmem:[%s203 + $0x98] sm:$0xff]
      %v222 = vld [vmem:[%s203 + $0xa8] sm:$0xff]
      %v223 = vld [vmem:[%s203 + $0xb0] sm:$0xff]
      %v224 = vld [vmem:[%s203 + $0xc0] sm:$0xff]
      %v225 = vld [vmem:[%s203 + $0xc8] sm:$0xff]
      %v226 = vld [vmem:[%s203 + $0xd8] sm:$0xff]
      %v227 = vld [vmem:[%s203 + $0xe0] sm:$0xff]
      %v228 = vld [vmem:[%s203 + $0xf0] sm:$0xff]
      %v229 = vld [vmem:[%s203 + $0xf8] sm:$0xff]
      %v230 = vld [vmem:[%s203 + $0x108] sm:$0xff]
      %v231 = vld [vmem:[%s203 + $0x110] sm:$0xff]
      %v232 = vld [vmem:[%s203 + $0x120] sm:$0xff]
      %v233 = vld [vmem:[%s203 + $0x128] sm:$0xff]
      %v234 = vld [vmem:[%s203 + $0x138] sm:$0xff]
      %v235 = vld [vmem:[%s203 + $0x140] sm:$0xff]
      %v236 = vld [vmem:[%s203 + $0x150] sm:$0xff]
      %v237 = vld [vmem:[%s203 + $0x158] sm:$0xff]
      %v238 = vld [vmem:[%s203 + $0x168] sm:$0xff]
      %v239 = vld [vmem:[%s203 + $0x170] sm:$0xff]
      %v240 = vld [vmem:[%s203 + $0x1] sm:$0xff]
      %v241 = vld [vmem:[%s203 + $0x9] sm:$0xff]
      %v242 = vld [vmem:[%s203 + $0x19] sm:$0xff]
      %v243 = vld [vmem:[%s203 + $0x21] sm:$0xff]
      %v244 = vld [vmem:[%s203 + $0x31] sm:$0xff]
      %v245 = vld [vmem:[%s203 + $0x39] sm:$0xff]
      %v246 = vld [vmem:[%s203 + $0x49] sm:$0xff]
      %v247 = vld [vmem:[%s203 + $0x51] sm:$0xff]
      %v248 = vld [vmem:[%s203 + $0x61] sm:$0xff]
      %v249 = vld [vmem:[%s203 + $0x69] sm:$0xff]
      %v250 = vld [vmem:[%s203 + $0x79] sm:$0xff]
      %v251 = vld [vmem:[%s203 + $0x81] sm:$0xff]
      %v252 = vld [vmem:[%s203 + $0x91] sm:$0xff]
      %v253 = vld [vmem:[%s203 + $0x99] sm:$0xff]
      %v254 = vld [vmem:[%s203 + $0xa9] sm:$0xff]
      %v255 = vld [vmem:[%s203 + $0xb1] sm:$0xff]
      %v256 = vld [vmem:[%s203 + $0xc1] sm:$0xff]
      %v257 = vld [vmem:[%s203 + $0xc9] sm:$0xff]
      %v258 = vld [vmem:[%s203 + $0xd9] sm:$0xff]
      %v259 = vld [vmem:[%s203 + $0xe1] sm:$0xff]
      %v260 = vld [vmem:[%s203 + $0xf1] sm:$0xff]
      %v261 = vld [vmem:[%s203 + $0xf9] sm:$0xff]
      %v262 = vld [vmem:[%s203 + $0x109] sm:$0xff]
      %v263 = vld [vmem:[%s203 + $0x111] sm:$0xff]
      %v264 = vld [vmem:[%s203 + $0x121] sm:$0xff]
      %v265 = vld [vmem:[%s203 + $0x129] sm:$0xff]
      %v266 = vld [vmem:[%s203 + $0x139] sm:$0xff]
      %v267 = vld [vmem:[%s203 + $0x141] sm:$0xff]
      %v268 = vld [vmem:[%s203 + $0x151] sm:$0xff]
      %v269 = vld [vmem:[%s203 + $0x159] sm:$0xff]
      %v270 = vld [vmem:[%s203 + $0x169] sm:$0xff]
      %v271 = vld [vmem:[%s203 + $0x171] sm:$0xff]
      %v272 = vld [vmem:[%s203 + $0x2] sm:$0xff]
      %v273 = vld [vmem:[%s203 + $0xa] sm:$0xff]
      %v274 = vld [vmem:[%s203 + $0x1a] sm:$0xff]
      %v275 = vld [vmem:[%s203 + $0x22] sm:$0xff]
      %v276 = vld [vmem:[%s203 + $0x32] sm:$0xff]
      %v277 = vld [vmem:[%s203 + $0x3a] sm:$0xff]
      %v278 = vld [vmem:[%s203 + $0x4a] sm:$0xff]
      %v279 = vld [vmem:[%s203 + $0x52] sm:$0xff]
      %v280 = vld [vmem:[%s203 + $0x62] sm:$0xff]
      %v281 = vld [vmem:[%s203 + $0x6a] sm:$0xff]
      %v282 = vld [vmem:[%s203 + $0x7a] sm:$0xff]
      %v283 = vld [vmem:[%s203 + $0x82] sm:$0xff]
      %v284 = vld [vmem:[%s203 + $0x92] sm:$0xff]
      %v285 = vld [vmem:[%s203 + $0x9a] sm:$0xff]
      %v286 = vld [vmem:[%s203 + $0xaa] sm:$0xff]
      %v287 = vld [vmem:[%s203 + $0xb2] sm:$0xff]
      %v288 = vld [vmem:[%s203 + $0xc2] sm:$0xff]
      %v289 = vld [vmem:[%s203 + $0xca] sm:$0xff]
      %v290 = vld [vmem:[%s203 + $0xda] sm:$0xff]
      %v291 = vld [vmem:[%s203 + $0xe2] sm:$0xff]
      %v292 = vld [vmem:[%s203 + $0xf2] sm:$0xff]
      %v293 = vld [vmem:[%s203 + $0xfa] sm:$0xff]
      %v294 = vld [vmem:[%s203 + $0x10a] sm:$0xff]
      %v295 = vld [vmem:[%s203 + $0x112] sm:$0xff]
      %v296 = vld [vmem:[%s203 + $0x122] sm:$0xff]
      %v297 = vld [vmem:[%s203 + $0x12a] sm:$0xff]
      %v298 = vld [vmem:[%s203 + $0x13a] sm:$0xff]
      %v299 = vld [vmem:[%s203 + $0x142] sm:$0xff]
      %v300 = vld [vmem:[%s203 + $0x152] sm:$0xff]
      %v301 = vld [vmem:[%s203 + $0x15a] sm:$0xff]
      %v302 = vld [vmem:[%s203 + $0x16a] sm:$0xff]
      %v303 = vld [vmem:[%s203 + $0x172] sm:$0xff]
      %s304 = scalar_lea.vmem %s203, 24
      %v305 = vld [vmem:[%s304] sm:$0xff]
      %v306 = vld [vmem:[%s304 + $0x8] sm:$0xff]
      %v307 = vld [vmem:[%s304 + $0x18] sm:$0xff]
      %v308 = vld [vmem:[%s304 + $0x20] sm:$0xff]
      %v309 = vld [vmem:[%s304 + $0x30] sm:$0xff]
      %v310 = vld [vmem:[%s304 + $0x38] sm:$0xff]
      %v311 = vld [vmem:[%s304 + $0x48] sm:$0xff]
      %v312 = vld [vmem:[%s304 + $0x50] sm:$0xff]
      %v313 = vld [vmem:[%s304 + $0x60] sm:$0xff]
      %v314 = vld [vmem:[%s304 + $0x68] sm:$0xff]
      %v315 = vld [vmem:[%s304 + $0x78] sm:$0xff]
      %v316 = vld [vmem:[%s304 + $0x80] sm:$0xff]
      %v317 = vld [vmem:[%s304 + $0x90] sm:$0xff]
      %v318 = vld [vmem:[%s304 + $0x98] sm:$0xff]
      %v319 = vld [vmem:[%s304 + $0xa8] sm:$0xff]
      %v320 = vld [vmem:[%s304 + $0xb0] sm:$0xff]
      %v321 = vld [vmem:[%s304 + $0xc0] sm:$0xff]
      %v322 = vld [vmem:[%s304 + $0xc8] sm:$0xff]
      %v323 = vld [vmem:[%s304 + $0xd8] sm:$0xff]
      %v324 = vld [vmem:[%s304 + $0xe0] sm:$0xff]
      %v325 = vld [vmem:[%s304 + $0xf0] sm:$0xff]
      %v326 = vld [vmem:[%s304 + $0xf8] sm:$0xff]
      %v327 = vld [vmem:[%s304 + $0x108] sm:$0xff]
      %v328 = vld [vmem:[%s304 + $0x110] sm:$0xff]
      %v329 = vld [vmem:[%s304 + $0x120] sm:$0xff]
      %v330 = vld [vmem:[%s304 + $0x128] sm:$0xff]
      %v331 = vld [vmem:[%s304 + $0x138] sm:$0xff]
      %v332 = vld [vmem:[%s304 + $0x140] sm:$0xff]
      %v333 = vld [vmem:[%s304 + $0x150] sm:$0xff]
      %v334 = vld [vmem:[%s304 + $0x158] sm:$0xff]
      %v335 = vld [vmem:[%s304 + $0x168] sm:$0xff]
      %v336 = vld [vmem:[%s304 + $0x170] sm:$0xff]
      %v337 = vld [vmem:[%s304 + $0x1] sm:$0xff]
      %v338 = vld [vmem:[%s304 + $0x9] sm:$0xff]
      %v339 = vld [vmem:[%s304 + $0x19] sm:$0xff]
      %v340 = vld [vmem:[%s304 + $0x21] sm:$0xff]
      %v341 = vld [vmem:[%s304 + $0x31] sm:$0xff]
      %v342 = vld [vmem:[%s304 + $0x39] sm:$0xff]
      %v343 = vld [vmem:[%s304 + $0x49] sm:$0xff]
      %v344 = vld [vmem:[%s304 + $0x51] sm:$0xff]
      %v345 = vld [vmem:[%s304 + $0x61] sm:$0xff]
      %v346 = vld [vmem:[%s304 + $0x69] sm:$0xff]
      %v347 = vld [vmem:[%s304 + $0x79] sm:$0xff]
      %v348 = vld [vmem:[%s304 + $0x81] sm:$0xff]
      %v349 = vld [vmem:[%s304 + $0x91] sm:$0xff]
      %v350 = vld [vmem:[%s304 + $0x99] sm:$0xff]
      %v351 = vld [vmem:[%s304 + $0xa9] sm:$0xff]
      %v352 = vld [vmem:[%s304 + $0xb1] sm:$0xff]
      %v353 = vld [vmem:[%s304 + $0xc1] sm:$0xff]
      %v354 = vld [vmem:[%s304 + $0xc9] sm:$0xff]
      %v355 = vld [vmem:[%s304 + $0xd9] sm:$0xff]
      %v356 = vld [vmem:[%s304 + $0xe1] sm:$0xff]
      %v357 = vld [vmem:[%s304 + $0xf1] sm:$0xff]
      %v358 = vld [vmem:[%s304 + $0xf9] sm:$0xff]
      %v359 = vld [vmem:[%s304 + $0x109] sm:$0xff]
      %v360 = vld [vmem:[%s304 + $0x111] sm:$0xff]
      %v361 = vld [vmem:[%s304 + $0x121] sm:$0xff]
      %v362 = vld [vmem:[%s304 + $0x129] sm:$0xff]
      %v363 = vld [vmem:[%s304 + $0x139] sm:$0xff]
      %v364 = vld [vmem:[%s304 + $0x141] sm:$0xff]
      %v365 = vld [vmem:[%s304 + $0x151] sm:$0xff]
      %v366 = vld [vmem:[%s304 + $0x159] sm:$0xff]
      %v367 = vld [vmem:[%s304 + $0x169] sm:$0xff]
      %v368 = vld [vmem:[%s304 + $0x171] sm:$0xff]
      %v369 = vld [vmem:[%s304 + $0x2] sm:$0xff]
      %v370 = vld [vmem:[%s304 + $0xa] sm:$0xff]
      %v371 = vld [vmem:[%s304 + $0x1a] sm:$0xff]
      %v372 = vld [vmem:[%s304 + $0x22] sm:$0xff]
      %v373 = vld [vmem:[%s304 + $0x32] sm:$0xff]
      %v374 = vld [vmem:[%s304 + $0x3a] sm:$0xff]
      %v375 = vld [vmem:[%s304 + $0x4a] sm:$0xff]
      %v376 = vld [vmem:[%s304 + $0x52] sm:$0xff]
      %v377 = vld [vmem:[%s304 + $0x62] sm:$0xff]
      %v378 = vld [vmem:[%s304 + $0x6a] sm:$0xff]
      %v379 = vld [vmem:[%s304 + $0x7a] sm:$0xff]
      %v380 = vld [vmem:[%s304 + $0x82] sm:$0xff]
      %v381 = vld [vmem:[%s304 + $0x92] sm:$0xff]
      %v382 = vld [vmem:[%s304 + $0x9a] sm:$0xff]
      %v383 = vld [vmem:[%s304 + $0xaa] sm:$0xff]
      %v384 = vld [vmem:[%s304 + $0xb2] sm:$0xff]
      %v385 = vld [vmem:[%s304 + $0xc2] sm:$0xff]
      %v386 = vld [vmem:[%s304 + $0xca] sm:$0xff]
      %v387 = vld [vmem:[%s304 + $0xda] sm:$0xff]
      %v388 = vld [vmem:[%s304 + $0xe2] sm:$0xff]
      %v389 = vld [vmem:[%s304 + $0xf2] sm:$0xff]
      %v390 = vld [vmem:[%s304 + $0xfa] sm:$0xff]
      %v391 = vld [vmem:[%s304 + $0x10a] sm:$0xff]
      %v392 = vld [vmem:[%s304 + $0x112] sm:$0xff]
      %v393 = vld [vmem:[%s304 + $0x122] sm:$0xff]
      %v394 = vld [vmem:[%s304 + $0x12a] sm:$0xff]
      %v395 = vld [vmem:[%s304 + $0x13a] sm:$0xff]
      %v396 = vld [vmem:[%s304 + $0x142] sm:$0xff]
      %v397 = vld [vmem:[%s304 + $0x152] sm:$0xff]
      %v398 = vld [vmem:[%s304 + $0x15a] sm:$0xff]
      %v399 = vld [vmem:[%s304 + $0x16a] sm:$0xff]
      %v400 = vld [vmem:[%s304 + $0x172] sm:$0xff]
      %s401 = scalar_lea.vmem %s203, 48
      %v402 = vld [vmem:[%s401] sm:$0xff]
      %v403 = vld [vmem:[%s401 + $0x8] sm:$0xff]
      %v404 = vld [vmem:[%s401 + $0x18] sm:$0xff]
      %v405 = vld [vmem:[%s401 + $0x20] sm:$0xff]
      %v406 = vld [vmem:[%s401 + $0x30] sm:$0xff]
      %v407 = vld [vmem:[%s401 + $0x38] sm:$0xff]
      %v408 = vld [vmem:[%s401 + $0x48] sm:$0xff]
      %v409 = vld [vmem:[%s401 + $0x50] sm:$0xff]
      %v410 = vld [vmem:[%s401 + $0x60] sm:$0xff]
      %v411 = vld [vmem:[%s401 + $0x68] sm:$0xff]
      %v412 = vld [vmem:[%s401 + $0x78] sm:$0xff]
      %v413 = vld [vmem:[%s401 + $0x80] sm:$0xff]
      %v414 = vld [vmem:[%s401 + $0x90] sm:$0xff]
      %v415 = vld [vmem:[%s401 + $0x98] sm:$0xff]
      %v416 = vld [vmem:[%s401 + $0xa8] sm:$0xff]
      %v417 = vld [vmem:[%s401 + $0xb0] sm:$0xff]
      %v418 = vld [vmem:[%s401 + $0xc0] sm:$0xff]
      %v419 = vld [vmem:[%s401 + $0xc8] sm:$0xff]
      %v420 = vld [vmem:[%s401 + $0xd8] sm:$0xff]
      %v421 = vld [vmem:[%s401 + $0xe0] sm:$0xff]
      %v422 = vld [vmem:[%s401 + $0xf0] sm:$0xff]
      %v423 = vld [vmem:[%s401 + $0xf8] sm:$0xff]
      %v424 = vld [vmem:[%s401 + $0x108] sm:$0xff]
      %v425 = vld [vmem:[%s401 + $0x110] sm:$0xff]
      %v426 = vld [vmem:[%s401 + $0x120] sm:$0xff]
      %v427 = vld [vmem:[%s401 + $0x128] sm:$0xff]
      %v428 = vld [vmem:[%s401 + $0x138] sm:$0xff]
      %v429 = vld [vmem:[%s401 + $0x140] sm:$0xff]
      %v430 = vld [vmem:[%s401 + $0x150] sm:$0xff]
      %v431 = vld [vmem:[%s401 + $0x158] sm:$0xff]
      %v432 = vld [vmem:[%s401 + $0x168] sm:$0xff]
      %v433 = vld [vmem:[%s401 + $0x170] sm:$0xff]
      %v434 = vld [vmem:[%s401 + $0x1] sm:$0xff]
      %v435 = vld [vmem:[%s401 + $0x9] sm:$0xff]
      %v436 = vld [vmem:[%s401 + $0x19] sm:$0xff]
      %v437 = vld [vmem:[%s401 + $0x21] sm:$0xff]
      %v438 = vld [vmem:[%s401 + $0x31] sm:$0xff]
      %v439 = vld [vmem:[%s401 + $0x39] sm:$0xff]
      %v440 = vld [vmem:[%s401 + $0x49] sm:$0xff]
      %v441 = vld [vmem:[%s401 + $0x51] sm:$0xff]
      %v442 = vld [vmem:[%s401 + $0x61] sm:$0xff]
      %v443 = vld [vmem:[%s401 + $0x69] sm:$0xff]
      %v444 = vld [vmem:[%s401 + $0x79] sm:$0xff]
      %v445 = vld [vmem:[%s401 + $0x81] sm:$0xff]
      %v446 = vld [vmem:[%s401 + $0x91] sm:$0xff]
      %v447 = vld [vmem:[%s401 + $0x99] sm:$0xff]
      %v448 = vld [vmem:[%s401 + $0xa9] sm:$0xff]
      %v449 = vld [vmem:[%s401 + $0xb1] sm:$0xff]
      %v450 = vld [vmem:[%s401 + $0xc1] sm:$0xff]
      %v451 = vld [vmem:[%s401 + $0xc9] sm:$0xff]
      %v452 = vld [vmem:[%s401 + $0xd9] sm:$0xff]
      %v453 = vld [vmem:[%s401 + $0xe1] sm:$0xff]
      %v454 = vld [vmem:[%s401 + $0xf1] sm:$0xff]
      %v455 = vld [vmem:[%s401 + $0xf9] sm:$0xff]
      %v456 = vld [vmem:[%s401 + $0x109] sm:$0xff]
      %v457 = vld [vmem:[%s401 + $0x111] sm:$0xff]
      %v458 = vld [vmem:[%s401 + $0x121] sm:$0xff]
      %v459 = vld [vmem:[%s401 + $0x129] sm:$0xff]
      %v460 = vld [vmem:[%s401 + $0x139] sm:$0xff]
      %v461 = vld [vmem:[%s401 + $0x141] sm:$0xff]
      %v462 = vld [vmem:[%s401 + $0x151] sm:$0xff]
      %v463 = vld [vmem:[%s401 + $0x159] sm:$0xff]
      %v464 = vld [vmem:[%s401 + $0x169] sm:$0xff]
      %v465 = vld [vmem:[%s401 + $0x171] sm:$0xff]
      %v466 = vld [vmem:[%s401 + $0x2] sm:$0xff]
      %v467 = vld [vmem:[%s401 + $0xa] sm:$0xff]
      %v468 = vld [vmem:[%s401 + $0x1a] sm:$0xff]
      %v469 = vld [vmem:[%s401 + $0x22] sm:$0xff]
      %v470 = vld [vmem:[%s401 + $0x32] sm:$0xff]
      %v471 = vld [vmem:[%s401 + $0x3a] sm:$0xff]
      %v472 = vld [vmem:[%s401 + $0x4a] sm:$0xff]
      %v473 = vld [vmem:[%s401 + $0x52] sm:$0xff]
      %v474 = vld [vmem:[%s401 + $0x62] sm:$0xff]
      %v475 = vld [vmem:[%s401 + $0x6a] sm:$0xff]
      %v476 = vld [vmem:[%s401 + $0x7a] sm:$0xff]
      %v477 = vld [vmem:[%s401 + $0x82] sm:$0xff]
      %v478 = vld [vmem:[%s401 + $0x92] sm:$0xff]
      %v479 = vld [vmem:[%s401 + $0x9a] sm:$0xff]
      %v480 = vld [vmem:[%s401 + $0xaa] sm:$0xff]
      %v481 = vld [vmem:[%s401 + $0xb2] sm:$0xff]
      %v482 = vld [vmem:[%s401 + $0xc2] sm:$0xff]
      %v483 = vld [vmem:[%s401 + $0xca] sm:$0xff]
      %v484 = vld [vmem:[%s401 + $0xda] sm:$0xff]
      %v485 = vld [vmem:[%s401 + $0xe2] sm:$0xff]
      %v486 = vld [vmem:[%s401 + $0xf2] sm:$0xff]
      %v487 = vld [vmem:[%s401 + $0xfa] sm:$0xff]
      %v488 = vld [vmem:[%s401 + $0x10a] sm:$0xff]
      %v489 = vld [vmem:[%s401 + $0x112] sm:$0xff]
      %v490 = vld [vmem:[%s401 + $0x122] sm:$0xff]
      %v491 = vld [vmem:[%s401 + $0x12a] sm:$0xff]
      %v492 = vld [vmem:[%s401 + $0x13a] sm:$0xff]
      %v493 = vld [vmem:[%s401 + $0x142] sm:$0xff]
      %v494 = vld [vmem:[%s401 + $0x152] sm:$0xff]
      %v495 = vld [vmem:[%s401 + $0x15a] sm:$0xff]
      %v496 = vld [vmem:[%s401 + $0x16a] sm:$0xff]
      %v497 = vld [vmem:[%s401 + $0x172] sm:$0xff]
      %530 = vrot.lane.b32.xlu0 %v240, 4
      %v531 = vpop.permute.xlu0 %530
      %532 = vrot.lane.b32.xlu0 %v241, 4
      %v533 = vpop.permute.xlu0 %532
      %534 = vrot.lane.b32.xlu0 %v242, 4
      %v535 = vpop.permute.xlu0 %534
      %536 = vrot.lane.b32.xlu0 %v243, 4
      %v537 = vpop.permute.xlu0 %536
      %538 = vrot.lane.b32.xlu0 %v244, 4
      %v539 = vpop.permute.xlu0 %538
      %540 = vrot.lane.b32.xlu0 %v245, 4
      %v541 = vpop.permute.xlu0 %540
      %542 = vrot.lane.b32.xlu0 %v246, 4
      %v543 = vpop.permute.xlu0 %542
      %544 = vrot.lane.b32.xlu0 %v247, 4
      %v545 = vpop.permute.xlu0 %544
      %546 = vrot.lane.b32.xlu0 %v248, 4
      %v547 = vpop.permute.xlu0 %546
      %548 = vrot.lane.b32.xlu0 %v249, 4
      %v549 = vpop.permute.xlu0 %548
      %550 = vrot.lane.b32.xlu0 %v250, 4
      %v551 = vpop.permute.xlu0 %550
      %552 = vrot.lane.b32.xlu0 %v251, 4
      %v553 = vpop.permute.xlu0 %552
      %554 = vrot.lane.b32.xlu0 %v252, 4
      %v555 = vpop.permute.xlu0 %554
      %556 = vrot.lane.b32.xlu0 %v253, 4
      %v557 = vpop.permute.xlu0 %556
      %558 = vrot.lane.b32.xlu0 %v254, 4
      %v559 = vpop.permute.xlu0 %558
      %560 = vrot.lane.b32.xlu0 %v255, 4
      %v561 = vpop.permute.xlu0 %560
      %562 = vrot.lane.b32.xlu0 %v256, 4
      %v563 = vpop.permute.xlu0 %562
      %564 = vrot.lane.b32.xlu0 %v257, 4
      %v565 = vpop.permute.xlu0 %564
      %566 = vrot.lane.b32.xlu0 %v258, 4
      %v567 = vpop.permute.xlu0 %566
      %568 = vrot.lane.b32.xlu0 %v259, 4
      %v569 = vpop.permute.xlu0 %568
      %570 = vrot.lane.b32.xlu0 %v260, 4
      %v571 = vpop.permute.xlu0 %570
      %572 = vrot.lane.b32.xlu0 %v261, 4
      %v573 = vpop.permute.xlu0 %572
      %574 = vrot.lane.b32.xlu0 %v262, 4
      %v575 = vpop.permute.xlu0 %574
      %576 = vrot.lane.b32.xlu0 %v263, 4
      %v577 = vpop.permute.xlu0 %576
      %578 = vrot.lane.b32.xlu0 %v264, 4
      %v579 = vpop.permute.xlu0 %578
      %580 = vrot.lane.b32.xlu0 %v265, 4
      %v581 = vpop.permute.xlu0 %580
      %582 = vrot.lane.b32.xlu0 %v266, 4
      %v583 = vpop.permute.xlu0 %582
      %584 = vrot.lane.b32.xlu0 %v267, 4
      %v585 = vpop.permute.xlu0 %584
      %586 = vrot.lane.b32.xlu0 %v268, 4
      %v587 = vpop.permute.xlu0 %586
      %588 = vrot.lane.b32.xlu0 %v269, 4
      %v589 = vpop.permute.xlu0 %588
      %590 = vrot.lane.b32.xlu0 %v270, 4
      %v591 = vpop.permute.xlu0 %590
      %592 = vrot.lane.b32.xlu0 %v271, 4
      %v593 = vpop.permute.xlu0 %592
      %658 = vrot.lane.b32.xlu0 %v272, 8
      %v659 = vpop.permute.xlu0 %658
      %660 = vrot.lane.b32.xlu0 %v273, 8
      %v661 = vpop.permute.xlu0 %660
      %662 = vrot.lane.b32.xlu0 %v274, 8
      %v663 = vpop.permute.xlu0 %662
      %664 = vrot.lane.b32.xlu0 %v275, 8
      %v665 = vpop.permute.xlu0 %664
      %666 = vrot.lane.b32.xlu0 %v276, 8
      %v667 = vpop.permute.xlu0 %666
      %668 = vrot.lane.b32.xlu0 %v277, 8
      %v669 = vpop.permute.xlu0 %668
      %670 = vrot.lane.b32.xlu0 %v278, 8
      %v671 = vpop.permute.xlu0 %670
      %672 = vrot.lane.b32.xlu0 %v279, 8
      %v673 = vpop.permute.xlu0 %672
      %674 = vrot.lane.b32.xlu0 %v280, 8
      %v675 = vpop.permute.xlu0 %674
      %676 = vrot.lane.b32.xlu0 %v281, 8
      %v677 = vpop.permute.xlu0 %676
      %678 = vrot.lane.b32.xlu0 %v282, 8
      %v679 = vpop.permute.xlu0 %678
      %680 = vrot.lane.b32.xlu0 %v283, 8
      %v681 = vpop.permute.xlu0 %680
      %682 = vrot.lane.b32.xlu0 %v284, 8
      %v683 = vpop.permute.xlu0 %682
      %684 = vrot.lane.b32.xlu0 %v285, 8
      %v685 = vpop.permute.xlu0 %684
      %686 = vrot.lane.b32.xlu0 %v286, 8
      %v687 = vpop.permute.xlu0 %686
      %688 = vrot.lane.b32.xlu0 %v287, 8
      %v689 = vpop.permute.xlu0 %688
      %690 = vrot.lane.b32.xlu0 %v288, 8
      %v691 = vpop.permute.xlu0 %690
      %692 = vrot.lane.b32.xlu0 %v289, 8
      %v693 = vpop.permute.xlu0 %692
      %694 = vrot.lane.b32.xlu0 %v290, 8
      %v695 = vpop.permute.xlu0 %694
      %696 = vrot.lane.b32.xlu0 %v291, 8
      %v697 = vpop.permute.xlu0 %696
      %698 = vrot.lane.b32.xlu0 %v292, 8
      %v699 = vpop.permute.xlu0 %698
      %700 = vrot.lane.b32.xlu0 %v293, 8
      %v701 = vpop.permute.xlu0 %700
      %702 = vrot.lane.b32.xlu0 %v294, 8
      %v703 = vpop.permute.xlu0 %702
      %704 = vrot.lane.b32.xlu0 %v295, 8
      %v705 = vpop.permute.xlu0 %704
      %706 = vrot.lane.b32.xlu0 %v296, 8
      %v707 = vpop.permute.xlu0 %706
      %708 = vrot.lane.b32.xlu0 %v297, 8
      %v709 = vpop.permute.xlu0 %708
      %710 = vrot.lane.b32.xlu0 %v298, 8
      %v711 = vpop.permute.xlu0 %710
      %712 = vrot.lane.b32.xlu0 %v299, 8
      %v713 = vpop.permute.xlu0 %712
      %714 = vrot.lane.b32.xlu0 %v300, 8
      %v715 = vpop.permute.xlu0 %714
      %716 = vrot.lane.b32.xlu0 %v301, 8
      %v717 = vpop.permute.xlu0 %716
      %718 = vrot.lane.b32.xlu0 %v302, 8
      %v719 = vpop.permute.xlu0 %718
      %720 = vrot.lane.b32.xlu0 %v303, 8
      %v721 = vpop.permute.xlu0 %720
      %786 = vrot.lane.b32.xlu0 %v305, 12
      %v787 = vpop.permute.xlu0 %786
      %788 = vrot.lane.b32.xlu0 %v306, 12
      %v789 = vpop.permute.xlu0 %788
      %790 = vrot.lane.b32.xlu0 %v307, 12
      %v791 = vpop.permute.xlu0 %790
      %792 = vrot.lane.b32.xlu0 %v308, 12
      %v793 = vpop.permute.xlu0 %792
      %794 = vrot.lane.b32.xlu0 %v309, 12
      %v795 = vpop.permute.xlu0 %794
      %796 = vrot.lane.b32.xlu0 %v310, 12
      %v797 = vpop.permute.xlu0 %796
      %798 = vrot.lane.b32.xlu0 %v311, 12
      %v799 = vpop.permute.xlu0 %798
      %800 = vrot.lane.b32.xlu0 %v312, 12
      %v801 = vpop.permute.xlu0 %800
      %802 = vrot.lane.b32.xlu0 %v313, 12
      %v803 = vpop.permute.xlu0 %802
      %804 = vrot.lane.b32.xlu0 %v314, 12
      %v805 = vpop.permute.xlu0 %804
      %806 = vrot.lane.b32.xlu0 %v315, 12
      %v807 = vpop.permute.xlu0 %806
      %808 = vrot.lane.b32.xlu0 %v316, 12
      %v809 = vpop.permute.xlu0 %808
      %810 = vrot.lane.b32.xlu0 %v317, 12
      %v811 = vpop.permute.xlu0 %810
      %812 = vrot.lane.b32.xlu0 %v318, 12
      %v813 = vpop.permute.xlu0 %812
      %814 = vrot.lane.b32.xlu0 %v319, 12
      %v815 = vpop.permute.xlu0 %814
      %816 = vrot.lane.b32.xlu0 %v320, 12
      %v817 = vpop.permute.xlu0 %816
      %818 = vrot.lane.b32.xlu0 %v321, 12
      %v819 = vpop.permute.xlu0 %818
      %820 = vrot.lane.b32.xlu0 %v322, 12
      %v821 = vpop.permute.xlu0 %820
      %822 = vrot.lane.b32.xlu0 %v323, 12
      %v823 = vpop.permute.xlu0 %822
      %824 = vrot.lane.b32.xlu0 %v324, 12
      %v825 = vpop.permute.xlu0 %824
      %826 = vrot.lane.b32.xlu0 %v325, 12
      %v827 = vpop.permute.xlu0 %826
      %828 = vrot.lane.b32.xlu0 %v326, 12
      %v829 = vpop.permute.xlu0 %828
      %830 = vrot.lane.b32.xlu0 %v327, 12
      %v831 = vpop.permute.xlu0 %830
      %832 = vrot.lane.b32.xlu0 %v328, 12
      %v833 = vpop.permute.xlu0 %832
      %834 = vrot.lane.b32.xlu0 %v329, 12
      %v835 = vpop.permute.xlu0 %834
      %836 = vrot.lane.b32.xlu0 %v330, 12
      %v837 = vpop.permute.xlu0 %836
      %838 = vrot.lane.b32.xlu0 %v331, 12
      %v839 = vpop.permute.xlu0 %838
      %840 = vrot.lane.b32.xlu0 %v332, 12
      %v841 = vpop.permute.xlu0 %840
      %842 = vrot.lane.b32.xlu0 %v333, 12
      %v843 = vpop.permute.xlu0 %842
      %844 = vrot.lane.b32.xlu0 %v334, 12
      %v845 = vpop.permute.xlu0 %844
      %846 = vrot.lane.b32.xlu0 %v335, 12
      %v847 = vpop.permute.xlu0 %846
      %848 = vrot.lane.b32.xlu0 %v336, 12
      %v849 = vpop.permute.xlu0 %848
      %914 = vrot.lane.b32.xlu0 %v337, 16
      %v915 = vpop.permute.xlu0 %914
      %916 = vrot.lane.b32.xlu0 %v338, 16
      %v917 = vpop.permute.xlu0 %916
      %918 = vrot.lane.b32.xlu0 %v339, 16
      %v919 = vpop.permute.xlu0 %918
      %920 = vrot.lane.b32.xlu0 %v340, 16
      %v921 = vpop.permute.xlu0 %920
      %922 = vrot.lane.b32.xlu0 %v341, 16
      %v923 = vpop.permute.xlu0 %922
      %924 = vrot.lane.b32.xlu0 %v342, 16
      %v925 = vpop.permute.xlu0 %924
      %926 = vrot.lane.b32.xlu0 %v343, 16
      %v927 = vpop.permute.xlu0 %926
      %928 = vrot.lane.b32.xlu0 %v344, 16
      %v929 = vpop.permute.xlu0 %928
      %930 = vrot.lane.b32.xlu0 %v345, 16
      %v931 = vpop.permute.xlu0 %930
      %932 = vrot.lane.b32.xlu0 %v346, 16
      %v933 = vpop.permute.xlu0 %932
      %934 = vrot.lane.b32.xlu0 %v347, 16
      %v935 = vpop.permute.xlu0 %934
      %936 = vrot.lane.b32.xlu0 %v348, 16
      %v937 = vpop.permute.xlu0 %936
      %938 = vrot.lane.b32.xlu0 %v349, 16
      %v939 = vpop.permute.xlu0 %938
      %940 = vrot.lane.b32.xlu0 %v350, 16
      %v941 = vpop.permute.xlu0 %940
      %942 = vrot.lane.b32.xlu0 %v351, 16
      %v943 = vpop.permute.xlu0 %942
      %944 = vrot.lane.b32.xlu0 %v352, 16
      %v945 = vpop.permute.xlu0 %944
      %946 = vrot.lane.b32.xlu0 %v353, 16
      %v947 = vpop.permute.xlu0 %946
      %948 = vrot.lane.b32.xlu0 %v354, 16
      %v949 = vpop.permute.xlu0 %948
      %950 = vrot.lane.b32.xlu0 %v355, 16
      %v951 = vpop.permute.xlu0 %950
      %952 = vrot.lane.b32.xlu0 %v356, 16
      %v953 = vpop.permute.xlu0 %952
      %954 = vrot.lane.b32.xlu0 %v357, 16
      %v955 = vpop.permute.xlu0 %954
      %956 = vrot.lane.b32.xlu0 %v358, 16
      %v957 = vpop.permute.xlu0 %956
      %958 = vrot.lane.b32.xlu0 %v359, 16
      %v959 = vpop.permute.xlu0 %958
      %960 = vrot.lane.b32.xlu0 %v360, 16
      %v961 = vpop.permute.xlu0 %960
      %962 = vrot.lane.b32.xlu0 %v361, 16
      %v963 = vpop.permute.xlu0 %962
      %964 = vrot.lane.b32.xlu0 %v362, 16
      %v965 = vpop.permute.xlu0 %964
      %966 = vrot.lane.b32.xlu0 %v363, 16
      %v967 = vpop.permute.xlu0 %966
      %968 = vrot.lane.b32.xlu0 %v364, 16
      %v969 = vpop.permute.xlu0 %968
      %970 = vrot.lane.b32.xlu0 %v365, 16
      %v971 = vpop.permute.xlu0 %970
      %972 = vrot.lane.b32.xlu0 %v366, 16
      %v973 = vpop.permute.xlu0 %972
      %974 = vrot.lane.b32.xlu0 %v367, 16
      %v975 = vpop.permute.xlu0 %974
      %976 = vrot.lane.b32.xlu0 %v368, 16
      %v977 = vpop.permute.xlu0 %976
      %1042 = vrot.lane.b32.xlu0 %v369, 20
      %v1043 = vpop.permute.xlu0 %1042
      %1044 = vrot.lane.b32.xlu0 %v370, 20
      %v1045 = vpop.permute.xlu0 %1044
      %1046 = vrot.lane.b32.xlu0 %v371, 20
      %v1047 = vpop.permute.xlu0 %1046
      %1048 = vrot.lane.b32.xlu0 %v372, 20
      %v1049 = vpop.permute.xlu0 %1048
      %1050 = vrot.lane.b32.xlu0 %v373, 20
      %v1051 = vpop.permute.xlu0 %1050
      %1052 = vrot.lane.b32.xlu0 %v374, 20
      %v1053 = vpop.permute.xlu0 %1052
      %1054 = vrot.lane.b32.xlu0 %v375, 20
      %v1055 = vpop.permute.xlu0 %1054
      %1056 = vrot.lane.b32.xlu0 %v376, 20
      %v1057 = vpop.permute.xlu0 %1056
      %1058 = vrot.lane.b32.xlu0 %v377, 20
      %v1059 = vpop.permute.xlu0 %1058
      %1060 = vrot.lane.b32.xlu0 %v378, 20
      %v1061 = vpop.permute.xlu0 %1060
      %1062 = vrot.lane.b32.xlu0 %v379, 20
      %v1063 = vpop.permute.xlu0 %1062
      %1064 = vrot.lane.b32.xlu0 %v380, 20
      %v1065 = vpop.permute.xlu0 %1064
      %1066 = vrot.lane.b32.xlu0 %v381, 20
      %v1067 = vpop.permute.xlu0 %1066
      %1068 = vrot.lane.b32.xlu0 %v382, 20
      %v1069 = vpop.permute.xlu0 %1068
      %1070 = vrot.lane.b32.xlu0 %v383, 20
      %v1071 = vpop.permute.xlu0 %1070
      %1072 = vrot.lane.b32.xlu0 %v384, 20
      %v1073 = vpop.permute.xlu0 %1072
      %1074 = vrot.lane.b32.xlu0 %v385, 20
      %v1075 = vpop.permute.xlu0 %1074
      %1076 = vrot.lane.b32.xlu0 %v386, 20
      %v1077 = vpop.permute.xlu0 %1076
      %1078 = vrot.lane.b32.xlu0 %v387, 20
      %v1079 = vpop.permute.xlu0 %1078
      %1080 = vrot.lane.b32.xlu0 %v388, 20
      %v1081 = vpop.permute.xlu0 %1080
      %1082 = vrot.lane.b32.xlu0 %v389, 20
      %v1083 = vpop.permute.xlu0 %1082
      %1084 = vrot.lane.b32.xlu0 %v390, 20
      %v1085 = vpop.permute.xlu0 %1084
      %1086 = vrot.lane.b32.xlu0 %v391, 20
      %v1087 = vpop.permute.xlu0 %1086
      %1088 = vrot.lane.b32.xlu0 %v392, 20
      %v1089 = vpop.permute.xlu0 %1088
      %1090 = vrot.lane.b32.xlu0 %v393, 20
      %v1091 = vpop.permute.xlu0 %1090
      %1092 = vrot.lane.b32.xlu0 %v394, 20
      %v1093 = vpop.permute.xlu0 %1092
      %1094 = vrot.lane.b32.xlu0 %v395, 20
      %v1095 = vpop.permute.xlu0 %1094
      %1096 = vrot.lane.b32.xlu0 %v396, 20
      %v1097 = vpop.permute.xlu0 %1096
      %1098 = vrot.lane.b32.xlu0 %v397, 20
      %v1099 = vpop.permute.xlu0 %1098
      %1100 = vrot.lane.b32.xlu0 %v398, 20
      %v1101 = vpop.permute.xlu0 %1100
      %1102 = vrot.lane.b32.xlu0 %v399, 20
      %v1103 = vpop.permute.xlu0 %1102
      %1104 = vrot.lane.b32.xlu0 %v400, 20
      %v1105 = vpop.permute.xlu0 %1104
      %1170 = vrot.lane.b32.xlu0 %v402, 24
      %v1171 = vpop.permute.xlu0 %1170
      %1172 = vrot.lane.b32.xlu0 %v403, 24
      %v1173 = vpop.permute.xlu0 %1172
      %1174 = vrot.lane.b32.xlu0 %v404, 24
      %v1175 = vpop.permute.xlu0 %1174
      %1176 = vrot.lane.b32.xlu0 %v405, 24
      %v1177 = vpop.permute.xlu0 %1176
      %1178 = vrot.lane.b32.xlu0 %v406, 24
      %v1179 = vpop.permute.xlu0 %1178
      %1180 = vrot.lane.b32.xlu0 %v407, 24
      %v1181 = vpop.permute.xlu0 %1180
      %1182 = vrot.lane.b32.xlu0 %v408, 24
      %v1183 = vpop.permute.xlu0 %1182
      %1184 = vrot.lane.b32.xlu0 %v409, 24
      %v1185 = vpop.permute.xlu0 %1184
      %1186 = vrot.lane.b32.xlu0 %v410, 24
      %v1187 = vpop.permute.xlu0 %1186
      %1188 = vrot.lane.b32.xlu0 %v411, 24
      %v1189 = vpop.permute.xlu0 %1188
      %1190 = vrot.lane.b32.xlu0 %v412, 24
      %v1191 = vpop.permute.xlu0 %1190
      %1192 = vrot.lane.b32.xlu0 %v413, 24
      %v1193 = vpop.permute.xlu0 %1192
      %1194 = vrot.lane.b32.xlu0 %v414, 24
      %v1195 = vpop.permute.xlu0 %1194
      %1196 = vrot.lane.b32.xlu0 %v415, 24
      %v1197 = vpop.permute.xlu0 %1196
      %1198 = vrot.lane.b32.xlu0 %v416, 24
      %v1199 = vpop.permute.xlu0 %1198
      %1200 = vrot.lane.b32.xlu0 %v417, 24
      %v1201 = vpop.permute.xlu0 %1200
      %1202 = vrot.lane.b32.xlu0 %v418, 24
      %v1203 = vpop.permute.xlu0 %1202
      %1204 = vrot.lane.b32.xlu0 %v419, 24
      %v1205 = vpop.permute.xlu0 %1204
      %1206 = vrot.lane.b32.xlu0 %v420, 24
      %v1207 = vpop.permute.xlu0 %1206
      %1208 = vrot.lane.b32.xlu0 %v421, 24
      %v1209 = vpop.permute.xlu0 %1208
      %1210 = vrot.lane.b32.xlu0 %v422, 24
      %v1211 = vpop.permute.xlu0 %1210
      %1212 = vrot.lane.b32.xlu0 %v423, 24
      %v1213 = vpop.permute.xlu0 %1212
      %1214 = vrot.lane.b32.xlu0 %v424, 24
      %v1215 = vpop.permute.xlu0 %1214
      %1216 = vrot.lane.b32.xlu0 %v425, 24
      %v1217 = vpop.permute.xlu0 %1216
      %1218 = vrot.lane.b32.xlu0 %v426, 24
      %v1219 = vpop.permute.xlu0 %1218
      %1220 = vrot.lane.b32.xlu0 %v427, 24
      %v1221 = vpop.permute.xlu0 %1220
      %1222 = vrot.lane.b32.xlu0 %v428, 24
      %v1223 = vpop.permute.xlu0 %1222
      %1224 = vrot.lane.b32.xlu0 %v429, 24
      %v1225 = vpop.permute.xlu0 %1224
      %1226 = vrot.lane.b32.xlu0 %v430, 24
      %v1227 = vpop.permute.xlu0 %1226
      %1228 = vrot.lane.b32.xlu0 %v431, 24
      %v1229 = vpop.permute.xlu0 %1228
      %1230 = vrot.lane.b32.xlu0 %v432, 24
      %v1231 = vpop.permute.xlu0 %1230
      %1232 = vrot.lane.b32.xlu0 %v433, 24
      %v1233 = vpop.permute.xlu0 %1232
      %1298 = vrot.lane.b32.xlu0 %v434, 28
      %v1299 = vpop.permute.xlu0 %1298
      %1300 = vrot.lane.b32.xlu0 %v435, 28
      %v1301 = vpop.permute.xlu0 %1300
      %1302 = vrot.lane.b32.xlu0 %v436, 28
      %v1303 = vpop.permute.xlu0 %1302
      %1304 = vrot.lane.b32.xlu0 %v437, 28
      %v1305 = vpop.permute.xlu0 %1304
      %1306 = vrot.lane.b32.xlu0 %v438, 28
      %v1307 = vpop.permute.xlu0 %1306
      %1308 = vrot.lane.b32.xlu0 %v439, 28
      %v1309 = vpop.permute.xlu0 %1308
      %1310 = vrot.lane.b32.xlu0 %v440, 28
      %v1311 = vpop.permute.xlu0 %1310
      %1312 = vrot.lane.b32.xlu0 %v441, 28
      %v1313 = vpop.permute.xlu0 %1312
      %1314 = vrot.lane.b32.xlu0 %v442, 28
      %v1315 = vpop.permute.xlu0 %1314
      %1316 = vrot.lane.b32.xlu0 %v443, 28
      %v1317 = vpop.permute.xlu0 %1316
      %1318 = vrot.lane.b32.xlu0 %v444, 28
      %v1319 = vpop.permute.xlu0 %1318
      %1320 = vrot.lane.b32.xlu0 %v445, 28
      %v1321 = vpop.permute.xlu0 %1320
      %1322 = vrot.lane.b32.xlu0 %v446, 28
      %v1323 = vpop.permute.xlu0 %1322
      %1324 = vrot.lane.b32.xlu0 %v447, 28
      %v1325 = vpop.permute.xlu0 %1324
      %1326 = vrot.lane.b32.xlu0 %v448, 28
      %v1327 = vpop.permute.xlu0 %1326
      %1328 = vrot.lane.b32.xlu0 %v449, 28
      %v1329 = vpop.permute.xlu0 %1328
      %1330 = vrot.lane.b32.xlu0 %v450, 28
      %v1331 = vpop.permute.xlu0 %1330
      %1332 = vrot.lane.b32.xlu0 %v451, 28
      %v1333 = vpop.permute.xlu0 %1332
      %1334 = vrot.lane.b32.xlu0 %v452, 28
      %v1335 = vpop.permute.xlu0 %1334
      %1336 = vrot.lane.b32.xlu0 %v453, 28
      %v1337 = vpop.permute.xlu0 %1336
      %1338 = vrot.lane.b32.xlu0 %v454, 28
      %v1339 = vpop.permute.xlu0 %1338
      %1340 = vrot.lane.b32.xlu0 %v455, 28
      %v1341 = vpop.permute.xlu0 %1340
      %1342 = vrot.lane.b32.xlu0 %v456, 28
      %v1343 = vpop.permute.xlu0 %1342
      %1344 = vrot.lane.b32.xlu0 %v457, 28
      %v1345 = vpop.permute.xlu0 %1344
      %1346 = vrot.lane.b32.xlu0 %v458, 28
      %v1347 = vpop.permute.xlu0 %1346
      %1348 = vrot.lane.b32.xlu0 %v459, 28
      %v1349 = vpop.permute.xlu0 %1348
      %1350 = vrot.lane.b32.xlu0 %v460, 28
      %v1351 = vpop.permute.xlu0 %1350
      %1352 = vrot.lane.b32.xlu0 %v461, 28
      %v1353 = vpop.permute.xlu0 %1352
      %1354 = vrot.lane.b32.xlu0 %v462, 28
      %v1355 = vpop.permute.xlu0 %1354
      %1356 = vrot.lane.b32.xlu0 %v463, 28
      %v1357 = vpop.permute.xlu0 %1356
      %1358 = vrot.lane.b32.xlu0 %v464, 28
      %v1359 = vpop.permute.xlu0 %1358
      %1360 = vrot.lane.b32.xlu0 %v465, 28
      %v1361 = vpop.permute.xlu0 %1360
      %1426 = vrot.lane.b32.xlu0 %v466, 32
      %v1427 = vpop.permute.xlu0 %1426
      %1428 = vrot.lane.b32.xlu0 %v467, 32
      %v1429 = vpop.permute.xlu0 %1428
      %1430 = vrot.lane.b32.xlu0 %v468, 32
      %v1431 = vpop.permute.xlu0 %1430
      %1432 = vrot.lane.b32.xlu0 %v469, 32
      %v1433 = vpop.permute.xlu0 %1432
      %1434 = vrot.lane.b32.xlu0 %v470, 32
      %v1435 = vpop.permute.xlu0 %1434
      %1436 = vrot.lane.b32.xlu0 %v471, 32
      %v1437 = vpop.permute.xlu0 %1436
      %1438 = vrot.lane.b32.xlu0 %v472, 32
      %v1439 = vpop.permute.xlu0 %1438
      %1440 = vrot.lane.b32.xlu0 %v473, 32
      %v1441 = vpop.permute.xlu0 %1440
      %1442 = vrot.lane.b32.xlu0 %v474, 32
      %v1443 = vpop.permute.xlu0 %1442
      %1444 = vrot.lane.b32.xlu0 %v475, 32
      %v1445 = vpop.permute.xlu0 %1444
      %1446 = vrot.lane.b32.xlu0 %v476, 32
      %v1447 = vpop.permute.xlu0 %1446
      %1448 = vrot.lane.b32.xlu0 %v477, 32
      %v1449 = vpop.permute.xlu0 %1448
      %1450 = vrot.lane.b32.xlu0 %v478, 32
      %v1451 = vpop.permute.xlu0 %1450
      %1452 = vrot.lane.b32.xlu0 %v479, 32
      %v1453 = vpop.permute.xlu0 %1452
      %1454 = vrot.lane.b32.xlu0 %v480, 32
      %v1455 = vpop.permute.xlu0 %1454
      %1456 = vrot.lane.b32.xlu0 %v481, 32
      %v1457 = vpop.permute.xlu0 %1456
      %1458 = vrot.lane.b32.xlu0 %v482, 32
      %v1459 = vpop.permute.xlu0 %1458
      %1460 = vrot.lane.b32.xlu0 %v483, 32
      %v1461 = vpop.permute.xlu0 %1460
      %1462 = vrot.lane.b32.xlu0 %v484, 32
      %v1463 = vpop.permute.xlu0 %1462
      %1464 = vrot.lane.b32.xlu0 %v485, 32
      %v1465 = vpop.permute.xlu0 %1464
      %1466 = vrot.lane.b32.xlu0 %v486, 32
      %v1467 = vpop.permute.xlu0 %1466
      %1468 = vrot.lane.b32.xlu0 %v487, 32
      %v1469 = vpop.permute.xlu0 %1468
      %1470 = vrot.lane.b32.xlu0 %v488, 32
      %v1471 = vpop.permute.xlu0 %1470
      %1472 = vrot.lane.b32.xlu0 %v489, 32
      %v1473 = vpop.permute.xlu0 %1472
      %1474 = vrot.lane.b32.xlu0 %v490, 32
      %v1475 = vpop.permute.xlu0 %1474
      %1476 = vrot.lane.b32.xlu0 %v491, 32
      %v1477 = vpop.permute.xlu0 %1476
      %1478 = vrot.lane.b32.xlu0 %v492, 32
      %v1479 = vpop.permute.xlu0 %1478
      %1480 = vrot.lane.b32.xlu0 %v493, 32
      %v1481 = vpop.permute.xlu0 %1480
      %1482 = vrot.lane.b32.xlu0 %v494, 32
      %v1483 = vpop.permute.xlu0 %1482
      %1484 = vrot.lane.b32.xlu0 %v495, 32
      %v1485 = vpop.permute.xlu0 %1484
      %1486 = vrot.lane.b32.xlu0 %v496, 32
      %v1487 = vpop.permute.xlu0 %1486
      %1488 = vrot.lane.b32.xlu0 %v497, 32
      %v1489 = vpop.permute.xlu0 %1488
      %vm1522 = vcmask 31744
      %v1523 = vsel %vm1522, %v208, %v531
      %v1524 = vsel %vm1522, %v209, %v533
      %v1525 = vsel %vm1522, %v210, %v535
      %v1526 = vsel %vm1522, %v211, %v537
      %v1527 = vsel %vm1522, %v212, %v539
      %v1528 = vsel %vm1522, %v213, %v541
      %v1529 = vsel %vm1522, %v214, %v543
      %v1530 = vsel %vm1522, %v215, %v545
      %v1531 = vsel %vm1522, %v216, %v547
      %v1532 = vsel %vm1522, %v217, %v549
      %v1533 = vsel %vm1522, %v218, %v551
      %v1534 = vsel %vm1522, %v219, %v553
      %v1535 = vsel %vm1522, %v220, %v555
      %v1536 = vsel %vm1522, %v221, %v557
      %v1537 = vsel %vm1522, %v222, %v559
      %v1538 = vsel %vm1522, %v223, %v561
      %v1539 = vsel %vm1522, %v224, %v563
      %v1540 = vsel %vm1522, %v225, %v565
      %v1541 = vsel %vm1522, %v226, %v567
      %v1542 = vsel %vm1522, %v227, %v569
      %v1543 = vsel %vm1522, %v228, %v571
      %v1544 = vsel %vm1522, %v229, %v573
      %v1545 = vsel %vm1522, %v230, %v575
      %v1546 = vsel %vm1522, %v231, %v577
      %v1547 = vsel %vm1522, %v232, %v579
      %v1548 = vsel %vm1522, %v233, %v581
      %v1549 = vsel %vm1522, %v234, %v583
      %v1550 = vsel %vm1522, %v235, %v585
      %v1551 = vsel %vm1522, %v236, %v587
      %v1552 = vsel %vm1522, %v237, %v589
      %v1553 = vsel %vm1522, %v238, %v591
      %v1554 = vsel %vm1522, %v239, %v593
      %vm1555 = vcmask 64512
      %v1556 = vsel %vm1555, %v1523, %v659
      %v1557 = vsel %vm1555, %v1524, %v661
      %v1558 = vsel %vm1555, %v1525, %v663
      %v1559 = vsel %vm1555, %v1526, %v665
      %v1560 = vsel %vm1555, %v1527, %v667
      %v1561 = vsel %vm1555, %v1528, %v669
      %v1562 = vsel %vm1555, %v1529, %v671
      %v1563 = vsel %vm1555, %v1530, %v673
      %v1564 = vsel %vm1555, %v1531, %v675
      %v1565 = vsel %vm1555, %v1532, %v677
      %v1566 = vsel %vm1555, %v1533, %v679
      %v1567 = vsel %vm1555, %v1534, %v681
      %v1568 = vsel %vm1555, %v1535, %v683
      %v1569 = vsel %vm1555, %v1536, %v685
      %v1570 = vsel %vm1555, %v1537, %v687
      %v1571 = vsel %vm1555, %v1538, %v689
      %v1572 = vsel %vm1555, %v1539, %v691
      %v1573 = vsel %vm1555, %v1540, %v693
      %v1574 = vsel %vm1555, %v1541, %v695
      %v1575 = vsel %vm1555, %v1542, %v697
      %v1576 = vsel %vm1555, %v1543, %v699
      %v1577 = vsel %vm1555, %v1544, %v701
      %v1578 = vsel %vm1555, %v1545, %v703
      %v1579 = vsel %vm1555, %v1546, %v705
      %v1580 = vsel %vm1555, %v1547, %v707
      %v1581 = vsel %vm1555, %v1548, %v709
      %v1582 = vsel %vm1555, %v1549, %v711
      %v1583 = vsel %vm1555, %v1550, %v713
      %v1584 = vsel %vm1555, %v1551, %v715
      %v1585 = vsel %vm1555, %v1552, %v717
      %v1586 = vsel %vm1555, %v1553, %v719
      %v1587 = vsel %vm1555, %v1554, %v721
      %vm1588 = vcmask 97280
      %v1589 = vsel %vm1588, %v1556, %v787
      %v1590 = vsel %vm1588, %v1557, %v789
      %v1591 = vsel %vm1588, %v1558, %v791
      %v1592 = vsel %vm1588, %v1559, %v793
      %v1593 = vsel %vm1588, %v1560, %v795
      %v1594 = vsel %vm1588, %v1561, %v797
      %v1595 = vsel %vm1588, %v1562, %v799
      %v1596 = vsel %vm1588, %v1563, %v801
      %v1597 = vsel %vm1588, %v1564, %v803
      %v1598 = vsel %vm1588, %v1565, %v805
      %v1599 = vsel %vm1588, %v1566, %v807
      %v1600 = vsel %vm1588, %v1567, %v809
      %v1601 = vsel %vm1588, %v1568, %v811
      %v1602 = vsel %vm1588, %v1569, %v813
      %v1603 = vsel %vm1588, %v1570, %v815
      %v1604 = vsel %vm1588, %v1571, %v817
      %v1605 = vsel %vm1588, %v1572, %v819
      %v1606 = vsel %vm1588, %v1573, %v821
      %v1607 = vsel %vm1588, %v1574, %v823
      %v1608 = vsel %vm1588, %v1575, %v825
      %v1609 = vsel %vm1588, %v1576, %v827
      %v1610 = vsel %vm1588, %v1577, %v829
      %v1611 = vsel %vm1588, %v1578, %v831
      %v1612 = vsel %vm1588, %v1579, %v833
      %v1613 = vsel %vm1588, %v1580, %v835
      %v1614 = vsel %vm1588, %v1581, %v837
      %v1615 = vsel %vm1588, %v1582, %v839
      %v1616 = vsel %vm1588, %v1583, %v841
      %v1617 = vsel %vm1588, %v1584, %v843
      %v1618 = vsel %vm1588, %v1585, %v845
      %v1619 = vsel %vm1588, %v1586, %v847
      %v1620 = vsel %vm1588, %v1587, %v849
      %vm1621 = vcmask 130048
      %v1622 = vsel %vm1621, %v1589, %v915
      %v1623 = vsel %vm1621, %v1590, %v917
      %v1624 = vsel %vm1621, %v1591, %v919
      %v1625 = vsel %vm1621, %v1592, %v921
      %v1626 = vsel %vm1621, %v1593, %v923
      %v1627 = vsel %vm1621, %v1594, %v925
      %v1628 = vsel %vm1621, %v1595, %v927
      %v1629 = vsel %vm1621, %v1596, %v929
      %v1630 = vsel %vm1621, %v1597, %v931
      %v1631 = vsel %vm1621, %v1598, %v933
      %v1632 = vsel %vm1621, %v1599, %v935
      %v1633 = vsel %vm1621, %v1600, %v937
      %v1634 = vsel %vm1621, %v1601, %v939
      %v1635 = vsel %vm1621, %v1602, %v941
      %v1636 = vsel %vm1621, %v1603, %v943
      %v1637 = vsel %vm1621, %v1604, %v945
      %v1638 = vsel %vm1621, %v1605, %v947
      %v1639 = vsel %vm1621, %v1606, %v949
      %v1640 = vsel %vm1621, %v1607, %v951
      %v1641 = vsel %vm1621, %v1608, %v953
      %v1642 = vsel %vm1621, %v1609, %v955
      %v1643 = vsel %vm1621, %v1610, %v957
      %v1644 = vsel %vm1621, %v1611, %v959
      %v1645 = vsel %vm1621, %v1612, %v961
      %v1646 = vsel %vm1621, %v1613, %v963
      %v1647 = vsel %vm1621, %v1614, %v965
      %v1648 = vsel %vm1621, %v1615, %v967
      %v1649 = vsel %vm1621, %v1616, %v969
      %v1650 = vsel %vm1621, %v1617, %v971
      %v1651 = vsel %vm1621, %v1618, %v973
      %v1652 = vsel %vm1621, %v1619, %v975
      %v1653 = vsel %vm1621, %v1620, %v977
      %vm1654 = vcmask 162816
      %v1655 = vsel %vm1654, %v1622, %v1043
      %v1656 = vsel %vm1654, %v1623, %v1045
      %v1657 = vsel %vm1654, %v1624, %v1047
      %v1658 = vsel %vm1654, %v1625, %v1049
      %v1659 = vsel %vm1654, %v1626, %v1051
      %v1660 = vsel %vm1654, %v1627, %v1053
      %v1661 = vsel %vm1654, %v1628, %v1055
      %v1662 = vsel %vm1654, %v1629, %v1057
      %v1663 = vsel %vm1654, %v1630, %v1059
      %v1664 = vsel %vm1654, %v1631, %v1061
      %v1665 = vsel %vm1654, %v1632, %v1063
      %v1666 = vsel %vm1654, %v1633, %v1065
      %v1667 = vsel %vm1654, %v1634, %v1067
      %v1668 = vsel %vm1654, %v1635, %v1069
      %v1669 = vsel %vm1654, %v1636, %v1071
      %v1670 = vsel %vm1654, %v1637, %v1073
      %v1671 = vsel %vm1654, %v1638, %v1075
      %v1672 = vsel %vm1654, %v1639, %v1077
      %v1673 = vsel %vm1654, %v1640, %v1079
      %v1674 = vsel %vm1654, %v1641, %v1081
      %v1675 = vsel %vm1654, %v1642, %v1083
      %v1676 = vsel %vm1654, %v1643, %v1085
      %v1677 = vsel %vm1654, %v1644, %v1087
      %v1678 = vsel %vm1654, %v1645, %v1089
      %v1679 = vsel %vm1654, %v1646, %v1091
      %v1680 = vsel %vm1654, %v1647, %v1093
      %v1681 = vsel %vm1654, %v1648, %v1095
      %v1682 = vsel %vm1654, %v1649, %v1097
      %v1683 = vsel %vm1654, %v1650, %v1099
      %v1684 = vsel %vm1654, %v1651, %v1101
      %v1685 = vsel %vm1654, %v1652, %v1103
      %v1686 = vsel %vm1654, %v1653, %v1105
      %vm1687 = vcmask 195584
      %v1688 = vsel %vm1687, %v1655, %v1171
      %v1689 = vsel %vm1687, %v1656, %v1173
      %v1690 = vsel %vm1687, %v1657, %v1175
      %v1691 = vsel %vm1687, %v1658, %v1177
      %v1692 = vsel %vm1687, %v1659, %v1179
      %v1693 = vsel %vm1687, %v1660, %v1181
      %v1694 = vsel %vm1687, %v1661, %v1183
      %v1695 = vsel %vm1687, %v1662, %v1185
      %v1696 = vsel %vm1687, %v1663, %v1187
      %v1697 = vsel %vm1687, %v1664, %v1189
      %v1698 = vsel %vm1687, %v1665, %v1191
      %v1699 = vsel %vm1687, %v1666, %v1193
      %v1700 = vsel %vm1687, %v1667, %v1195
      %v1701 = vsel %vm1687, %v1668, %v1197
      %v1702 = vsel %vm1687, %v1669, %v1199
      %v1703 = vsel %vm1687, %v1670, %v1201
      %v1704 = vsel %vm1687, %v1671, %v1203
      %v1705 = vsel %vm1687, %v1672, %v1205
      %v1706 = vsel %vm1687, %v1673, %v1207
      %v1707 = vsel %vm1687, %v1674, %v1209
      %v1708 = vsel %vm1687, %v1675, %v1211
      %v1709 = vsel %vm1687, %v1676, %v1213
      %v1710 = vsel %vm1687, %v1677, %v1215
      %v1711 = vsel %vm1687, %v1678, %v1217
      %v1712 = vsel %vm1687, %v1679, %v1219
      %v1713 = vsel %vm1687, %v1680, %v1221
      %v1714 = vsel %vm1687, %v1681, %v1223
      %v1715 = vsel %vm1687, %v1682, %v1225
      %v1716 = vsel %vm1687, %v1683, %v1227
      %v1717 = vsel %vm1687, %v1684, %v1229
      %v1718 = vsel %vm1687, %v1685, %v1231
      %v1719 = vsel %vm1687, %v1686, %v1233
      %vm1720 = vcmask 228352
      %v1721 = vsel %vm1720, %v1688, %v1299
      %v1722 = vsel %vm1720, %v1689, %v1301
      %v1723 = vsel %vm1720, %v1690, %v1303
      %v1724 = vsel %vm1720, %v1691, %v1305
      %v1725 = vsel %vm1720, %v1692, %v1307
      %v1726 = vsel %vm1720, %v1693, %v1309
      %v1727 = vsel %vm1720, %v1694, %v1311
      %v1728 = vsel %vm1720, %v1695, %v1313
      %v1729 = vsel %vm1720, %v1696, %v1315
      %v1730 = vsel %vm1720, %v1697, %v1317
      %v1731 = vsel %vm1720, %v1698, %v1319
      %v1732 = vsel %vm1720, %v1699, %v1321
      %v1733 = vsel %vm1720, %v1700, %v1323
      %v1734 = vsel %vm1720, %v1701, %v1325
      %v1735 = vsel %vm1720, %v1702, %v1327
      %v1736 = vsel %vm1720, %v1703, %v1329
      %v1737 = vsel %vm1720, %v1704, %v1331
      %v1738 = vsel %vm1720, %v1705, %v1333
      %v1739 = vsel %vm1720, %v1706, %v1335
      %v1740 = vsel %vm1720, %v1707, %v1337
      %v1741 = vsel %vm1720, %v1708, %v1339
      %v1742 = vsel %vm1720, %v1709, %v1341
      %v1743 = vsel %vm1720, %v1710, %v1343
      %v1744 = vsel %vm1720, %v1711, %v1345
      %v1745 = vsel %vm1720, %v1712, %v1347
      %v1746 = vsel %vm1720, %v1713, %v1349
      %v1747 = vsel %vm1720, %v1714, %v1351
      %v1748 = vsel %vm1720, %v1715, %v1353
      %v1749 = vsel %vm1720, %v1716, %v1355
      %v1750 = vsel %vm1720, %v1717, %v1357
      %v1751 = vsel %vm1720, %v1718, %v1359
      %v1752 = vsel %vm1720, %v1719, %v1361
      %vm1753 = vcmask 261120
      %v1754 = vsel %vm1753, %v1721, %v1427
      %v1755 = vsel %vm1753, %v1722, %v1429
      %v1756 = vsel %vm1753, %v1723, %v1431
      %v1757 = vsel %vm1753, %v1724, %v1433
      %v1758 = vsel %vm1753, %v1725, %v1435
      %v1759 = vsel %vm1753, %v1726, %v1437
      %v1760 = vsel %vm1753, %v1727, %v1439
      %v1761 = vsel %vm1753, %v1728, %v1441
      %v1762 = vsel %vm1753, %v1729, %v1443
      %v1763 = vsel %vm1753, %v1730, %v1445
      %v1764 = vsel %vm1753, %v1731, %v1447
      %v1765 = vsel %vm1753, %v1732, %v1449
      %v1766 = vsel %vm1753, %v1733, %v1451
      %v1767 = vsel %vm1753, %v1734, %v1453
      %v1768 = vsel %vm1753, %v1735, %v1455
      %v1769 = vsel %vm1753, %v1736, %v1457
      %v1770 = vsel %vm1753, %v1737, %v1459
      %v1771 = vsel %vm1753, %v1738, %v1461
      %v1772 = vsel %vm1753, %v1739, %v1463
      %v1773 = vsel %vm1753, %v1740, %v1465
      %v1774 = vsel %vm1753, %v1741, %v1467
      %v1775 = vsel %vm1753, %v1742, %v1469
      %v1776 = vsel %vm1753, %v1743, %v1471
      %v1777 = vsel %vm1753, %v1744, %v1473
      %v1778 = vsel %vm1753, %v1745, %v1475
      %v1779 = vsel %vm1753, %v1746, %v1477
      %v1780 = vsel %vm1753, %v1747, %v1479
      %v1781 = vsel %vm1753, %v1748, %v1481
      %v1782 = vsel %vm1753, %v1749, %v1483
      %v1783 = vsel %vm1753, %v1750, %v1485
      %v1784 = vsel %vm1753, %v1751, %v1487
      %v1785 = vsel %vm1753, %v1752, %v1489
      %v1786 = vld [vmem:[%s1] sm:$0xff]
      %v1787 = vld [vmem:[%s1 + $0x8] sm:$0xff]
      %v1788 = vld [vmem:[%s1 + $0x10] sm:$0xff]
      %v1789 = vld [vmem:[%s1 + $0x18] sm:$0xff]
      %v1790 = vld [vmem:[%s1 + $0x20] sm:$0xf]
      %vm1791 = vcmask 293888
      %v1793 = vsel %vm1791, %v1754, 0
      %v1796 = vsel %vm1791, %v1755, 0
      %v1799 = vsel %vm1791, %v1756, 0
      %v1802 = vsel %vm1791, %v1757, 0
      %v1805 = vsel %vm1791, %v1758, 0
      %v1808 = vsel %vm1791, %v1759, 0
      %v1811 = vsel %vm1791, %v1760, 0
      %v1814 = vsel %vm1791, %v1761, 0
      %v1817 = vsel %vm1791, %v1762, 0
      %v1820 = vsel %vm1791, %v1763, 0
      %v1823 = vsel %vm1791, %v1764, 0
      %v1826 = vsel %vm1791, %v1765, 0
      %v1829 = vsel %vm1791, %v1766, 0
      %v1832 = vsel %vm1791, %v1767, 0
      %v1835 = vsel %vm1791, %v1768, 0
      %v1838 = vsel %vm1791, %v1769, 0
      %v1841 = vsel %vm1791, %v1770, 0
      %v1844 = vsel %vm1791, %v1771, 0
      %v1847 = vsel %vm1791, %v1772, 0
      %v1850 = vsel %vm1791, %v1773, 0
      %v1853 = vsel %vm1791, %v1774, 0
      %v1856 = vsel %vm1791, %v1775, 0
      %v1859 = vsel %vm1791, %v1776, 0
      %v1862 = vsel %vm1791, %v1777, 0
      %v1865 = vsel %vm1791, %v1778, 0
      %v1868 = vsel %vm1791, %v1779, 0
      %v1871 = vsel %vm1791, %v1780, 0
      %v1874 = vsel %vm1791, %v1781, 0
      %v1877 = vsel %vm1791, %v1782, 0
      %v1880 = vsel %vm1791, %v1783, 0
      %v1883 = vsel %vm1791, %v1784, 0
      %v1886 = vsel %vm1791, %v1785, 0
      %vm1888 = vcmask 1043456
      %v1890 = vsel %vm1888, %v1790, 0
      %1892 = vmatprep.subr.mxu0 0.0
      %1893 = vmatpush1.msra.mxu0 0.0
      %1894 = vmatprep.subr.mxu0 0.0
      %1895 = vmatpush1.msra.mxu0 0.0
      %1896 = vmatprep.subr.mxu0 0.0
      %1897 = vmatpush1.msra.mxu0 0.0
      %1898 = vmatprep.subr.mxu0 0.0
      %1899 = vmatpush1.msra.mxu0 0.0
      %1900 = vmatprep.subr.mxu0 0.0
      %1901 = vmatpush1.msra.mxu0 0.0
      %1902 = vmatprep.subr.mxu0 0.0
      %1903 = vmatpush1.msra.mxu0 0.0
      %1904 = vmatprep.subr.mxu0 0.0
      %1905 = vmatpush1.msra.mxu0 0.0
      %1906 = vmatprep.subr.mxu0 0.0
      %1907 = vmatpush1.msra.mxu0 0.0
      %1908 = vmatprep.subr.mxu0 0.0
      %1909 = vmatpush1.msra.mxu0 0.0
      %1910 = vmatprep.subr.mxu0 0.0
      %1911 = vmatpush1.msra.mxu0 0.0
      %1912 = vmatprep.subr.mxu0 0.0
      %1913 = vmatpush1.msra.mxu0 0.0
      %1914 = vmatprep.subr.mxu0 0.0
      %1915 = vmatpush1.msra.mxu0 %v1890
      %1916 = vmatprep.subr.mxu0 0.0
      %1917 = vmatpush1.msra.mxu0 %v1789
      %1918 = vmatprep.subr.mxu0 0.0
      %1919 = vmatpush1.msra.mxu0 %v1788
      %1920 = vmatprep.subr.mxu0 0.0
      %1921 = vmatpush1.msra.mxu0 %v1787
      %1922 = vmatprep.subr.mxu0 0.0
      %1923 = vmatpush1.msra.mxu0 %v1786
      %1924 = vmatprep.subr.mxu0 0.0
      %1925 = vmatpush2.msra.mxu0 0.0
      %1926 = vmatprep.subr.mxu0 0.0
      %1927 = vmatpush2.msra.mxu0 0.0
      %1928 = vmatprep.subr.mxu0 0.0
      %1929 = vmatpush2.msra.mxu0 0.0
      %1930 = vmatprep.subr.mxu0 0.0
      %1931 = vmatpush2.msra.mxu0 0.0
      %1932 = vmatprep.subr.mxu0 0.0
      %1933 = vmatpush2.msra.mxu0 0.0
      %1934 = vmatprep.subr.mxu0 0.0
      %1935 = vmatpush2.msra.mxu0 0.0
      %1936 = vmatprep.subr.mxu0 0.0
      %1937 = vmatpush2.msra.mxu0 0.0
      %1938 = vmatprep.subr.mxu0 0.0
      %1939 = vmatpush2.msra.mxu0 0.0
      %1940 = vmatprep.subr.mxu0 0.0
      %1941 = vmatpush2.msra.mxu0 0.0
      %1942 = vmatprep.subr.mxu0 0.0
      %1943 = vmatpush2.msra.mxu0 0.0
      %1944 = vmatprep.subr.mxu0 0.0
      %1945 = vmatpush2.msra.mxu0 0.0
      %1946 = vmatprep.subr.mxu0 0.0
      %1947 = vmatpush2.msra.mxu0 0.0
      %1948 = vmatprep.subr.mxu0 0.0
      %1949 = vmatpush2.msra.mxu0 0.0
      %1950 = vmatprep.subr.mxu0 0.0
      %1951 = vmatpush2.msra.mxu0 0.0
      %1952 = vmatprep.subr.mxu0 0.0
      %1953 = vmatpush2.msra.mxu0 0.0
      %1954 = vmatprep.subr.mxu0 0.0
      %1955 = vmatpush2.msra.mxu0 0.0
      %1956 = vmatprep.mubr.f32.mxu0 0.0
      %1957 = vmatmul.mubr.f32.gmra.mxu0 %v1793
      %v1958 = vpop.f32.mrf.mxu0
      %v1959 = vadd.f32 0.0, %v1958
      %v1960 = vpop.f32.mrf.mxu0
      %1961 = vmatprep.mubr.f32.mxu0 0.0
      %1962 = vmatmul.mubr.f32.gmra.mxu0 %v1796
      %v1963 = vpop.f32.mrf.mxu0
      %v1964 = vadd.f32 0.0, %v1963
      %v1965 = vpop.f32.mrf.mxu0
      %1966 = vmatprep.mubr.f32.mxu0 0.0
      %1967 = vmatmul.mubr.f32.gmra.mxu0 %v1799
      %v1968 = vpop.f32.mrf.mxu0
      %v1969 = vadd.f32 0.0, %v1968
      %v1970 = vpop.f32.mrf.mxu0
      %1971 = vmatprep.mubr.f32.mxu0 0.0
      %1972 = vmatmul.mubr.f32.gmra.mxu0 %v1802
      %v1973 = vpop.f32.mrf.mxu0
      %v1974 = vadd.f32 0.0, %v1973
      %v1975 = vpop.f32.mrf.mxu0
      %1976 = vmatprep.mubr.f32.mxu0 0.0
      %1977 = vmatmul.mubr.f32.gmra.mxu0 %v1805
      %v1978 = vpop.f32.mrf.mxu0
      %v1979 = vadd.f32 0.0, %v1978
      %v1980 = vpop.f32.mrf.mxu0
      %1981 = vmatprep.mubr.f32.mxu0 0.0
      %1982 = vmatmul.mubr.f32.gmra.mxu0 %v1808
      %v1983 = vpop.f32.mrf.mxu0
      %v1984 = vadd.f32 0.0, %v1983
      %v1985 = vpop.f32.mrf.mxu0
      %1986 = vmatprep.mubr.f32.mxu0 0.0
      %1987 = vmatmul.mubr.f32.gmra.mxu0 %v1811
      %v1988 = vpop.f32.mrf.mxu0
      %v1989 = vadd.f32 0.0, %v1988
      %v1990 = vpop.f32.mrf.mxu0
      %1991 = vmatprep.mubr.f32.mxu0 0.0
      %1992 = vmatmul.mubr.f32.gmra.mxu0 %v1814
      %v1993 = vpop.f32.mrf.mxu0
      %v1994 = vadd.f32 0.0, %v1993
      %v1995 = vpop.f32.mrf.mxu0
      %1996 = vmatprep.mubr.f32.mxu0 0.0
      %1997 = vmatmul.mubr.f32.gmra.mxu0 %v1817
      %v1998 = vpop.f32.mrf.mxu0
      %v1999 = vadd.f32 0.0, %v1998
      %v2000 = vpop.f32.mrf.mxu0
      %2001 = vmatprep.mubr.f32.mxu0 0.0
      %2002 = vmatmul.mubr.f32.gmra.mxu0 %v1820
      %v2003 = vpop.f32.mrf.mxu0
      %v2004 = vadd.f32 0.0, %v2003
      %v2005 = vpop.f32.mrf.mxu0
      %2006 = vmatprep.mubr.f32.mxu0 0.0
      %2007 = vmatmul.mubr.f32.gmra.mxu0 %v1823
      %v2008 = vpop.f32.mrf.mxu0
      %v2009 = vadd.f32 0.0, %v2008
      %v2010 = vpop.f32.mrf.mxu0
      %2011 = vmatprep.mubr.f32.mxu0 0.0
      %2012 = vmatmul.mubr.f32.gmra.mxu0 %v1826
      %v2013 = vpop.f32.mrf.mxu0
      %v2014 = vadd.f32 0.0, %v2013
      %v2015 = vpop.f32.mrf.mxu0
      %2016 = vmatprep.mubr.f32.mxu0 0.0
      %2017 = vmatmul.mubr.f32.gmra.mxu0 %v1829
      %v2018 = vpop.f32.mrf.mxu0
      %v2019 = vadd.f32 0.0, %v2018
      %v2020 = vpop.f32.mrf.mxu0
      %2021 = vmatprep.mubr.f32.mxu0 0.0
      %2022 = vmatmul.mubr.f32.gmra.mxu0 %v1832
      %v2023 = vpop.f32.mrf.mxu0
      %v2024 = vadd.f32 0.0, %v2023
      %v2025 = vpop.f32.mrf.mxu0
      %2026 = vmatprep.mubr.f32.mxu0 0.0
      %2027 = vmatmul.mubr.f32.gmra.mxu0 %v1835
      %v2028 = vpop.f32.mrf.mxu0
      %v2029 = vadd.f32 0.0, %v2028
      %v2030 = vpop.f32.mrf.mxu0
      %2031 = vmatprep.mubr.f32.mxu0 0.0
      %2032 = vmatmul.mubr.f32.gmra.mxu0 %v1838
      %v2033 = vpop.f32.mrf.mxu0
      %v2034 = vadd.f32 0.0, %v2033
      %v2035 = vpop.f32.mrf.mxu0
      %2036 = vmatprep.mubr.f32.mxu0 0.0
      %2037 = vmatmul.mubr.f32.gmra.mxu0 %v1841
      %v2038 = vpop.f32.mrf.mxu0
      %v2039 = vadd.f32 0.0, %v2038
      %v2040 = vpop.f32.mrf.mxu0
      %2041 = vmatprep.mubr.f32.mxu0 0.0
      %2042 = vmatmul.mubr.f32.gmra.mxu0 %v1844
      %v2043 = vpop.f32.mrf.mxu0
      %v2044 = vadd.f32 0.0, %v2043
      %v2045 = vpop.f32.mrf.mxu0
      %2046 = vmatprep.mubr.f32.mxu0 0.0
      %2047 = vmatmul.mubr.f32.gmra.mxu0 %v1847
      %v2048 = vpop.f32.mrf.mxu0
      %v2049 = vadd.f32 0.0, %v2048
      %v2050 = vpop.f32.mrf.mxu0
      %2051 = vmatprep.mubr.f32.mxu0 0.0
      %2052 = vmatmul.mubr.f32.gmra.mxu0 %v1850
      %v2053 = vpop.f32.mrf.mxu0
      %v2054 = vadd.f32 0.0, %v2053
      %v2055 = vpop.f32.mrf.mxu0
      %2056 = vmatprep.mubr.f32.mxu0 0.0
      %2057 = vmatmul.mubr.f32.gmra.mxu0 %v1853
      %v2058 = vpop.f32.mrf.mxu0
      %v2059 = vadd.f32 0.0, %v2058
      %v2060 = vpop.f32.mrf.mxu0
      %2061 = vmatprep.mubr.f32.mxu0 0.0
      %2062 = vmatmul.mubr.f32.gmra.mxu0 %v1856
      %v2063 = vpop.f32.mrf.mxu0
      %v2064 = vadd.f32 0.0, %v2063
      %v2065 = vpop.f32.mrf.mxu0
      %2066 = vmatprep.mubr.f32.mxu0 0.0
      %2067 = vmatmul.mubr.f32.gmra.mxu0 %v1859
      %v2068 = vpop.f32.mrf.mxu0
      %v2069 = vadd.f32 0.0, %v2068
      %v2070 = vpop.f32.mrf.mxu0
      %2071 = vmatprep.mubr.f32.mxu0 0.0
      %2072 = vmatmul.mubr.f32.gmra.mxu0 %v1862
      %v2073 = vpop.f32.mrf.mxu0
      %v2074 = vadd.f32 0.0, %v2073
      %v2075 = vpop.f32.mrf.mxu0
      %2076 = vmatprep.mubr.f32.mxu0 0.0
      %2077 = vmatmul.mubr.f32.gmra.mxu0 %v1865
      %v2078 = vpop.f32.mrf.mxu0
      %v2079 = vadd.f32 0.0, %v2078
      %v2080 = vpop.f32.mrf.mxu0
      %2081 = vmatprep.mubr.f32.mxu0 0.0
      %2082 = vmatmul.mubr.f32.gmra.mxu0 %v1868
      %v2083 = vpop.f32.mrf.mxu0
      %v2084 = vadd.f32 0.0, %v2083
      %v2085 = vpop.f32.mrf.mxu0
      %2086 = vmatprep.mubr.f32.mxu0 0.0
      %2087 = vmatmul.mubr.f32.gmra.mxu0 %v1871
      %v2088 = vpop.f32.mrf.mxu0
      %v2089 = vadd.f32 0.0, %v2088
      %v2090 = vpop.f32.mrf.mxu0
      %2091 = vmatprep.mubr.f32.mxu0 0.0
      %2092 = vmatmul.mubr.f32.gmra.mxu0 %v1874
      %v2093 = vpop.f32.mrf.mxu0
      %v2094 = vadd.f32 0.0, %v2093
      %v2095 = vpop.f32.mrf.mxu0
      %2096 = vmatprep.mubr.f32.mxu0 0.0
      %2097 = vmatmul.mubr.f32.gmra.mxu0 %v1877
      %v2098 = vpop.f32.mrf.mxu0
      %v2099 = vadd.f32 0.0, %v2098
      %v2100 = vpop.f32.mrf.mxu0
      %2101 = vmatprep.mubr.f32.mxu0 0.0
      %2102 = vmatmul.mubr.f32.gmra.mxu0 %v1880
      %v2103 = vpop.f32.mrf.mxu0
      %v2104 = vadd.f32 0.0, %v2103
      %v2105 = vpop.f32.mrf.mxu0
      %2106 = vmatprep.mubr.f32.mxu0 0.0
      %2107 = vmatmul.mubr.f32.gmra.mxu0 %v1883
      %v2108 = vpop.f32.mrf.mxu0
      %v2109 = vadd.f32 0.0, %v2108
      %v2110 = vpop.f32.mrf.mxu0
      %2111 = vmatprep.mubr.f32.mxu0 0.0
      %2112 = vmatmul.mubr.f32.gmra.mxu0 %v1886
      %v2113 = vpop.f32.mrf.mxu0
      %v2114 = vadd.f32 0.0, %v2113
      %v2115 = vpop.f32.mrf.mxu0
      %2116 = vdwg.mxu0
      %v2117 = vmax.f32 %v1959, 0.0
      %v2118 = vmax.f32 %v1964, 0.0
      %v2119 = vmax.f32 %v1969, 0.0
      %v2120 = vmax.f32 %v1974, 0.0
      %v2121 = vmax.f32 %v1979, 0.0
      %v2122 = vmax.f32 %v1984, 0.0
      %v2123 = vmax.f32 %v1989, 0.0
      %v2124 = vmax.f32 %v1994, 0.0
      %v2125 = vmax.f32 %v1999, 0.0
      %v2126 = vmax.f32 %v2004, 0.0
      %v2127 = vmax.f32 %v2009, 0.0
      %v2128 = vmax.f32 %v2014, 0.0
      %v2129 = vmax.f32 %v2019, 0.0
      %v2130 = vmax.f32 %v2024, 0.0
      %v2131 = vmax.f32 %v2029, 0.0
      %v2132 = vmax.f32 %v2034, 0.0
      %v2133 = vmax.f32 %v2039, 0.0
      %v2134 = vmax.f32 %v2044, 0.0
      %v2135 = vmax.f32 %v2049, 0.0
      %v2136 = vmax.f32 %v2054, 0.0
      %v2137 = vmax.f32 %v2059, 0.0
      %v2138 = vmax.f32 %v2064, 0.0
      %v2139 = vmax.f32 %v2069, 0.0
      %v2140 = vmax.f32 %v2074, 0.0
      %v2141 = vmax.f32 %v2079, 0.0
      %v2142 = vmax.f32 %v2084, 0.0
      %v2143 = vmax.f32 %v2089, 0.0
      %v2144 = vmax.f32 %v2094, 0.0
      %v2145 = vmax.f32 %v2099, 0.0
      %v2146 = vmax.f32 %v2104, 0.0
      %v2147 = vmax.f32 %v2109, 0.0
      %v2148 = vmax.f32 %v2114, 0.0
      %p2149 = scmp.eq.s32.totalorder %s19, 0
      %p2150 = scmp.eq.s32.totalorder %s20, 0
      %p2151 = pnand %p2149, %p2150
      %p2152 = pneg %p2151
      // Predicated region
      $region37: #{base_conv_forward.1} parent=35 // pred_check
        _
      $region38: #{base_conv_forward.1} parent=35 // pred_check_branch
        %2154 = sbr.rel (%p2151) target = $region40
      $region39: #{base_conv_forward.1} parent=35 // pred_region
        %vm2155 = vcmask 57344
        %2156 = vst.msk [vmem:[#allocation2] sm:$0x1] %vm2155, 0.0
        %2157 = vst.msk [vmem:[#allocation3] sm:$0x1] %vm2155, 0.0
      $region40: #{base_conv_forward.1} parent=35 // pred_fallthru
        _
      // Predicated region
      $region41: #{base_conv_forward.1} parent=35 // pred_check
        %p2158 = pneg %p2149
      $region42: #{base_conv_forward.1} parent=35 // pred_check_branch
        %2160 = sbr.rel (%p2158) target = $region44
      $region43: #{base_conv_forward.1} parent=35 // pred_region
        %v2161 = vld [vmem:[#allocation2] sm:$0x1]
        %2162 = vmatprep.subr.mxu0 0.0
        %2163 = vmatpush1.msra.mxu0 %v2132
        %2164 = vmatprep.subr.mxu0 0.0
        %2165 = vmatpush1.msra.mxu0 %v2131
        %2166 = vmatprep.subr.mxu0 0.0
        %2167 = vmatpush1.msra.mxu0 %v2130
        %2168 = vmatprep.subr.mxu0 0.0
        %2169 = vmatpush1.msra.mxu0 %v2129
        %2170 = vmatprep.subr.mxu0 0.0
        %2171 = vmatpush1.msra.mxu0 %v2128
        %2172 = vmatprep.subr.mxu0 0.0
        %2173 = vmatpush1.msra.mxu0 %v2127
        %2174 = vmatprep.subr.mxu0 0.0
        %2175 = vmatpush1.msra.mxu0 %v2126
        %2176 = vmatprep.subr.mxu0 0.0
        %2177 = vmatpush1.msra.mxu0 %v2125
        %2178 = vmatprep.subr.mxu0 0.0
        %2179 = vmatpush1.msra.mxu0 %v2124
        %2180 = vmatprep.subr.mxu0 0.0
        %2181 = vmatpush1.msra.mxu0 %v2123
        %2182 = vmatprep.subr.mxu0 0.0
        %2183 = vmatpush1.msra.mxu0 %v2122
        %2184 = vmatprep.subr.mxu0 0.0
        %2185 = vmatpush1.msra.mxu0 %v2121
        %2186 = vmatprep.subr.mxu0 0.0
        %2187 = vmatpush1.msra.mxu0 %v2120
        %2188 = vmatprep.subr.mxu0 0.0
        %2189 = vmatpush1.msra.mxu0 %v2119
        %2190 = vmatprep.subr.mxu0 0.0
        %2191 = vmatpush1.msra.mxu0 %v2118
        %2192 = vmatprep.subr.mxu0 0.0
        %2193 = vmatpush1.msra.mxu0 %v2117
        %2194 = vmatprep.subr.mxu0 0.0
        %2195 = vmatpush2.msra.mxu0 %v2148
        %2196 = vmatprep.subr.mxu0 0.0
        %2197 = vmatpush2.msra.mxu0 %v2147
        %2198 = vmatprep.subr.mxu0 0.0
        %2199 = vmatpush2.msra.mxu0 %v2146
        %2200 = vmatprep.subr.mxu0 0.0
        %2201 = vmatpush2.msra.mxu0 %v2145
        %2202 = vmatprep.subr.mxu0 0.0
        %2203 = vmatpush2.msra.mxu0 %v2144
        %2204 = vmatprep.subr.mxu0 0.0
        %2205 = vmatpush2.msra.mxu0 %v2143
        %2206 = vmatprep.subr.mxu0 0.0
        %2207 = vmatpush2.msra.mxu0 %v2142
        %2208 = vmatprep.subr.mxu0 0.0
        %2209 = vmatpush2.msra.mxu0 %v2141
        %2210 = vmatprep.subr.mxu0 0.0
        %2211 = vmatpush2.msra.mxu0 %v2140
        %2212 = vmatprep.subr.mxu0 0.0
        %2213 = vmatpush2.msra.mxu0 %v2139
        %2214 = vmatprep.subr.mxu0 0.0
        %2215 = vmatpush2.msra.mxu0 %v2138
        %2216 = vmatprep.subr.mxu0 0.0
        %2217 = vmatpush2.msra.mxu0 %v2137
        %2218 = vmatprep.subr.mxu0 0.0
        %2219 = vmatpush2.msra.mxu0 %v2136
        %2220 = vmatprep.subr.mxu0 0.0
        %2221 = vmatpush2.msra.mxu0 %v2135
        %2222 = vmatprep.subr.mxu0 0.0
        %2223 = vmatpush2.msra.mxu0 %v2134
        %2224 = vmatprep.subr.mxu0 0.0
        %2225 = vmatpush2.msra.mxu0 %v2133
        %2226 = vmatprep.mubr.f32.mxu0 1.0
        %2227 = vmatmul.mubr.f32.gmra.mxu0 1.0
        %v2228 = vpop.f32.mrf.mxu0
        %v2229 = vadd.f32 0.0, %v2228
        %v2230 = vpop.f32.mrf.mxu0
        %2231 = vdwg.mxu0
        %v2232 = vadd.f32 %v2161, %v2229
        %vm2233 = vcmask 57344
        %2234 = vst.msk [vmem:[#allocation2] sm:$0x1] %vm2233, %v2232
        %v2235 = vld [vmem:[#allocation3] sm:$0x1]
        %v2236 = vmul.f32 %v2117, %v2117
        %v2237 = vmul.f32 %v2118, %v2118
        %v2238 = vmul.f32 %v2119, %v2119
        %v2239 = vmul.f32 %v2120, %v2120
        %v2240 = vmul.f32 %v2121, %v2121
        %v2241 = vmul.f32 %v2122, %v2122
        %v2242 = vmul.f32 %v2123, %v2123
        %v2243 = vmul.f32 %v2124, %v2124
        %v2244 = vmul.f32 %v2125, %v2125
        %v2245 = vmul.f32 %v2126, %v2126
        %v2246 = vmul.f32 %v2127, %v2127
        %v2247 = vmul.f32 %v2128, %v2128
        %v2248 = vmul.f32 %v2129, %v2129
        %v2249 = vmul.f32 %v2130, %v2130
        %v2250 = vmul.f32 %v2131, %v2131
        %v2251 = vmul.f32 %v2132, %v2132
        %v2252 = vmul.f32 %v2133, %v2133
        %v2253 = vmul.f32 %v2134, %v2134
        %v2254 = vmul.f32 %v2135, %v2135
        %v2255 = vmul.f32 %v2136, %v2136
        %v2256 = vmul.f32 %v2137, %v2137
        %v2257 = vmul.f32 %v2138, %v2138
        %v2258 = vmul.f32 %v2139, %v2139
        %v2259 = vmul.f32 %v2140, %v2140
        %v2260 = vmul.f32 %v2141, %v2141
        %v2261 = vmul.f32 %v2142, %v2142
        %v2262 = vmul.f32 %v2143, %v2143
        %v2263 = vmul.f32 %v2144, %v2144
        %v2264 = vmul.f32 %v2145, %v2145
        %v2265 = vmul.f32 %v2146, %v2146
        %v2266 = vmul.f32 %v2147, %v2147
        %v2267 = vmul.f32 %v2148, %v2148
        %2268 = vmatprep.subr.mxu0 0.0
        %2269 = vmatpush1.msra.mxu0 %v2251
        %2270 = vmatprep.subr.mxu0 0.0
        %2271 = vmatpush1.msra.mxu0 %v2250
        %2272 = vmatprep.subr.mxu0 0.0
        %2273 = vmatpush1.msra.mxu0 %v2249
        %2274 = vmatprep.subr.mxu0 0.0
        %2275 = vmatpush1.msra.mxu0 %v2248
        %2276 = vmatprep.subr.mxu0 0.0
        %2277 = vmatpush1.msra.mxu0 %v2247
        %2278 = vmatprep.subr.mxu0 0.0
        %2279 = vmatpush1.msra.mxu0 %v2246
        %2280 = vmatprep.subr.mxu0 0.0
        %2281 = vmatpush1.msra.mxu0 %v2245
        %2282 = vmatprep.subr.mxu0 0.0
        %2283 = vmatpush1.msra.mxu0 %v2244
        %2284 = vmatprep.subr.mxu0 0.0
        %2285 = vmatpush1.msra.mxu0 %v2243
        %2286 = vmatprep.subr.mxu0 0.0
        %2287 = vmatpush1.msra.mxu0 %v2242
        %2288 = vmatprep.subr.mxu0 0.0
        %2289 = vmatpush1.msra.mxu0 %v2241
        %2290 = vmatprep.subr.mxu0 0.0
        %2291 = vmatpush1.msra.mxu0 %v2240
        %2292 = vmatprep.subr.mxu0 0.0
        %2293 = vmatpush1.msra.mxu0 %v2239
        %2294 = vmatprep.subr.mxu0 0.0
        %2295 = vmatpush1.msra.mxu0 %v2238
        %2296 = vmatprep.subr.mxu0 0.0
        %2297 = vmatpush1.msra.mxu0 %v2237
        %2298 = vmatprep.subr.mxu0 0.0
        %2299 = vmatpush1.msra.mxu0 %v2236
        %2300 = vmatprep.subr.mxu0 0.0
        %2301 = vmatpush2.msra.mxu0 %v2267
        %2302 = vmatprep.subr.mxu0 0.0
        %2303 = vmatpush2.msra.mxu0 %v2266
        %2304 = vmatprep.subr.mxu0 0.0
        %2305 = vmatpush2.msra.mxu0 %v2265
        %2306 = vmatprep.subr.mxu0 0.0
        %2307 = vmatpush2.msra.mxu0 %v2264
        %2308 = vmatprep.subr.mxu0 0.0
        %2309 = vmatpush2.msra.mxu0 %v2263
        %2310 = vmatprep.subr.mxu0 0.0
        %2311 = vmatpush2.msra.mxu0 %v2262
        %2312 = vmatprep.subr.mxu0 0.0
        %2313 = vmatpush2.msra.mxu0 %v2261
        %2314 = vmatprep.subr.mxu0 0.0
        %2315 = vmatpush2.msra.mxu0 %v2260
        %2316 = vmatprep.subr.mxu0 0.0
        %2317 = vmatpush2.msra.mxu0 %v2259
        %2318 = vmatprep.subr.mxu0 0.0
        %2319 = vmatpush2.msra.mxu0 %v2258
        %2320 = vmatprep.subr.mxu0 0.0
        %2321 = vmatpush2.msra.mxu0 %v2257
        %2322 = vmatprep.subr.mxu0 0.0
        %2323 = vmatpush2.msra.mxu0 %v2256
        %2324 = vmatprep.subr.mxu0 0.0
        %2325 = vmatpush2.msra.mxu0 %v2255
        %2326 = vmatprep.subr.mxu0 0.0
        %2327 = vmatpush2.msra.mxu0 %v2254
        %2328 = vmatprep.subr.mxu0 0.0
        %2329 = vmatpush2.msra.mxu0 %v2253
        %2330 = vmatprep.subr.mxu0 0.0
        %2331 = vmatpush2.msra.mxu0 %v2252
        %2332 = vmatprep.mubr.f32.mxu0 1.0
        %2333 = vmatmul.mubr.f32.gmra.mxu0 1.0
        %v2334 = vpop.f32.mrf.mxu0
        %v2335 = vadd.f32 0.0, %v2334
        %v2336 = vpop.f32.mrf.mxu0
        %2337 = vdwg.mxu0
        %v2338 = vadd.f32 %v2235, %v2335
        %2339 = vst.msk [vmem:[#allocation3] sm:$0x1] %vm2233, %v2338
      $region44: #{base_conv_forward.1} parent=35 // pred_fallthru
        _
      %p2340 = scmp.eq.s32.totalorder %s19, 1
      // Predicated region
      $region45: #{base_conv_forward.1} parent=35 // pred_check
        %p2341 = pneg %p2340
      $region46: #{base_conv_forward.1} parent=35 // pred_check_branch
        %2343 = sbr.rel (%p2341) target = $region48
      $region47: #{base_conv_forward.1} parent=35 // pred_region
        %v2344 = vld [vmem:[#allocation2] sm:$0x1]
        %v2345 = vmul.f32 %v2344, 0.001953125
        %v2346 = vld [vmem:[#allocation3] sm:$0x1]
        %v2347 = vmul.f32 %v2346, 0.001953125
        %v2348 = vmul.f32 %v2345, %v2345
        %v2349 = vsub.f32 %v2347, %v2348
        %v2350 = vld [vmem:[%s2] sm:$0x1]
        %v2351 = vadd.f32 %v2349, 1e-05
        %v2352 = vrsqrt.pop %v2351
        %v2353 = vmul.f32 %v2350, %v2352
        %v2354 = vld [vmem:[%s3] sm:$0x1]
        %v2355 = vmul.f32 %v2345, %v2353
        %v2356 = vsub.f32 %v2354, %v2355
        %v2358 = vlaneseq
        %v2359 = vshrl.u32 %v2358, 7
        %v2360 = vsub.s32 0, %v2359
        %v2361 = vrot.slane %v2353, %v2360
        %v2363 = vmul.f32 %v2117, %v2361
        %v2364 = vmul.f32 %v2118, %v2361
        %v2365 = vmul.f32 %v2119, %v2361
        %v2366 = vmul.f32 %v2120, %v2361
        %v2367 = vmul.f32 %v2121, %v2361
        %v2368 = vmul.f32 %v2122, %v2361
        %v2369 = vmul.f32 %v2123, %v2361
        %v2370 = vmul.f32 %v2124, %v2361
        %v2371 = vmul.f32 %v2125, %v2361
        %v2372 = vmul.f32 %v2126, %v2361
        %v2373 = vmul.f32 %v2127, %v2361
        %v2374 = vmul.f32 %v2128, %v2361
        %v2375 = vmul.f32 %v2129, %v2361
        %v2376 = vmul.f32 %v2130, %v2361
        %v2377 = vmul.f32 %v2131, %v2361
        %v2378 = vmul.f32 %v2132, %v2361
        %v2379 = vmul.f32 %v2133, %v2361
        %v2380 = vmul.f32 %v2134, %v2361
        %v2381 = vmul.f32 %v2135, %v2361
        %v2382 = vmul.f32 %v2136, %v2361
        %v2383 = vmul.f32 %v2137, %v2361
        %v2384 = vmul.f32 %v2138, %v2361
        %v2385 = vmul.f32 %v2139, %v2361
        %v2386 = vmul.f32 %v2140, %v2361
        %v2387 = vmul.f32 %v2141, %v2361
        %v2388 = vmul.f32 %v2142, %v2361
        %v2389 = vmul.f32 %v2143, %v2361
        %v2390 = vmul.f32 %v2144, %v2361
        %v2391 = vmul.f32 %v2145, %v2361
        %v2392 = vmul.f32 %v2146, %v2361
        %v2393 = vmul.f32 %v2147, %v2361
        %v2394 = vmul.f32 %v2148, %v2361
        %v2396 = vlaneseq
        %v2397 = vshrl.u32 %v2396, 7
        %v2398 = vsub.s32 0, %v2397
        %v2399 = vrot.slane %v2356, %v2398
        %v2401 = vadd.f32 %v2363, %v2399
        %v2402 = vadd.f32 %v2364, %v2399
        %v2403 = vadd.f32 %v2365, %v2399
        %v2404 = vadd.f32 %v2366, %v2399
        %v2405 = vadd.f32 %v2367, %v2399
        %v2406 = vadd.f32 %v2368, %v2399
        %v2407 = vadd.f32 %v2369, %v2399
        %v2408 = vadd.f32 %v2370, %v2399
        %v2409 = vadd.f32 %v2371, %v2399
        %v2410 = vadd.f32 %v2372, %v2399
        %v2411 = vadd.f32 %v2373, %v2399
        %v2412 = vadd.f32 %v2374, %v2399
        %v2413 = vadd.f32 %v2375, %v2399
        %v2414 = vadd.f32 %v2376, %v2399
        %v2415 = vadd.f32 %v2377, %v2399
        %v2416 = vadd.f32 %v2378, %v2399
        %v2417 = vadd.f32 %v2379, %v2399
        %v2418 = vadd.f32 %v2380, %v2399
        %v2419 = vadd.f32 %v2381, %v2399
        %v2420 = vadd.f32 %v2382, %v2399
        %v2421 = vadd.f32 %v2383, %v2399
        %v2422 = vadd.f32 %v2384, %v2399
        %v2423 = vadd.f32 %v2385, %v2399
        %v2424 = vadd.f32 %v2386, %v2399
        %v2425 = vadd.f32 %v2387, %v2399
        %v2426 = vadd.f32 %v2388, %v2399
        %v2427 = vadd.f32 %v2389, %v2399
        %v2428 = vadd.f32 %v2390, %v2399
        %v2429 = vadd.f32 %v2391, %v2399
        %v2430 = vadd.f32 %v2392, %v2399
        %v2431 = vadd.f32 %v2393, %v2399
        %v2432 = vadd.f32 %v2394, %v2399
        %v2465 = vcombine.high %v2401, %v2401
        %v2467 = vunpack.c.l.s4 1983009808
        %v2468 = vunpack.c.0.s8 %v2467
        %v2469 = vlaneseq
        %v2470 = vshrl.u32 %v2469, 7
        %v2471 = vsub.s32 %v2468, %v2470
        %v2472 = vrot.slane %v2401, %v2471
        %v2474 = vunpack.c.l.s4 1983009808
        %v2475 = vunpack.c.0.s8 %v2474
        %v2476 = vlaneseq
        %v2477 = vshrl.u32 %v2476, 7
        %v2478 = vsub.s32 %v2475, %v2477
        %v2479 = vrot.slane %v2465, %v2478
        %v2480 = vcombine.high %v2472, %v2472
        %v2481 = vcombine.high %v2479, %v2479
        %v2482 = vcombine.high %v2402, %v2402
        %v2484 = vunpack.c.l.s4 1983009808
        %v2485 = vunpack.c.0.s8 %v2484
        %v2486 = vlaneseq
        %v2487 = vshrl.u32 %v2486, 7
        %v2488 = vsub.s32 %v2485, %v2487
        %v2489 = vrot.slane %v2402, %v2488
        %v2491 = vunpack.c.l.s4 1983009808
        %v2492 = vunpack.c.0.s8 %v2491
        %v2493 = vlaneseq
        %v2494 = vshrl.u32 %v2493, 7
        %v2495 = vsub.s32 %v2492, %v2494
        %v2496 = vrot.slane %v2482, %v2495
        %v2497 = vcombine.high %v2489, %v2489
        %v2498 = vcombine.high %v2496, %v2496
        %v2499 = vcombine.high %v2403, %v2403
        %v2501 = vunpack.c.l.s4 1983009808
        %v2502 = vunpack.c.0.s8 %v2501
        %v2503 = vlaneseq
        %v2504 = vshrl.u32 %v2503, 7
        %v2505 = vsub.s32 %v2502, %v2504
        %v2506 = vrot.slane %v2403, %v2505
        %v2508 = vunpack.c.l.s4 1983009808
        %v2509 = vunpack.c.0.s8 %v2508
        %v2510 = vlaneseq
        %v2511 = vshrl.u32 %v2510, 7
        %v2512 = vsub.s32 %v2509, %v2511
        %v2513 = vrot.slane %v2499, %v2512
        %v2514 = vcombine.high %v2506, %v2506
        %v2515 = vcombine.high %v2513, %v2513
        %v2516 = vcombine.high %v2404, %v2404
        %v2518 = vunpack.c.l.s4 1983009808
        %v2519 = vunpack.c.0.s8 %v2518
        %v2520 = vlaneseq
        %v2521 = vshrl.u32 %v2520, 7
        %v2522 = vsub.s32 %v2519, %v2521
        %v2523 = vrot.slane %v2404, %v2522
        %v2525 = vunpack.c.l.s4 1983009808
        %v2526 = vunpack.c.0.s8 %v2525
        %v2527 = vlaneseq
        %v2528 = vshrl.u32 %v2527, 7
        %v2529 = vsub.s32 %v2526, %v2528
        %v2530 = vrot.slane %v2516, %v2529
        %v2531 = vcombine.high %v2523, %v2523
        %v2532 = vcombine.high %v2530, %v2530
        %v2533 = vcombine.high %v2405, %v2405
        %v2535 = vunpack.c.l.s4 1983009808
        %v2536 = vunpack.c.0.s8 %v2535
        %v2537 = vlaneseq
        %v2538 = vshrl.u32 %v2537, 7
        %v2539 = vsub.s32 %v2536, %v2538
        %v2540 = vrot.slane %v2405, %v2539
        %v2542 = vunpack.c.l.s4 1983009808
        %v2543 = vunpack.c.0.s8 %v2542
        %v2544 = vlaneseq
        %v2545 = vshrl.u32 %v2544, 7
        %v2546 = vsub.s32 %v2543, %v2545
        %v2547 = vrot.slane %v2533, %v2546
        %v2548 = vcombine.high %v2540, %v2540
        %v2549 = vcombine.high %v2547, %v2547
        %v2550 = vcombine.high %v2406, %v2406
        %v2552 = vunpack.c.l.s4 1983009808
        %v2553 = vunpack.c.0.s8 %v2552
        %v2554 = vlaneseq
        %v2555 = vshrl.u32 %v2554, 7
        %v2556 = vsub.s32 %v2553, %v2555
        %v2557 = vrot.slane %v2406, %v2556
        %v2559 = vunpack.c.l.s4 1983009808
        %v2560 = vunpack.c.0.s8 %v2559
        %v2561 = vlaneseq
        %v2562 = vshrl.u32 %v2561, 7
        %v2563 = vsub.s32 %v2560, %v2562
        %v2564 = vrot.slane %v2550, %v2563
        %v2565 = vcombine.high %v2557, %v2557
        %v2566 = vcombine.high %v2564, %v2564
        %v2567 = vcombine.high %v2407, %v2407
        %v2569 = vunpack.c.l.s4 1983009808
        %v2570 = vunpack.c.0.s8 %v2569
        %v2571 = vlaneseq
        %v2572 = vshrl.u32 %v2571, 7
        %v2573 = vsub.s32 %v2570, %v2572
        %v2574 = vrot.slane %v2407, %v2573
        %v2576 = vunpack.c.l.s4 1983009808
        %v2577 = vunpack.c.0.s8 %v2576
        %v2578 = vlaneseq
        %v2579 = vshrl.u32 %v2578, 7
        %v2580 = vsub.s32 %v2577, %v2579
        %v2581 = vrot.slane %v2567, %v2580
        %v2582 = vcombine.high %v2574, %v2574
        %v2583 = vcombine.high %v2581, %v2581
        %v2584 = vcombine.high %v2408, %v2408
        %v2586 = vunpack.c.l.s4 1983009808
        %v2587 = vunpack.c.0.s8 %v2586
        %v2588 = vlaneseq
        %v2589 = vshrl.u32 %v2588, 7
        %v2590 = vsub.s32 %v2587, %v2589
        %v2591 = vrot.slane %v2408, %v2590
        %v2593 = vunpack.c.l.s4 1983009808
        %v2594 = vunpack.c.0.s8 %v2593
        %v2595 = vlaneseq
        %v2596 = vshrl.u32 %v2595, 7
        %v2597 = vsub.s32 %v2594, %v2596
        %v2598 = vrot.slane %v2584, %v2597
        %v2599 = vcombine.high %v2591, %v2591
        %v2600 = vcombine.high %v2598, %v2598
        %v2601 = vcombine.high %v2409, %v2409
        %v2603 = vunpack.c.l.s4 1983009808
        %v2604 = vunpack.c.0.s8 %v2603
        %v2605 = vlaneseq
        %v2606 = vshrl.u32 %v2605, 7
        %v2607 = vsub.s32 %v2604, %v2606
        %v2608 = vrot.slane %v2409, %v2607
        %v2610 = vunpack.c.l.s4 1983009808
        %v2611 = vunpack.c.0.s8 %v2610
        %v2612 = vlaneseq
        %v2613 = vshrl.u32 %v2612, 7
        %v2614 = vsub.s32 %v2611, %v2613
        %v2615 = vrot.slane %v2601, %v2614
        %v2616 = vcombine.high %v2608, %v2608
        %v2617 = vcombine.high %v2615, %v2615
        %v2618 = vcombine.high %v2410, %v2410
        %v2620 = vunpack.c.l.s4 1983009808
        %v2621 = vunpack.c.0.s8 %v2620
        %v2622 = vlaneseq
        %v2623 = vshrl.u32 %v2622, 7
        %v2624 = vsub.s32 %v2621, %v2623
        %v2625 = vrot.slane %v2410, %v2624
        %v2627 = vunpack.c.l.s4 1983009808
        %v2628 = vunpack.c.0.s8 %v2627
        %v2629 = vlaneseq
        %v2630 = vshrl.u32 %v2629, 7
        %v2631 = vsub.s32 %v2628, %v2630
        %v2632 = vrot.slane %v2618, %v2631
        %v2633 = vcombine.high %v2625, %v2625
        %v2634 = vcombine.high %v2632, %v2632
        %v2635 = vcombine.high %v2411, %v2411
        %v2637 = vunpack.c.l.s4 1983009808
        %v2638 = vunpack.c.0.s8 %v2637
        %v2639 = vlaneseq
        %v2640 = vshrl.u32 %v2639, 7
        %v2641 = vsub.s32 %v2638, %v2640
        %v2642 = vrot.slane %v2411, %v2641
        %v2644 = vunpack.c.l.s4 1983009808
        %v2645 = vunpack.c.0.s8 %v2644
        %v2646 = vlaneseq
        %v2647 = vshrl.u32 %v2646, 7
        %v2648 = vsub.s32 %v2645, %v2647
        %v2649 = vrot.slane %v2635, %v2648
        %v2650 = vcombine.high %v2642, %v2642
        %v2651 = vcombine.high %v2649, %v2649
        %v2652 = vcombine.high %v2412, %v2412
        %v2654 = vunpack.c.l.s4 1983009808
        %v2655 = vunpack.c.0.s8 %v2654
        %v2656 = vlaneseq
        %v2657 = vshrl.u32 %v2656, 7
        %v2658 = vsub.s32 %v2655, %v2657
        %v2659 = vrot.slane %v2412, %v2658
        %v2661 = vunpack.c.l.s4 1983009808
        %v2662 = vunpack.c.0.s8 %v2661
        %v2663 = vlaneseq
        %v2664 = vshrl.u32 %v2663, 7
        %v2665 = vsub.s32 %v2662, %v2664
        %v2666 = vrot.slane %v2652, %v2665
        %v2667 = vcombine.high %v2659, %v2659
        %v2668 = vcombine.high %v2666, %v2666
        %v2669 = vcombine.high %v2413, %v2413
        %v2671 = vunpack.c.l.s4 1983009808
        %v2672 = vunpack.c.0.s8 %v2671
        %v2673 = vlaneseq
        %v2674 = vshrl.u32 %v2673, 7
        %v2675 = vsub.s32 %v2672, %v2674
        %v2676 = vrot.slane %v2413, %v2675
        %v2678 = vunpack.c.l.s4 1983009808
        %v2679 = vunpack.c.0.s8 %v2678
        %v2680 = vlaneseq
        %v2681 = vshrl.u32 %v2680, 7
        %v2682 = vsub.s32 %v2679, %v2681
        %v2683 = vrot.slane %v2669, %v2682
        %v2684 = vcombine.high %v2676, %v2676
        %v2685 = vcombine.high %v2683, %v2683
        %v2686 = vcombine.high %v2414, %v2414
        %v2688 = vunpack.c.l.s4 1983009808
        %v2689 = vunpack.c.0.s8 %v2688
        %v2690 = vlaneseq
        %v2691 = vshrl.u32 %v2690, 7
        %v2692 = vsub.s32 %v2689, %v2691
        %v2693 = vrot.slane %v2414, %v2692
        %v2695 = vunpack.c.l.s4 1983009808
        %v2696 = vunpack.c.0.s8 %v2695
        %v2697 = vlaneseq
        %v2698 = vshrl.u32 %v2697, 7
        %v2699 = vsub.s32 %v2696, %v2698
        %v2700 = vrot.slane %v2686, %v2699
        %v2701 = vcombine.high %v2693, %v2693
        %v2702 = vcombine.high %v2700, %v2700
        %v2703 = vcombine.high %v2415, %v2415
        %v2705 = vunpack.c.l.s4 1983009808
        %v2706 = vunpack.c.0.s8 %v2705
        %v2707 = vlaneseq
        %v2708 = vshrl.u32 %v2707, 7
        %v2709 = vsub.s32 %v2706, %v2708
        %v2710 = vrot.slane %v2415, %v2709
        %v2712 = vunpack.c.l.s4 1983009808
        %v2713 = vunpack.c.0.s8 %v2712
        %v2714 = vlaneseq
        %v2715 = vshrl.u32 %v2714, 7
        %v2716 = vsub.s32 %v2713, %v2715
        %v2717 = vrot.slane %v2703, %v2716
        %v2718 = vcombine.high %v2710, %v2710
        %v2719 = vcombine.high %v2717, %v2717
        %v2720 = vcombine.high %v2416, %v2416
        %v2722 = vunpack.c.l.s4 1983009808
        %v2723 = vunpack.c.0.s8 %v2722
        %v2724 = vlaneseq
        %v2725 = vshrl.u32 %v2724, 7
        %v2726 = vsub.s32 %v2723, %v2725
        %v2727 = vrot.slane %v2416, %v2726
        %v2729 = vunpack.c.l.s4 1983009808
        %v2730 = vunpack.c.0.s8 %v2729
        %v2731 = vlaneseq
        %v2732 = vshrl.u32 %v2731, 7
        %v2733 = vsub.s32 %v2730, %v2732
        %v2734 = vrot.slane %v2720, %v2733
        %v2735 = vcombine.high %v2727, %v2727
        %v2736 = vcombine.high %v2734, %v2734
        %v2737 = vcombine.high %v2417, %v2417
        %v2739 = vunpack.c.l.s4 1983009808
        %v2740 = vunpack.c.0.s8 %v2739
        %v2741 = vlaneseq
        %v2742 = vshrl.u32 %v2741, 7
        %v2743 = vsub.s32 %v2740, %v2742
        %v2744 = vrot.slane %v2417, %v2743
        %v2746 = vunpack.c.l.s4 1983009808
        %v2747 = vunpack.c.0.s8 %v2746
        %v2748 = vlaneseq
        %v2749 = vshrl.u32 %v2748, 7
        %v2750 = vsub.s32 %v2747, %v2749
        %v2751 = vrot.slane %v2737, %v2750
        %v2752 = vcombine.high %v2744, %v2744
        %v2753 = vcombine.high %v2751, %v2751
        %v2754 = vcombine.high %v2418, %v2418
        %v2756 = vunpack.c.l.s4 1983009808
        %v2757 = vunpack.c.0.s8 %v2756
        %v2758 = vlaneseq
        %v2759 = vshrl.u32 %v2758, 7
        %v2760 = vsub.s32 %v2757, %v2759
        %v2761 = vrot.slane %v2418, %v2760
        %v2763 = vunpack.c.l.s4 1983009808
        %v2764 = vunpack.c.0.s8 %v2763
        %v2765 = vlaneseq
        %v2766 = vshrl.u32 %v2765, 7
        %v2767 = vsub.s32 %v2764, %v2766
        %v2768 = vrot.slane %v2754, %v2767
        %v2769 = vcombine.high %v2761, %v2761
        %v2770 = vcombine.high %v2768, %v2768
        %v2771 = vcombine.high %v2419, %v2419
        %v2773 = vunpack.c.l.s4 1983009808
        %v2774 = vunpack.c.0.s8 %v2773
        %v2775 = vlaneseq
        %v2776 = vshrl.u32 %v2775, 7
        %v2777 = vsub.s32 %v2774, %v2776
        %v2778 = vrot.slane %v2419, %v2777
        %v2780 = vunpack.c.l.s4 1983009808
        %v2781 = vunpack.c.0.s8 %v2780
        %v2782 = vlaneseq
        %v2783 = vshrl.u32 %v2782, 7
        %v2784 = vsub.s32 %v2781, %v2783
        %v2785 = vrot.slane %v2771, %v2784
        %v2786 = vcombine.high %v2778, %v2778
        %v2787 = vcombine.high %v2785, %v2785
        %v2788 = vcombine.high %v2420, %v2420
        %v2790 = vunpack.c.l.s4 1983009808
        %v2791 = vunpack.c.0.s8 %v2790
        %v2792 = vlaneseq
        %v2793 = vshrl.u32 %v2792, 7
        %v2794 = vsub.s32 %v2791, %v2793
        %v2795 = vrot.slane %v2420, %v2794
        %v2797 = vunpack.c.l.s4 1983009808
        %v2798 = vunpack.c.0.s8 %v2797
        %v2799 = vlaneseq
        %v2800 = vshrl.u32 %v2799, 7
        %v2801 = vsub.s32 %v2798, %v2800
        %v2802 = vrot.slane %v2788, %v2801
        %v2803 = vcombine.high %v2795, %v2795
        %v2804 = vcombine.high %v2802, %v2802
        %v2805 = vcombine.high %v2421, %v2421
        %v2807 = vunpack.c.l.s4 1983009808
        %v2808 = vunpack.c.0.s8 %v2807
        %v2809 = vlaneseq
        %v2810 = vshrl.u32 %v2809, 7
        %v2811 = vsub.s32 %v2808, %v2810
        %v2812 = vrot.slane %v2421, %v2811
        %v2814 = vunpack.c.l.s4 1983009808
        %v2815 = vunpack.c.0.s8 %v2814
        %v2816 = vlaneseq
        %v2817 = vshrl.u32 %v2816, 7
        %v2818 = vsub.s32 %v2815, %v2817
        %v2819 = vrot.slane %v2805, %v2818
        %v2820 = vcombine.high %v2812, %v2812
        %v2821 = vcombine.high %v2819, %v2819
        %v2822 = vcombine.high %v2422, %v2422
        %v2824 = vunpack.c.l.s4 1983009808
        %v2825 = vunpack.c.0.s8 %v2824
        %v2826 = vlaneseq
        %v2827 = vshrl.u32 %v2826, 7
        %v2828 = vsub.s32 %v2825, %v2827
        %v2829 = vrot.slane %v2422, %v2828
        %v2831 = vunpack.c.l.s4 1983009808
        %v2832 = vunpack.c.0.s8 %v2831
        %v2833 = vlaneseq
        %v2834 = vshrl.u32 %v2833, 7
        %v2835 = vsub.s32 %v2832, %v2834
        %v2836 = vrot.slane %v2822, %v2835
        %v2837 = vcombine.high %v2829, %v2829
        %v2838 = vcombine.high %v2836, %v2836
        %v2839 = vcombine.high %v2423, %v2423
        %v2841 = vunpack.c.l.s4 1983009808
        %v2842 = vunpack.c.0.s8 %v2841
        %v2843 = vlaneseq
        %v2844 = vshrl.u32 %v2843, 7
        %v2845 = vsub.s32 %v2842, %v2844
        %v2846 = vrot.slane %v2423, %v2845
        %v2848 = vunpack.c.l.s4 1983009808
        %v2849 = vunpack.c.0.s8 %v2848
        %v2850 = vlaneseq
        %v2851 = vshrl.u32 %v2850, 7
        %v2852 = vsub.s32 %v2849, %v2851
        %v2853 = vrot.slane %v2839, %v2852
        %v2854 = vcombine.high %v2846, %v2846
        %v2855 = vcombine.high %v2853, %v2853
        %v2856 = vcombine.high %v2424, %v2424
        %v2858 = vunpack.c.l.s4 1983009808
        %v2859 = vunpack.c.0.s8 %v2858
        %v2860 = vlaneseq
        %v2861 = vshrl.u32 %v2860, 7
        %v2862 = vsub.s32 %v2859, %v2861
        %v2863 = vrot.slane %v2424, %v2862
        %v2865 = vunpack.c.l.s4 1983009808
        %v2866 = vunpack.c.0.s8 %v2865
        %v2867 = vlaneseq
        %v2868 = vshrl.u32 %v2867, 7
        %v2869 = vsub.s32 %v2866, %v2868
        %v2870 = vrot.slane %v2856, %v2869
        %v2871 = vcombine.high %v2863, %v2863
        %v2872 = vcombine.high %v2870, %v2870
        %v2873 = vcombine.high %v2425, %v2425
        %v2875 = vunpack.c.l.s4 1983009808
        %v2876 = vunpack.c.0.s8 %v2875
        %v2877 = vlaneseq
        %v2878 = vshrl.u32 %v2877, 7
        %v2879 = vsub.s32 %v2876, %v2878
        %v2880 = vrot.slane %v2425, %v2879
        %v2882 = vunpack.c.l.s4 1983009808
        %v2883 = vunpack.c.0.s8 %v2882
        %v2884 = vlaneseq
        %v2885 = vshrl.u32 %v2884, 7
        %v2886 = vsub.s32 %v2883, %v2885
        %v2887 = vrot.slane %v2873, %v2886
        %v2888 = vcombine.high %v2880, %v2880
        %v2889 = vcombine.high %v2887, %v2887
        %v2890 = vcombine.high %v2426, %v2426
        %v2892 = vunpack.c.l.s4 1983009808
        %v2893 = vunpack.c.0.s8 %v2892
        %v2894 = vlaneseq
        %v2895 = vshrl.u32 %v2894, 7
        %v2896 = vsub.s32 %v2893, %v2895
        %v2897 = vrot.slane %v2426, %v2896
        %v2899 = vunpack.c.l.s4 1983009808
        %v2900 = vunpack.c.0.s8 %v2899
        %v2901 = vlaneseq
        %v2902 = vshrl.u32 %v2901, 7
        %v2903 = vsub.s32 %v2900, %v2902
        %v2904 = vrot.slane %v2890, %v2903
        %v2905 = vcombine.high %v2897, %v2897
        %v2906 = vcombine.high %v2904, %v2904
        %v2907 = vcombine.high %v2427, %v2427
        %v2909 = vunpack.c.l.s4 1983009808
        %v2910 = vunpack.c.0.s8 %v2909
        %v2911 = vlaneseq
        %v2912 = vshrl.u32 %v2911, 7
        %v2913 = vsub.s32 %v2910, %v2912
        %v2914 = vrot.slane %v2427, %v2913
        %v2916 = vunpack.c.l.s4 1983009808
        %v2917 = vunpack.c.0.s8 %v2916
        %v2918 = vlaneseq
        %v2919 = vshrl.u32 %v2918, 7
        %v2920 = vsub.s32 %v2917, %v2919
        %v2921 = vrot.slane %v2907, %v2920
        %v2922 = vcombine.high %v2914, %v2914
        %v2923 = vcombine.high %v2921, %v2921
        %v2924 = vcombine.high %v2428, %v2428
        %v2926 = vunpack.c.l.s4 1983009808
        %v2927 = vunpack.c.0.s8 %v2926
        %v2928 = vlaneseq
        %v2929 = vshrl.u32 %v2928, 7
        %v2930 = vsub.s32 %v2927, %v2929
        %v2931 = vrot.slane %v2428, %v2930
        %v2933 = vunpack.c.l.s4 1983009808
        %v2934 = vunpack.c.0.s8 %v2933
        %v2935 = vlaneseq
        %v2936 = vshrl.u32 %v2935, 7
        %v2937 = vsub.s32 %v2934, %v2936
        %v2938 = vrot.slane %v2924, %v2937
        %v2939 = vcombine.high %v2931, %v2931
        %v2940 = vcombine.high %v2938, %v2938
        %v2941 = vcombine.high %v2429, %v2429
        %v2943 = vunpack.c.l.s4 1983009808
        %v2944 = vunpack.c.0.s8 %v2943
        %v2945 = vlaneseq
        %v2946 = vshrl.u32 %v2945, 7
        %v2947 = vsub.s32 %v2944, %v2946
        %v2948 = vrot.slane %v2429, %v2947
        %v2950 = vunpack.c.l.s4 1983009808
        %v2951 = vunpack.c.0.s8 %v2950
        %v2952 = vlaneseq
        %v2953 = vshrl.u32 %v2952, 7
        %v2954 = vsub.s32 %v2951, %v2953
        %v2955 = vrot.slane %v2941, %v2954
        %v2956 = vcombine.high %v2948, %v2948
        %v2957 = vcombine.high %v2955, %v2955
        %v2958 = vcombine.high %v2430, %v2430
        %v2960 = vunpack.c.l.s4 1983009808
        %v2961 = vunpack.c.0.s8 %v2960
        %v2962 = vlaneseq
        %v2963 = vshrl.u32 %v2962, 7
        %v2964 = vsub.s32 %v2961, %v2963
        %v2965 = vrot.slane %v2430, %v2964
        %v2967 = vunpack.c.l.s4 1983009808
        %v2968 = vunpack.c.0.s8 %v2967
        %v2969 = vlaneseq
        %v2970 = vshrl.u32 %v2969, 7
        %v2971 = vsub.s32 %v2968, %v2970
        %v2972 = vrot.slane %v2958, %v2971
        %v2973 = vcombine.high %v2965, %v2965
        %v2974 = vcombine.high %v2972, %v2972
        %v2975 = vcombine.high %v2431, %v2431
        %v2977 = vunpack.c.l.s4 1983009808
        %v2978 = vunpack.c.0.s8 %v2977
        %v2979 = vlaneseq
        %v2980 = vshrl.u32 %v2979, 7
        %v2981 = vsub.s32 %v2978, %v2980
        %v2982 = vrot.slane %v2431, %v2981
        %v2984 = vunpack.c.l.s4 1983009808
        %v2985 = vunpack.c.0.s8 %v2984
        %v2986 = vlaneseq
        %v2987 = vshrl.u32 %v2986, 7
        %v2988 = vsub.s32 %v2985, %v2987
        %v2989 = vrot.slane %v2975, %v2988
        %v2990 = vcombine.high %v2982, %v2982
        %v2991 = vcombine.high %v2989, %v2989
        %v2992 = vcombine.high %v2432, %v2432
        %v2994 = vunpack.c.l.s4 1983009808
        %v2995 = vunpack.c.0.s8 %v2994
        %v2996 = vlaneseq
        %v2997 = vshrl.u32 %v2996, 7
        %v2998 = vsub.s32 %v2995, %v2997
        %v2999 = vrot.slane %v2432, %v2998
        %v3001 = vunpack.c.l.s4 1983009808
        %v3002 = vunpack.c.0.s8 %v3001
        %v3003 = vlaneseq
        %v3004 = vshrl.u32 %v3003, 7
        %v3005 = vsub.s32 %v3002, %v3004
        %v3006 = vrot.slane %v2992, %v3005
        %v3007 = vcombine.high %v2999, %v2999
        %v3008 = vcombine.high %v3006, %v3006
        %v3137 = vrot.slane %v2472, 7
        %v3138 = vrot.slane %v3137, 2
        %v3139 = vrot.slane %v2480, 7
        %v3140 = vrot.slane %v3139, 2
        %v3141 = vrot.slane %v2479, 7
        %v3142 = vrot.slane %v3141, 2
        %v3143 = vrot.slane %v2481, 7
        %v3144 = vrot.slane %v3143, 2
        %v3145 = vrot.slane %v2489, 7
        %v3146 = vrot.slane %v3145, 2
        %v3147 = vrot.slane %v2497, 7
        %v3148 = vrot.slane %v3147, 2
        %v3149 = vrot.slane %v2496, 7
        %v3150 = vrot.slane %v3149, 2
        %v3151 = vrot.slane %v2498, 7
        %v3152 = vrot.slane %v3151, 2
        %v3153 = vrot.slane %v2540, 7
        %v3154 = vrot.slane %v3153, 2
        %v3155 = vrot.slane %v2548, 7
        %v3156 = vrot.slane %v3155, 2
        %v3157 = vrot.slane %v2547, 7
        %v3158 = vrot.slane %v3157, 2
        %v3159 = vrot.slane %v2549, 7
        %v3160 = vrot.slane %v3159, 2
        %v3161 = vrot.slane %v2557, 7
        %v3162 = vrot.slane %v3161, 2
        %v3163 = vrot.slane %v2565, 7
        %v3164 = vrot.slane %v3163, 2
        %v3165 = vrot.slane %v2564, 7
        %v3166 = vrot.slane %v3165, 2
        %v3167 = vrot.slane %v2566, 7
        %v3168 = vrot.slane %v3167, 2
        %v3169 = vrot.slane %v2608, 7
        %v3170 = vrot.slane %v3169, 2
        %v3171 = vrot.slane %v2616, 7
        %v3172 = vrot.slane %v3171, 2
        %v3173 = vrot.slane %v2615, 7
        %v3174 = vrot.slane %v3173, 2
        %v3175 = vrot.slane %v2617, 7
        %v3176 = vrot.slane %v3175, 2
        %v3177 = vrot.slane %v2625, 7
        %v3178 = vrot.slane %v3177, 2
        %v3179 = vrot.slane %v2633, 7
        %v3180 = vrot.slane %v3179, 2
        %v3181 = vrot.slane %v2632, 7
        %v3182 = vrot.slane %v3181, 2
        %v3183 = vrot.slane %v2634, 7
        %v3184 = vrot.slane %v3183, 2
        %v3185 = vrot.slane %v2676, 7
        %v3186 = vrot.slane %v3185, 2
        %v3187 = vrot.slane %v2684, 7
        %v3188 = vrot.slane %v3187, 2
        %v3189 = vrot.slane %v2683, 7
        %v3190 = vrot.slane %v3189, 2
        %v3191 = vrot.slane %v2685, 7
        %v3192 = vrot.slane %v3191, 2
        %v3193 = vrot.slane %v2693, 7
        %v3194 = vrot.slane %v3193, 2
        %v3195 = vrot.slane %v2701, 7
        %v3196 = vrot.slane %v3195, 2
        %v3197 = vrot.slane %v2700, 7
        %v3198 = vrot.slane %v3197, 2
        %v3199 = vrot.slane %v2702, 7
        %v3200 = vrot.slane %v3199, 2
        %v3201 = vrot.slane %v2744, 7
        %v3202 = vrot.slane %v3201, 2
        %v3203 = vrot.slane %v2752, 7
        %v3204 = vrot.slane %v3203, 2
        %v3205 = vrot.slane %v2751, 7
        %v3206 = vrot.slane %v3205, 2
        %v3207 = vrot.slane %v2753, 7
        %v3208 = vrot.slane %v3207, 2
        %v3209 = vrot.slane %v2761, 7
        %v3210 = vrot.slane %v3209, 2
        %v3211 = vrot.slane %v2769, 7
        %v3212 = vrot.slane %v3211, 2
        %v3213 = vrot.slane %v2768, 7
        %v3214 = vrot.slane %v3213, 2
        %v3215 = vrot.slane %v2770, 7
        %v3216 = vrot.slane %v3215, 2
        %v3217 = vrot.slane %v2812, 7
        %v3218 = vrot.slane %v3217, 2
        %v3219 = vrot.slane %v2820, 7
        %v3220 = vrot.slane %v3219, 2
        %v3221 = vrot.slane %v2819, 7
        %v3222 = vrot.slane %v3221, 2
        %v3223 = vrot.slane %v2821, 7
        %v3224 = vrot.slane %v3223, 2
        %v3225 = vrot.slane %v2829, 7
        %v3226 = vrot.slane %v3225, 2
        %v3227 = vrot.slane %v2837, 7
        %v3228 = vrot.slane %v3227, 2
        %v3229 = vrot.slane %v2836, 7
        %v3230 = vrot.slane %v3229, 2
        %v3231 = vrot.slane %v2838, 7
        %v3232 = vrot.slane %v3231, 2
        %v3233 = vrot.slane %v2880, 7
        %v3234 = vrot.slane %v3233, 2
        %v3235 = vrot.slane %v2888, 7
        %v3236 = vrot.slane %v3235, 2
        %v3237 = vrot.slane %v2887, 7
        %v3238 = vrot.slane %v3237, 2
        %v3239 = vrot.slane %v2889, 7
        %v3240 = vrot.slane %v3239, 2
        %v3241 = vrot.slane %v2897, 7
        %v3242 = vrot.slane %v3241, 2
        %v3243 = vrot.slane %v2905, 7
        %v3244 = vrot.slane %v3243, 2
        %v3245 = vrot.slane %v2904, 7
        %v3246 = vrot.slane %v3245, 2
        %v3247 = vrot.slane %v2906, 7
        %v3248 = vrot.slane %v3247, 2
        %v3249 = vrot.slane %v2948, 7
        %v3250 = vrot.slane %v3249, 2
        %v3251 = vrot.slane %v2956, 7
        %v3252 = vrot.slane %v3251, 2
        %v3253 = vrot.slane %v2955, 7
        %v3254 = vrot.slane %v3253, 2
        %v3255 = vrot.slane %v2957, 7
        %v3256 = vrot.slane %v3255, 2
        %v3257 = vrot.slane %v2965, 7
        %v3258 = vrot.slane %v3257, 2
        %v3259 = vrot.slane %v2973, 7
        %v3260 = vrot.slane %v3259, 2
        %v3261 = vrot.slane %v2972, 7
        %v3262 = vrot.slane %v3261, 2
        %v3263 = vrot.slane %v2974, 7
        %v3264 = vrot.slane %v3263, 2
        %v3329 = vmax.f32 %v2472, %v3138
        %v3330 = vmax.f32 %v2480, %v3140
        %v3331 = vmax.f32 %v2479, %v3142
        %v3332 = vmax.f32 %v2481, %v3144
        %v3333 = vmax.f32 %v2489, %v3146
        %v3334 = vmax.f32 %v2497, %v3148
        %v3335 = vmax.f32 %v2496, %v3150
        %v3336 = vmax.f32 %v2498, %v3152
        %v3337 = vmax.f32 %v2540, %v3154
        %v3338 = vmax.f32 %v2548, %v3156
        %v3339 = vmax.f32 %v2547, %v3158
        %v3340 = vmax.f32 %v2549, %v3160
        %v3341 = vmax.f32 %v2557, %v3162
        %v3342 = vmax.f32 %v2565, %v3164
        %v3343 = vmax.f32 %v2564, %v3166
        %v3344 = vmax.f32 %v2566, %v3168
        %v3345 = vmax.f32 %v2608, %v3170
        %v3346 = vmax.f32 %v2616, %v3172
        %v3347 = vmax.f32 %v2615, %v3174
        %v3348 = vmax.f32 %v2617, %v3176
        %v3349 = vmax.f32 %v2625, %v3178
        %v3350 = vmax.f32 %v2633, %v3180
        %v3351 = vmax.f32 %v2632, %v3182
        %v3352 = vmax.f32 %v2634, %v3184
        %v3353 = vmax.f32 %v2676, %v3186
        %v3354 = vmax.f32 %v2684, %v3188
        %v3355 = vmax.f32 %v2683, %v3190
        %v3356 = vmax.f32 %v2685, %v3192
        %v3357 = vmax.f32 %v2693, %v3194
        %v3358 = vmax.f32 %v2701, %v3196
        %v3359 = vmax.f32 %v2700, %v3198
        %v3360 = vmax.f32 %v2702, %v3200
        %v3361 = vmax.f32 %v2744, %v3202
        %v3362 = vmax.f32 %v2752, %v3204
        %v3363 = vmax.f32 %v2751, %v3206
        %v3364 = vmax.f32 %v2753, %v3208
        %v3365 = vmax.f32 %v2761, %v3210
        %v3366 = vmax.f32 %v2769, %v3212
        %v3367 = vmax.f32 %v2768, %v3214
        %v3368 = vmax.f32 %v2770, %v3216
        %v3369 = vmax.f32 %v2812, %v3218
        %v3370 = vmax.f32 %v2820, %v3220
        %v3371 = vmax.f32 %v2819, %v3222
        %v3372 = vmax.f32 %v2821, %v3224
        %v3373 = vmax.f32 %v2829, %v3226
        %v3374 = vmax.f32 %v2837, %v3228
        %v3375 = vmax.f32 %v2836, %v3230
        %v3376 = vmax.f32 %v2838, %v3232
        %v3377 = vmax.f32 %v2880, %v3234
        %v3378 = vmax.f32 %v2888, %v3236
        %v3379 = vmax.f32 %v2887, %v3238
        %v3380 = vmax.f32 %v2889, %v3240
        %v3381 = vmax.f32 %v2897, %v3242
        %v3382 = vmax.f32 %v2905, %v3244
        %v3383 = vmax.f32 %v2904, %v3246
        %v3384 = vmax.f32 %v2906, %v3248
        %v3385 = vmax.f32 %v2948, %v3250
        %v3386 = vmax.f32 %v2956, %v3252
        %v3387 = vmax.f32 %v2955, %v3254
        %v3388 = vmax.f32 %v2957, %v3256
        %v3389 = vmax.f32 %v2965, %v3258
        %v3390 = vmax.f32 %v2973, %v3260
        %v3391 = vmax.f32 %v2972, %v3262
        %v3392 = vmax.f32 %v2974, %v3264
        %v3393 = vmax.f32 %v3329, %v2506
        %v3394 = vmax.f32 %v3330, %v2514
        %v3395 = vmax.f32 %v3331, %v2513
        %v3396 = vmax.f32 %v3332, %v2515
        %v3397 = vmax.f32 %v3333, %v2523
        %v3398 = vmax.f32 %v3334, %v2531
        %v3399 = vmax.f32 %v3335, %v2530
        %v3400 = vmax.f32 %v3336, %v2532
        %v3401 = vmax.f32 %v3337, %v2574
        %v3402 = vmax.f32 %v3338, %v2582
        %v3403 = vmax.f32 %v3339, %v2581
        %v3404 = vmax.f32 %v3340, %v2583
        %v3405 = vmax.f32 %v3341, %v2591
        %v3406 = vmax.f32 %v3342, %v2599
        %v3407 = vmax.f32 %v3343, %v2598
        %v3408 = vmax.f32 %v3344, %v2600
        %v3409 = vmax.f32 %v3345, %v2642
        %v3410 = vmax.f32 %v3346, %v2650
        %v3411 = vmax.f32 %v3347, %v2649
        %v3412 = vmax.f32 %v3348, %v2651
        %v3413 = vmax.f32 %v3349, %v2659
        %v3414 = vmax.f32 %v3350, %v2667
        %v3415 = vmax.f32 %v3351, %v2666
        %v3416 = vmax.f32 %v3352, %v2668
        %v3417 = vmax.f32 %v3353, %v2710
        %v3418 = vmax.f32 %v3354, %v2718
        %v3419 = vmax.f32 %v3355, %v2717
        %v3420 = vmax.f32 %v3356, %v2719
        %v3421 = vmax.f32 %v3357, %v2727
        %v3422 = vmax.f32 %v3358, %v2735
        %v3423 = vmax.f32 %v3359, %v2734
        %v3424 = vmax.f32 %v3360, %v2736
        %v3425 = vmax.f32 %v3361, %v2778
        %v3426 = vmax.f32 %v3362, %v2786
        %v3427 = vmax.f32 %v3363, %v2785
        %v3428 = vmax.f32 %v3364, %v2787
        %v3429 = vmax.f32 %v3365, %v2795
        %v3430 = vmax.f32 %v3366, %v2803
        %v3431 = vmax.f32 %v3367, %v2802
        %v3432 = vmax.f32 %v3368, %v2804
        %v3433 = vmax.f32 %v3369, %v2846
        %v3434 = vmax.f32 %v3370, %v2854
        %v3435 = vmax.f32 %v3371, %v2853
        %v3436 = vmax.f32 %v3372, %v2855
        %v3437 = vmax.f32 %v3373, %v2863
        %v3438 = vmax.f32 %v3374, %v2871
        %v3439 = vmax.f32 %v3375, %v2870
        %v3440 = vmax.f32 %v3376, %v2872
        %v3441 = vmax.f32 %v3377, %v2914
        %v3442 = vmax.f32 %v3378, %v2922
        %v3443 = vmax.f32 %v3379, %v2921
        %v3444 = vmax.f32 %v3380, %v2923
        %v3445 = vmax.f32 %v3381, %v2931
        %v3446 = vmax.f32 %v3382, %v2939
        %v3447 = vmax.f32 %v3383, %v2938
        %v3448 = vmax.f32 %v3384, %v2940
        %v3449 = vmax.f32 %v3385, %v2982
        %v3450 = vmax.f32 %v3386, %v2990
        %v3451 = vmax.f32 %v3387, %v2989
        %v3452 = vmax.f32 %v3388, %v2991
        %v3453 = vmax.f32 %v3389, %v2999
        %v3454 = vmax.f32 %v3390, %v3007
        %v3455 = vmax.f32 %v3391, %v3006
        %v3456 = vmax.f32 %v3392, %v3008
        %v3457 = vrot.slane %v2506, 7
        %v3458 = vrot.slane %v3457, 2
        %v3459 = vrot.slane %v2514, 7
        %v3460 = vrot.slane %v3459, 2
        %v3461 = vrot.slane %v2513, 7
        %v3462 = vrot.slane %v3461, 2
        %v3463 = vrot.slane %v2515, 7
        %v3464 = vrot.slane %v3463, 2
        %v3465 = vrot.slane %v2523, 7
        %v3466 = vrot.slane %v3465, 2
        %v3467 = vrot.slane %v2531, 7
        %v3468 = vrot.slane %v3467, 2
        %v3469 = vrot.slane %v2530, 7
        %v3470 = vrot.slane %v3469, 2
        %v3471 = vrot.slane %v2532, 7
        %v3472 = vrot.slane %v3471, 2
        %v3473 = vrot.slane %v2574, 7
        %v3474 = vrot.slane %v3473, 2
        %v3475 = vrot.slane %v2582, 7
        %v3476 = vrot.slane %v3475, 2
        %v3477 = vrot.slane %v2581, 7
        %v3478 = vrot.slane %v3477, 2
        %v3479 = vrot.slane %v2583, 7
        %v3480 = vrot.slane %v3479, 2
        %v3481 = vrot.slane %v2591, 7
        %v3482 = vrot.slane %v3481, 2
        %v3483 = vrot.slane %v2599, 7
        %v3484 = vrot.slane %v3483, 2
        %v3485 = vrot.slane %v2598, 7
        %v3486 = vrot.slane %v3485, 2
        %v3487 = vrot.slane %v2600, 7
        %v3488 = vrot.slane %v3487, 2
        %v3489 = vrot.slane %v2642, 7
        %v3490 = vrot.slane %v3489, 2
        %v3491 = vrot.slane %v2650, 7
        %v3492 = vrot.slane %v3491, 2
        %v3493 = vrot.slane %v2649, 7
        %v3494 = vrot.slane %v3493, 2
        %v3495 = vrot.slane %v2651, 7
        %v3496 = vrot.slane %v3495, 2
        %v3497 = vrot.slane %v2659, 7
        %v3498 = vrot.slane %v3497, 2
        %v3499 = vrot.slane %v2667, 7
        %v3500 = vrot.slane %v3499, 2
        %v3501 = vrot.slane %v2666, 7
        %v3502 = vrot.slane %v3501, 2
        %v3503 = vrot.slane %v2668, 7
        %v3504 = vrot.slane %v3503, 2
        %v3505 = vrot.slane %v2710, 7
        %v3506 = vrot.slane %v3505, 2
        %v3507 = vrot.slane %v2718, 7
        %v3508 = vrot.slane %v3507, 2
        %v3509 = vrot.slane %v2717, 7
        %v3510 = vrot.slane %v3509, 2
        %v3511 = vrot.slane %v2719, 7
        %v3512 = vrot.slane %v3511, 2
        %v3513 = vrot.slane %v2727, 7
        %v3514 = vrot.slane %v3513, 2
        %v3515 = vrot.slane %v2735, 7
        %v3516 = vrot.slane %v3515, 2
        %v3517 = vrot.slane %v2734, 7
        %v3518 = vrot.slane %v3517, 2
        %v3519 = vrot.slane %v2736, 7
        %v3520 = vrot.slane %v3519, 2
        %v3521 = vrot.slane %v2778, 7
        %v3522 = vrot.slane %v3521, 2
        %v3523 = vrot.slane %v2786, 7
        %v3524 = vrot.slane %v3523, 2
        %v3525 = vrot.slane %v2785, 7
        %v3526 = vrot.slane %v3525, 2
        %v3527 = vrot.slane %v2787, 7
        %v3528 = vrot.slane %v3527, 2
        %v3529 = vrot.slane %v2795, 7
        %v3530 = vrot.slane %v3529, 2
        %v3531 = vrot.slane %v2803, 7
        %v3532 = vrot.slane %v3531, 2
        %v3533 = vrot.slane %v2802, 7
        %v3534 = vrot.slane %v3533, 2
        %v3535 = vrot.slane %v2804, 7
        %v3536 = vrot.slane %v3535, 2
        %v3537 = vrot.slane %v2846, 7
        %v3538 = vrot.slane %v3537, 2
        %v3539 = vrot.slane %v2854, 7
        %v3540 = vrot.slane %v3539, 2
        %v3541 = vrot.slane %v2853, 7
        %v3542 = vrot.slane %v3541, 2
        %v3543 = vrot.slane %v2855, 7
        %v3544 = vrot.slane %v3543, 2
        %v3545 = vrot.slane %v2863, 7
        %v3546 = vrot.slane %v3545, 2
        %v3547 = vrot.slane %v2871, 7
        %v3548 = vrot.slane %v3547, 2
        %v3549 = vrot.slane %v2870, 7
        %v3550 = vrot.slane %v3549, 2
        %v3551 = vrot.slane %v2872, 7
        %v3552 = vrot.slane %v3551, 2
        %v3553 = vrot.slane %v2914, 7
        %v3554 = vrot.slane %v3553, 2
        %v3555 = vrot.slane %v2922, 7
        %v3556 = vrot.slane %v3555, 2
        %v3557 = vrot.slane %v2921, 7
        %v3558 = vrot.slane %v3557, 2
        %v3559 = vrot.slane %v2923, 7
        %v3560 = vrot.slane %v3559, 2
        %v3561 = vrot.slane %v2931, 7
        %v3562 = vrot.slane %v3561, 2
        %v3563 = vrot.slane %v2939, 7
        %v3564 = vrot.slane %v3563, 2
        %v3565 = vrot.slane %v2938, 7
        %v3566 = vrot.slane %v3565, 2
        %v3567 = vrot.slane %v2940, 7
        %v3568 = vrot.slane %v3567, 2
        %v3569 = vrot.slane %v2982, 7
        %v3570 = vrot.slane %v3569, 2
        %v3571 = vrot.slane %v2990, 7
        %v3572 = vrot.slane %v3571, 2
        %v3573 = vrot.slane %v2989, 7
        %v3574 = vrot.slane %v3573, 2
        %v3575 = vrot.slane %v2991, 7
        %v3576 = vrot.slane %v3575, 2
        %v3577 = vrot.slane %v2999, 7
        %v3578 = vrot.slane %v3577, 2
        %v3579 = vrot.slane %v3007, 7
        %v3580 = vrot.slane %v3579, 2
        %v3581 = vrot.slane %v3006, 7
        %v3582 = vrot.slane %v3581, 2
        %v3583 = vrot.slane %v3008, 7
        %v3584 = vrot.slane %v3583, 2
        %v3649 = vmax.f32 %v3393, %v3458
        %v3650 = vmax.f32 %v3394, %v3460
        %v3651 = vmax.f32 %v3395, %v3462
        %v3652 = vmax.f32 %v3396, %v3464
        %v3653 = vmax.f32 %v3397, %v3466
        %v3654 = vmax.f32 %v3398, %v3468
        %v3655 = vmax.f32 %v3399, %v3470
        %v3656 = vmax.f32 %v3400, %v3472
        %v3657 = vmax.f32 %v3401, %v3474
        %v3658 = vmax.f32 %v3402, %v3476
        %v3659 = vmax.f32 %v3403, %v3478
        %v3660 = vmax.f32 %v3404, %v3480
        %v3661 = vmax.f32 %v3405, %v3482
        %v3662 = vmax.f32 %v3406, %v3484
        %v3663 = vmax.f32 %v3407, %v3486
        %v3664 = vmax.f32 %v3408, %v3488
        %v3665 = vmax.f32 %v3409, %v3490
        %v3666 = vmax.f32 %v3410, %v3492
        %v3667 = vmax.f32 %v3411, %v3494
        %v3668 = vmax.f32 %v3412, %v3496
        %v3669 = vmax.f32 %v3413, %v3498
        %v3670 = vmax.f32 %v3414, %v3500
        %v3671 = vmax.f32 %v3415, %v3502
        %v3672 = vmax.f32 %v3416, %v3504
        %v3673 = vmax.f32 %v3417, %v3506
        %v3674 = vmax.f32 %v3418, %v3508
        %v3675 = vmax.f32 %v3419, %v3510
        %v3676 = vmax.f32 %v3420, %v3512
        %v3677 = vmax.f32 %v3421, %v3514
        %v3678 = vmax.f32 %v3422, %v3516
        %v3679 = vmax.f32 %v3423, %v3518
        %v3680 = vmax.f32 %v3424, %v3520
        %v3681 = vmax.f32 %v3425, %v3522
        %v3682 = vmax.f32 %v3426, %v3524
        %v3683 = vmax.f32 %v3427, %v3526
        %v3684 = vmax.f32 %v3428, %v3528
        %v3685 = vmax.f32 %v3429, %v3530
        %v3686 = vmax.f32 %v3430, %v3532
        %v3687 = vmax.f32 %v3431, %v3534
        %v3688 = vmax.f32 %v3432, %v3536
        %v3689 = vmax.f32 %v3433, %v3538
        %v3690 = vmax.f32 %v3434, %v3540
        %v3691 = vmax.f32 %v3435, %v3542
        %v3692 = vmax.f32 %v3436, %v3544
        %v3693 = vmax.f32 %v3437, %v3546
        %v3694 = vmax.f32 %v3438, %v3548
        %v3695 = vmax.f32 %v3439, %v3550
        %v3696 = vmax.f32 %v3440, %v3552
        %v3697 = vmax.f32 %v3441, %v3554
        %v3698 = vmax.f32 %v3442, %v3556
        %v3699 = vmax.f32 %v3443, %v3558
        %v3700 = vmax.f32 %v3444, %v3560
        %v3701 = vmax.f32 %v3445, %v3562
        %v3702 = vmax.f32 %v3446, %v3564
        %v3703 = vmax.f32 %v3447, %v3566
        %v3704 = vmax.f32 %v3448, %v3568
        %v3705 = vmax.f32 %v3449, %v3570
        %v3706 = vmax.f32 %v3450, %v3572
        %v3707 = vmax.f32 %v3451, %v3574
        %v3708 = vmax.f32 %v3452, %v3576
        %v3709 = vmax.f32 %v3453, %v3578
        %v3710 = vmax.f32 %v3454, %v3580
        %v3711 = vmax.f32 %v3455, %v3582
        %v3712 = vmax.f32 %v3456, %v3584
        %vm3777 = vcmask 1044484
        %v3778 = vsel %vm3777, %v3649, %v3649
        %vm3779 = vcmask 1046534
        %v3780 = vsel %vm3779, %v3649, %v3778
        %v3781 = vrot.slane %v3650, 7
        %vm3782 = vcmask 1041409
        %v3783 = vsel %vm3782, %v3781, %v3780
        %vm3784 = vcmask 1043459
        %v3785 = vsel %vm3784, %v3781, %v3783
        %vm3786 = vcmask 1045509
        %v3787 = vsel %vm3786, %v3781, %v3785
        %vm3788 = vcmask 1047559
        %v3789 = vsel %vm3788, %v3781, %v3787
        %v3790 = vsel %vm3777, %v3651, %v3651
        %v3791 = vsel %vm3779, %v3651, %v3790
        %v3792 = vrot.slane %v3652, 7
        %v3793 = vsel %vm3782, %v3792, %v3791
        %v3794 = vsel %vm3784, %v3792, %v3793
        %v3795 = vsel %vm3786, %v3792, %v3794
        %v3796 = vsel %vm3788, %v3792, %v3795
        %v3797 = vsel %vm3777, %v3653, %v3653
        %v3798 = vsel %vm3779, %v3653, %v3797
        %v3799 = vrot.slane %v3654, 7
        %v3800 = vsel %vm3782, %v3799, %v3798
        %v3801 = vsel %vm3784, %v3799, %v3800
        %v3802 = vsel %vm3786, %v3799, %v3801
        %v3803 = vsel %vm3788, %v3799, %v3802
        %v3804 = vsel %vm3777, %v3655, %v3655
        %v3805 = vsel %vm3779, %v3655, %v3804
        %v3806 = vrot.slane %v3656, 7
        %v3807 = vsel %vm3782, %v3806, %v3805
        %v3808 = vsel %vm3784, %v3806, %v3807
        %v3809 = vsel %vm3786, %v3806, %v3808
        %v3810 = vsel %vm3788, %v3806, %v3809
        %v3811 = vsel %vm3777, %v3657, %v3657
        %v3812 = vsel %vm3779, %v3657, %v3811
        %v3813 = vrot.slane %v3658, 7
        %v3814 = vsel %vm3782, %v3813, %v3812
        %v3815 = vsel %vm3784, %v3813, %v3814
        %v3816 = vsel %vm3786, %v3813, %v3815
        %v3817 = vsel %vm3788, %v3813, %v3816
        %v3818 = vsel %vm3777, %v3659, %v3659
        %v3819 = vsel %vm3779, %v3659, %v3818
        %v3820 = vrot.slane %v3660, 7
        %v3821 = vsel %vm3782, %v3820, %v3819
        %v3822 = vsel %vm3784, %v3820, %v3821
        %v3823 = vsel %vm3786, %v3820, %v3822
        %v3824 = vsel %vm3788, %v3820, %v3823
        %v3825 = vsel %vm3777, %v3661, %v3661
        %v3826 = vsel %vm3779, %v3661, %v3825
        %v3827 = vrot.slane %v3662, 7
        %v3828 = vsel %vm3782, %v3827, %v3826
        %v3829 = vsel %vm3784, %v3827, %v3828
        %v3830 = vsel %vm3786, %v3827, %v3829
        %v3831 = vsel %vm3788, %v3827, %v3830
        %v3832 = vsel %vm3777, %v3663, %v3663
        %v3833 = vsel %vm3779, %v3663, %v3832
        %v3834 = vrot.slane %v3664, 7
        %v3835 = vsel %vm3782, %v3834, %v3833
        %v3836 = vsel %vm3784, %v3834, %v3835
        %v3837 = vsel %vm3786, %v3834, %v3836
        %v3838 = vsel %vm3788, %v3834, %v3837
        %v3839 = vsel %vm3777, %v3665, %v3665
        %v3840 = vsel %vm3779, %v3665, %v3839
        %v3841 = vrot.slane %v3666, 7
        %v3842 = vsel %vm3782, %v3841, %v3840
        %v3843 = vsel %vm3784, %v3841, %v3842
        %v3844 = vsel %vm3786, %v3841, %v3843
        %v3845 = vsel %vm3788, %v3841, %v3844
        %v3846 = vsel %vm3777, %v3667, %v3667
        %v3847 = vsel %vm3779, %v3667, %v3846
        %v3848 = vrot.slane %v3668, 7
        %v3849 = vsel %vm3782, %v3848, %v3847
        %v3850 = vsel %vm3784, %v3848, %v3849
        %v3851 = vsel %vm3786, %v3848, %v3850
        %v3852 = vsel %vm3788, %v3848, %v3851
        %v3853 = vsel %vm3777, %v3669, %v3669
        %v3854 = vsel %vm3779, %v3669, %v3853
        %v3855 = vrot.slane %v3670, 7
        %v3856 = vsel %vm3782, %v3855, %v3854
        %v3857 = vsel %vm3784, %v3855, %v3856
        %v3858 = vsel %vm3786, %v3855, %v3857
        %v3859 = vsel %vm3788, %v3855, %v3858
        %v3860 = vsel %vm3777, %v3671, %v3671
        %v3861 = vsel %vm3779, %v3671, %v3860
        %v3862 = vrot.slane %v3672, 7
        %v3863 = vsel %vm3782, %v3862, %v3861
        %v3864 = vsel %vm3784, %v3862, %v3863
        %v3865 = vsel %vm3786, %v3862, %v3864
        %v3866 = vsel %vm3788, %v3862, %v3865
        %v3867 = vsel %vm3777, %v3673, %v3673
        %v3868 = vsel %vm3779, %v3673, %v3867
        %v3869 = vrot.slane %v3674, 7
        %v3870 = vsel %vm3782, %v3869, %v3868
        %v3871 = vsel %vm3784, %v3869, %v3870
        %v3872 = vsel %vm3786, %v3869, %v3871
        %v3873 = vsel %vm3788, %v3869, %v3872
        %v3874 = vsel %vm3777, %v3675, %v3675
        %v3875 = vsel %vm3779, %v3675, %v3874
        %v3876 = vrot.slane %v3676, 7
        %v3877 = vsel %vm3782, %v3876, %v3875
        %v3878 = vsel %vm3784, %v3876, %v3877
        %v3879 = vsel %vm3786, %v3876, %v3878
        %v3880 = vsel %vm3788, %v3876, %v3879
        %v3881 = vsel %vm3777, %v3677, %v3677
        %v3882 = vsel %vm3779, %v3677, %v3881
        %v3883 = vrot.slane %v3678, 7
        %v3884 = vsel %vm3782, %v3883, %v3882
        %v3885 = vsel %vm3784, %v3883, %v3884
        %v3886 = vsel %vm3786, %v3883, %v3885
        %v3887 = vsel %vm3788, %v3883, %v3886
        %v3888 = vsel %vm3777, %v3679, %v3679
        %v3889 = vsel %vm3779, %v3679, %v3888
        %v3890 = vrot.slane %v3680, 7
        %v3891 = vsel %vm3782, %v3890, %v3889
        %v3892 = vsel %vm3784, %v3890, %v3891
        %v3893 = vsel %vm3786, %v3890, %v3892
        %v3894 = vsel %vm3788, %v3890, %v3893
        %v3895 = vsel %vm3777, %v3681, %v3681
        %v3896 = vsel %vm3779, %v3681, %v3895
        %v3897 = vrot.slane %v3682, 7
        %v3898 = vsel %vm3782, %v3897, %v3896
        %v3899 = vsel %vm3784, %v3897, %v3898
        %v3900 = vsel %vm3786, %v3897, %v3899
        %v3901 = vsel %vm3788, %v3897, %v3900
        %v3902 = vsel %vm3777, %v3683, %v3683
        %v3903 = vsel %vm3779, %v3683, %v3902
        %v3904 = vrot.slane %v3684, 7
        %v3905 = vsel %vm3782, %v3904, %v3903
        %v3906 = vsel %vm3784, %v3904, %v3905
        %v3907 = vsel %vm3786, %v3904, %v3906
        %v3908 = vsel %vm3788, %v3904, %v3907
        %v3909 = vsel %vm3777, %v3685, %v3685
        %v3910 = vsel %vm3779, %v3685, %v3909
        %v3911 = vrot.slane %v3686, 7
        %v3912 = vsel %vm3782, %v3911, %v3910
        %v3913 = vsel %vm3784, %v3911, %v3912
        %v3914 = vsel %vm3786, %v3911, %v3913
        %v3915 = vsel %vm3788, %v3911, %v3914
        %v3916 = vsel %vm3777, %v3687, %v3687
        %v3917 = vsel %vm3779, %v3687, %v3916
        %v3918 = vrot.slane %v3688, 7
        %v3919 = vsel %vm3782, %v3918, %v3917
        %v3920 = vsel %vm3784, %v3918, %v3919
        %v3921 = vsel %vm3786, %v3918, %v3920
        %v3922 = vsel %vm3788, %v3918, %v3921
        %v3923 = vsel %vm3777, %v3689, %v3689
        %v3924 = vsel %vm3779, %v3689, %v3923
        %v3925 = vrot.slane %v3690, 7
        %v3926 = vsel %vm3782, %v3925, %v3924
        %v3927 = vsel %vm3784, %v3925, %v3926
        %v3928 = vsel %vm3786, %v3925, %v3927
        %v3929 = vsel %vm3788, %v3925, %v3928
        %v3930 = vsel %vm3777, %v3691, %v3691
        %v3931 = vsel %vm3779, %v3691, %v3930
        %v3932 = vrot.slane %v3692, 7
        %v3933 = vsel %vm3782, %v3932, %v3931
        %v3934 = vsel %vm3784, %v3932, %v3933
        %v3935 = vsel %vm3786, %v3932, %v3934
        %v3936 = vsel %vm3788, %v3932, %v3935
        %v3937 = vsel %vm3777, %v3693, %v3693
        %v3938 = vsel %vm3779, %v3693, %v3937
        %v3939 = vrot.slane %v3694, 7
        %v3940 = vsel %vm3782, %v3939, %v3938
        %v3941 = vsel %vm3784, %v3939, %v3940
        %v3942 = vsel %vm3786, %v3939, %v3941
        %v3943 = vsel %vm3788, %v3939, %v3942
        %v3944 = vsel %vm3777, %v3695, %v3695
        %v3945 = vsel %vm3779, %v3695, %v3944
        %v3946 = vrot.slane %v3696, 7
        %v3947 = vsel %vm3782, %v3946, %v3945
        %v3948 = vsel %vm3784, %v3946, %v3947
        %v3949 = vsel %vm3786, %v3946, %v3948
        %v3950 = vsel %vm3788, %v3946, %v3949
        %v3951 = vsel %vm3777, %v3697, %v3697
        %v3952 = vsel %vm3779, %v3697, %v3951
        %v3953 = vrot.slane %v3698, 7
        %v3954 = vsel %vm3782, %v3953, %v3952
        %v3955 = vsel %vm3784, %v3953, %v3954
        %v3956 = vsel %vm3786, %v3953, %v3955
        %v3957 = vsel %vm3788, %v3953, %v3956
        %v3958 = vsel %vm3777, %v3699, %v3699
        %v3959 = vsel %vm3779, %v3699, %v3958
        %v3960 = vrot.slane %v3700, 7
        %v3961 = vsel %vm3782, %v3960, %v3959
        %v3962 = vsel %vm3784, %v3960, %v3961
        %v3963 = vsel %vm3786, %v3960, %v3962
        %v3964 = vsel %vm3788, %v3960, %v3963
        %v3965 = vsel %vm3777, %v3701, %v3701
        %v3966 = vsel %vm3779, %v3701, %v3965
        %v3967 = vrot.slane %v3702, 7
        %v3968 = vsel %vm3782, %v3967, %v3966
        %v3969 = vsel %vm3784, %v3967, %v3968
        %v3970 = vsel %vm3786, %v3967, %v3969
        %v3971 = vsel %vm3788, %v3967, %v3970
        %v3972 = vsel %vm3777, %v3703, %v3703
        %v3973 = vsel %vm3779, %v3703, %v3972
        %v3974 = vrot.slane %v3704, 7
        %v3975 = vsel %vm3782, %v3974, %v3973
        %v3976 = vsel %vm3784, %v3974, %v3975
        %v3977 = vsel %vm3786, %v3974, %v3976
        %v3978 = vsel %vm3788, %v3974, %v3977
        %v3979 = vsel %vm3777, %v3705, %v3705
        %v3980 = vsel %vm3779, %v3705, %v3979
        %v3981 = vrot.slane %v3706, 7
        %v3982 = vsel %vm3782, %v3981, %v3980
        %v3983 = vsel %vm3784, %v3981, %v3982
        %v3984 = vsel %vm3786, %v3981, %v3983
        %v3985 = vsel %vm3788, %v3981, %v3984
        %v3986 = vsel %vm3777, %v3707, %v3707
        %v3987 = vsel %vm3779, %v3707, %v3986
        %v3988 = vrot.slane %v3708, 7
        %v3989 = vsel %vm3782, %v3988, %v3987
        %v3990 = vsel %vm3784, %v3988, %v3989
        %v3991 = vsel %vm3786, %v3988, %v3990
        %v3992 = vsel %vm3788, %v3988, %v3991
        %v3993 = vsel %vm3777, %v3709, %v3709
        %v3994 = vsel %vm3779, %v3709, %v3993
        %v3995 = vrot.slane %v3710, 7
        %v3996 = vsel %vm3782, %v3995, %v3994
        %v3997 = vsel %vm3784, %v3995, %v3996
        %v3998 = vsel %vm3786, %v3995, %v3997
        %v3999 = vsel %vm3788, %v3995, %v3998
        %v4000 = vsel %vm3777, %v3711, %v3711
        %v4001 = vsel %vm3779, %v3711, %v4000
        %v4002 = vrot.slane %v3712, 7
        %v4003 = vsel %vm3782, %v4002, %v4001
        %v4004 = vsel %vm3784, %v4002, %v4003
        %v4005 = vsel %vm3786, %v4002, %v4004
        %v4006 = vsel %vm3788, %v4002, %v4005
        %v4039 = vcombine.low %v3789, %v3817
        %v4041 = vunpack.c.l.s4 1934713408
        %v4042 = vunpack.c.0.s8 %v4041
        %v4043 = vlaneseq
        %v4044 = vshrl.u32 %v4043, 7
        %v4045 = vsub.s32 %v4042, %v4044
        %v4046 = vrot.slane %v4039, %v4045
        %v4047 = vcombine.high %v4046, 0.0
        %v4048 = vcombine.low %v3845, %v3873
        %v4050 = vunpack.c.l.s4 1934713408
        %v4051 = vunpack.c.0.s8 %v4050
        %v4052 = vlaneseq
        %v4053 = vshrl.u32 %v4052, 7
        %v4054 = vsub.s32 %v4051, %v4053
        %v4055 = vrot.slane %v4048, %v4054
        %v4056 = vcombine.high %v4055, 0.0
        %v4057 = vcombine.low %v3901, %v3929
        %v4059 = vunpack.c.l.s4 1934713408
        %v4060 = vunpack.c.0.s8 %v4059
        %v4061 = vlaneseq
        %v4062 = vshrl.u32 %v4061, 7
        %v4063 = vsub.s32 %v4060, %v4062
        %v4064 = vrot.slane %v4057, %v4063
        %v4065 = vcombine.high %v4064, 0.0
        %v4066 = vcombine.low %v3957, %v3985
        %v4068 = vunpack.c.l.s4 1934713408
        %v4069 = vunpack.c.0.s8 %v4068
        %v4070 = vlaneseq
        %v4071 = vshrl.u32 %v4070, 7
        %v4072 = vsub.s32 %v4069, %v4071
        %v4073 = vrot.slane %v4066, %v4072
        %v4074 = vcombine.high %v4073, 0.0
        %v4075 = vcombine.low %v3796, %v3824
        %v4077 = vunpack.c.l.s4 1934713408
        %v4078 = vunpack.c.0.s8 %v4077
        %v4079 = vlaneseq
        %v4080 = vshrl.u32 %v4079, 7
        %v4081 = vsub.s32 %v4078, %v4080
        %v4082 = vrot.slane %v4075, %v4081
        %v4083 = vcombine.high %v4082, 0.0
        %v4084 = vcombine.low %v3852, %v3880
        %v4086 = vunpack.c.l.s4 1934713408
        %v4087 = vunpack.c.0.s8 %v4086
        %v4088 = vlaneseq
        %v4089 = vshrl.u32 %v4088, 7
        %v4090 = vsub.s32 %v4087, %v4089
        %v4091 = vrot.slane %v4084, %v4090
        %v4092 = vcombine.high %v4091, 0.0
        %v4093 = vcombine.low %v3908, %v3936
        %v4095 = vunpack.c.l.s4 1934713408
        %v4096 = vunpack.c.0.s8 %v4095
        %v4097 = vlaneseq
        %v4098 = vshrl.u32 %v4097, 7
        %v4099 = vsub.s32 %v4096, %v4098
        %v4100 = vrot.slane %v4093, %v4099
        %v4101 = vcombine.high %v4100, 0.0
        %v4102 = vcombine.low %v3964, %v3992
        %v4104 = vunpack.c.l.s4 1934713408
        %v4105 = vunpack.c.0.s8 %v4104
        %v4106 = vlaneseq
        %v4107 = vshrl.u32 %v4106, 7
        %v4108 = vsub.s32 %v4105, %v4107
        %v4109 = vrot.slane %v4102, %v4108
        %v4110 = vcombine.high %v4109, 0.0
        %v4111 = vcombine.low %v3803, %v3831
        %v4113 = vunpack.c.l.s4 1934713408
        %v4114 = vunpack.c.0.s8 %v4113
        %v4115 = vlaneseq
        %v4116 = vshrl.u32 %v4115, 7
        %v4117 = vsub.s32 %v4114, %v4116
        %v4118 = vrot.slane %v4111, %v4117
        %v4119 = vcombine.high %v4118, 0.0
        %v4120 = vcombine.low %v3859, %v3887
        %v4122 = vunpack.c.l.s4 1934713408
        %v4123 = vunpack.c.0.s8 %v4122
        %v4124 = vlaneseq
        %v4125 = vshrl.u32 %v4124, 7
        %v4126 = vsub.s32 %v4123, %v4125
        %v4127 = vrot.slane %v4120, %v4126
        %v4128 = vcombine.high %v4127, 0.0
        %v4129 = vcombine.low %v3915, %v3943
        %v4131 = vunpack.c.l.s4 1934713408
        %v4132 = vunpack.c.0.s8 %v4131
        %v4133 = vlaneseq
        %v4134 = vshrl.u32 %v4133, 7
        %v4135 = vsub.s32 %v4132, %v4134
        %v4136 = vrot.slane %v4129, %v4135
        %v4137 = vcombine.high %v4136, 0.0
        %v4138 = vcombine.low %v3971, %v3999
        %v4140 = vunpack.c.l.s4 1934713408
        %v4141 = vunpack.c.0.s8 %v4140
        %v4142 = vlaneseq
        %v4143 = vshrl.u32 %v4142, 7
        %v4144 = vsub.s32 %v4141, %v4143
        %v4145 = vrot.slane %v4138, %v4144
        %v4146 = vcombine.high %v4145, 0.0
        %v4147 = vcombine.low %v3810, %v3838
        %v4149 = vunpack.c.l.s4 1934713408
        %v4150 = vunpack.c.0.s8 %v4149
        %v4151 = vlaneseq
        %v4152 = vshrl.u32 %v4151, 7
        %v4153 = vsub.s32 %v4150, %v4152
        %v4154 = vrot.slane %v4147, %v4153
        %v4155 = vcombine.high %v4154, 0.0
        %v4156 = vcombine.low %v3866, %v3894
        %v4158 = vunpack.c.l.s4 1934713408
        %v4159 = vunpack.c.0.s8 %v4158
        %v4160 = vlaneseq
        %v4161 = vshrl.u32 %v4160, 7
        %v4162 = vsub.s32 %v4159, %v4161
        %v4163 = vrot.slane %v4156, %v4162
        %v4164 = vcombine.high %v4163, 0.0
        %v4165 = vcombine.low %v3922, %v3950
        %v4167 = vunpack.c.l.s4 1934713408
        %v4168 = vunpack.c.0.s8 %v4167
        %v4169 = vlaneseq
        %v4170 = vshrl.u32 %v4169, 7
        %v4171 = vsub.s32 %v4168, %v4170
        %v4172 = vrot.slane %v4165, %v4171
        %v4173 = vcombine.high %v4172, 0.0
        %v4174 = vcombine.low %v3978, %v4006
        %v4176 = vunpack.c.l.s4 1934713408
        %v4177 = vunpack.c.0.s8 %v4176
        %v4178 = vlaneseq
        %v4179 = vshrl.u32 %v4178, 7
        %v4180 = vsub.s32 %v4177, %v4179
        %v4181 = vrot.slane %v4174, %v4180
        %v4182 = vcombine.high %v4181, 0.0
        %v4187 = vcombine.low %v4046, %v4055
        %v4188 = vcombine.low %v4064, %v4073
        %v4190 = vunpack.c.l.s4 1983009808
        %v4191 = vunpack.c.0.s8 %v4190
        %v4192 = vlaneseq
        %v4193 = vshrl.u32 %v4192, 7
        %v4194 = vsub.s32 %v4191, %v4193
        %v4195 = vrot.slane %v4187, %v4194
        %v4197 = vunpack.c.l.s4 1983009808
        %v4198 = vunpack.c.0.s8 %v4197
        %v4199 = vlaneseq
        %v4200 = vshrl.u32 %v4199, 7
        %v4201 = vsub.s32 %v4198, %v4200
        %v4202 = vrot.slane %v4188, %v4201
        %v4203 = vcombine.low %v4195, %v4202
        %v4209 = vcombine.low %v4047, %v4056
        %v4210 = vcombine.low %v4065, %v4074
        %v4212 = vunpack.c.l.s4 1983009808
        %v4213 = vunpack.c.0.s8 %v4212
        %v4214 = vlaneseq
        %v4215 = vshrl.u32 %v4214, 7
        %v4216 = vsub.s32 %v4213, %v4215
        %v4217 = vrot.slane %v4209, %v4216
        %v4219 = vunpack.c.l.s4 1983009808
        %v4220 = vunpack.c.0.s8 %v4219
        %v4221 = vlaneseq
        %v4222 = vshrl.u32 %v4221, 7
        %v4223 = vsub.s32 %v4220, %v4222
        %v4224 = vrot.slane %v4210, %v4223
        %v4225 = vcombine.low %v4217, %v4224
        %4226 = vrot.lane.b32.xlu0 %v4225, 8
        %v4227 = vpop.permute.xlu0 %4226
        %v4233 = vcombine.low %v4082, %v4091
        %v4234 = vcombine.low %v4100, %v4109
        %v4236 = vunpack.c.l.s4 1983009808
        %v4237 = vunpack.c.0.s8 %v4236
        %v4238 = vlaneseq
        %v4239 = vshrl.u32 %v4238, 7
        %v4240 = vsub.s32 %v4237, %v4239
        %v4241 = vrot.slane %v4233, %v4240
        %v4243 = vunpack.c.l.s4 1983009808
        %v4244 = vunpack.c.0.s8 %v4243
        %v4245 = vlaneseq
        %v4246 = vshrl.u32 %v4245, 7
        %v4247 = vsub.s32 %v4244, %v4246
        %v4248 = vrot.slane %v4234, %v4247
        %v4249 = vcombine.low %v4241, %v4248
        %4250 = vrot.lane.b32.xlu0 %v4249, 16
        %v4251 = vpop.permute.xlu0 %4250
        %v4257 = vcombine.low %v4083, %v4092
        %v4258 = vcombine.low %v4101, %v4110
        %v4260 = vunpack.c.l.s4 1983009808
        %v4261 = vunpack.c.0.s8 %v4260
        %v4262 = vlaneseq
        %v4263 = vshrl.u32 %v4262, 7
        %v4264 = vsub.s32 %v4261, %v4263
        %v4265 = vrot.slane %v4257, %v4264
        %v4267 = vunpack.c.l.s4 1983009808
        %v4268 = vunpack.c.0.s8 %v4267
        %v4269 = vlaneseq
        %v4270 = vshrl.u32 %v4269, 7
        %v4271 = vsub.s32 %v4268, %v4270
        %v4272 = vrot.slane %v4258, %v4271
        %v4273 = vcombine.low %v4265, %v4272
        %4274 = vrot.lane.b32.xlu0 %v4273, 24
        %v4275 = vpop.permute.xlu0 %4274
        %v4281 = vcombine.low %v4118, %v4127
        %v4282 = vcombine.low %v4136, %v4145
        %v4284 = vunpack.c.l.s4 1983009808
        %v4285 = vunpack.c.0.s8 %v4284
        %v4286 = vlaneseq
        %v4287 = vshrl.u32 %v4286, 7
        %v4288 = vsub.s32 %v4285, %v4287
        %v4289 = vrot.slane %v4281, %v4288
        %v4291 = vunpack.c.l.s4 1983009808
        %v4292 = vunpack.c.0.s8 %v4291
        %v4293 = vlaneseq
        %v4294 = vshrl.u32 %v4293, 7
        %v4295 = vsub.s32 %v4292, %v4294
        %v4296 = vrot.slane %v4282, %v4295
        %v4297 = vcombine.low %v4289, %v4296
        %4298 = vrot.lane.b32.xlu0 %v4297, 32
        %v4299 = vpop.permute.xlu0 %4298
        %v4305 = vcombine.low %v4119, %v4128
        %v4306 = vcombine.low %v4137, %v4146
        %v4308 = vunpack.c.l.s4 1983009808
        %v4309 = vunpack.c.0.s8 %v4308
        %v4310 = vlaneseq
        %v4311 = vshrl.u32 %v4310, 7
        %v4312 = vsub.s32 %v4309, %v4311
        %v4313 = vrot.slane %v4305, %v4312
        %v4315 = vunpack.c.l.s4 1983009808
        %v4316 = vunpack.c.0.s8 %v4315
        %v4317 = vlaneseq
        %v4318 = vshrl.u32 %v4317, 7
        %v4319 = vsub.s32 %v4316, %v4318
        %v4320 = vrot.slane %v4306, %v4319
        %v4321 = vcombine.low %v4313, %v4320
        %4322 = vrot.lane.b32.xlu0 %v4321, 40
        %v4323 = vpop.permute.xlu0 %4322
        %v4329 = vcombine.low %v4154, %v4163
        %v4330 = vcombine.low %v4172, %v4181
        %v4332 = vunpack.c.l.s4 1983009808
        %v4333 = vunpack.c.0.s8 %v4332
        %v4334 = vlaneseq
        %v4335 = vshrl.u32 %v4334, 7
        %v4336 = vsub.s32 %v4333, %v4335
        %v4337 = vrot.slane %v4329, %v4336
        %v4339 = vunpack.c.l.s4 1983009808
        %v4340 = vunpack.c.0.s8 %v4339
        %v4341 = vlaneseq
        %v4342 = vshrl.u32 %v4341, 7
        %v4343 = vsub.s32 %v4340, %v4342
        %v4344 = vrot.slane %v4330, %v4343
        %v4345 = vcombine.low %v4337, %v4344
        %4346 = vrot.lane.b32.xlu0 %v4345, 48
        %v4347 = vpop.permute.xlu0 %4346
        %v4353 = vcombine.low %v4155, %v4164
        %v4354 = vcombine.low %v4173, %v4182
        %v4356 = vunpack.c.l.s4 1983009808
        %v4357 = vunpack.c.0.s8 %v4356
        %v4358 = vlaneseq
        %v4359 = vshrl.u32 %v4358, 7
        %v4360 = vsub.s32 %v4357, %v4359
        %v4361 = vrot.slane %v4353, %v4360
        %v4363 = vunpack.c.l.s4 1983009808
        %v4364 = vunpack.c.0.s8 %v4363
        %v4365 = vlaneseq
        %v4366 = vshrl.u32 %v4365, 7
        %v4367 = vsub.s32 %v4364, %v4366
        %v4368 = vrot.slane %v4354, %v4367
        %v4369 = vcombine.low %v4361, %v4368
        %4370 = vrot.lane.b32.xlu0 %v4369, 56
        %v4371 = vpop.permute.xlu0 %4370
        %v4373 = vsel %vm1555, %v4203, %v4227
        %v4374 = vsel %vm1621, %v4373, %v4251
        %v4375 = vsel %vm1687, %v4374, %v4275
        %v4376 = vsel %vm1753, %v4375, %v4299
        %vm4377 = vcmask 326656
        %v4378 = vsel %vm4377, %v4376, %v4323
        %vm4379 = vcmask 392192
        %v4380 = vsel %vm4379, %v4378, %v4347
        %vm4381 = vcmask 457728
        %v4382 = vsel %vm4381, %v4380, %v4371
        %vm4383 = vcmask 523264
        %4384 = vst.msk [vmem:[%s207] sm:$0xff] %vm4383, %v4382
      $region48: #{base_conv_forward.1} parent=35 // pred_fallthru
        _
      %p4385 = scmp.lt.s32.totalorder %s20, 1
      %s4386 = scalar_select %p4385, %s20, 1
      %s4387 = smul.addr %s4386, 8
      %s4388 = scalar_lea.vmem %s4, %s4387
      // Predicated region
      $region49: #{base_conv_forward.1} parent=35 // pred_check
        %p4389 = pneg %p134
      $region50: #{base_conv_forward.1} parent=35 // pred_check_branch
        %4391 = sbr.rel (%p4389) target = $region52
      $region51: #{base_conv_forward.1} parent=35 // pred_region
        _
      $region52: #{base_conv_forward.1} parent=35 // pred_fallthru
        _
    $region36: #{base_conv_forward.1} parent=5 // pred_fallthru
      _
    %p4392 = scmp.le.s32.totalorder 2, %s10
    // Predicated region
    $region53: #{base_conv_forward.1} parent=5 // pred_check
      %p4393 = pneg %p4392
    $region54: #{base_conv_forward.1} parent=5 // pred_check_branch
      %4395 = sbr.rel (%p4393) target = $region56
    $region55: #{base_conv_forward.1} parent=5 // pred_region
      %s4396 = ssub.s32 %s10, 2
      // Predicated region
      $region57: #{base_conv_forward.1} parent=55 // pred_check
        %p4397 = pneg %p140
      $region58: #{base_conv_forward.1} parent=55 // pred_check_branch
        %4399 = sbr.rel (%p4397) target = $region60
      $region59: #{base_conv_forward.1} parent=55 // pred_region
        %p4400 = scmp.lt.s32.totalorder %s22, 1
        %s4401 = scalar_select %p4400, %s22, 1
        %s4402 = smul.addr %s4401, 8
        %s4403 = scalar_lea.vmem %s4, %s4402
      $region60: #{base_conv_forward.1} parent=55 // pred_fallthru
        _
    $region56: #{base_conv_forward.1} parent=5 // pred_fallthru
      _
  $region6: #{base_conv_forward.1} parent=0 // loop_footer
    %s14 = sadd.s32 1, %s10
  $region7: #{base_conv_forward.1} parent=0 // loop_footer_branch
    %9 = sbr.rel target = $region3
  $region8: #{base_conv_forward.1} parent=0 // loop_exit
    _

</llo_original>
